<compile_context>
chip_gen: v7x
topology: tpu7x:2x2x1
jax: 0.10.0
libtpu: 0.0.40
codegen_flags: <defaults>
</compile_context>

<pallas_src>
import jax
import jax.numpy as jnp
from jax.experimental import pallas as pl
from jax.experimental.pallas import tpu as pltpu

COND_DIM = 2
HIDDEN = 300
HPAD = 384            # 300 padded up to a multiple of 128 (hidden lives on the sublane axis)
W2_ROWS = 8           # 2 output channels padded to one full sublane tile for the MXU
LANES = 128
NEG_SLOPE = 0.01      # torch.nn.LeakyReLU default


def map_model_kernel(x_ref, y_ref, w1_ref, b1_ref, w2_ref, b2_ref, coef_ref,
                     r_ref, ld_ref):
    # --- scalar parameters from SMEM (cheap sreg loads, no lane extraction) ---
    c0 = coef_ref[0]
    c1 = coef_ref[1]
    c2 = coef_ref[2]
    c3 = coef_ref[3]
    c4 = coef_ref[4]
    c5 = coef_ref[5]
    alpha = coef_ref[6]
    beta = coef_ref[7]
    three_beta = 3.0 * beta
    b2_0 = b2_ref[0]
    b2_1 = b2_ref[1]

    # --- hoisted lane-broadcasts of layer-1 params (JAX does not CSE broadcast_in_dim) ---
    w1b = jnp.broadcast_to(w1_ref[...], (HPAD, LANES))   # (HPAD, 128)
    b1b = jnp.broadcast_to(b1_ref[...], (HPAD, LANES))   # (HPAD, 128)
    w2 = w2_ref[...]                                     # (8, HPAD), rows 2..7 are zero

    bm = x_ref.shape[0]                                  # static (sublane rows per block)
    for i in range(bm):                                  # short static unroll
        xi = x_ref[i:i + 1, :]                           # (1, 128)  samples in lanes
        x3 = y_ref[i:i + 1, :]                           # (1, 128)

        # linear1 (1 -> 300): pure VPU broadcast multiply-add (no degenerate K=1 MXU matmul)
        h = w1b * xi + b1b                               # (HPAD, 128)
        # LeakyReLU; padded hidden rows stay exactly 0 (w1/b1 pads are 0 -> leaky(0)=0)
        h = jnp.where(h >= 0.0, h, NEG_SLOPE * h)

        # linear2 (300 -> 2): MXU matmul, lane-dense result
        z = jnp.dot(w2, h, preferred_element_type=jnp.float32)   # (8, 128)
        x1 = z[0:1, :] + b2_0                            # (1, 128)
        x2 = z[1:2, :] + b2_1                            # (1, 128)

        # synthetic monotone triangular map T(x1, x2, x3) and log|dT/dx3|
        p = (c0 + c1 * x1 + c2 * x2 + c3 * (x1 * x2)
             + c4 * (x1 * x1) + c5 * (x2 * x2))
        x3_sq = x3 * x3
        r_ref[i:i + 1, :] = p + alpha * x3 + beta * (x3_sq * x3)
        ld_ref[i:i + 1, :] = jnp.log(alpha + three_beta * x3_sq)   # log -> EUP slot


def map_model_forward(x, y, w1, b1, w2, b2, coef, *, bm=8):
    """x, y: (N, 1) float32.  Returns r, logdet: (N, 1) float32."""
    N = x.shape[0]
    samp = bm * LANES                       # samples per grid step (default 1024)
    n_blocks = pl.cdiv(N, samp)
    n_pad = n_blocks * samp
    rows = n_pad // LANES                   # lane-dense layout: (rows, 128)

    xr = jnp.pad(x[:, 0], (0, n_pad - N)).reshape(rows, LANES)
    yr = jnp.pad(y[:, 0], (0, n_pad - N)).reshape(rows, LANES)

    r2, ld2 = pl.pallas_call(
        map_model_kernel,
        out_shape=(
            jax.ShapeDtypeStruct((rows, LANES), jnp.float32),
            jax.ShapeDtypeStruct((rows, LANES), jnp.float32),
        ),
        grid_spec=pltpu.PrefetchScalarGridSpec(
            num_scalar_prefetch=0,
            grid=(n_blocks,),
            in_specs=[
                pl.BlockSpec((bm, LANES), lambda i: (i, 0)),        # x (lane-dense)
                pl.BlockSpec((bm, LANES), lambda i: (i, 0)),        # y (lane-dense)
                pl.BlockSpec((HPAD, 1), lambda i: (0, 0)),          # w1 column (padded)
                pl.BlockSpec((HPAD, 1), lambda i: (0, 0)),          # b1 column (padded)
                pl.BlockSpec((W2_ROWS, HPAD), lambda i: (0, 0)),    # w2 (padded rows/cols)
                pl.BlockSpec(memory_space=pltpu.MemorySpace.SMEM),  # b2 scalars
                pl.BlockSpec(memory_space=pltpu.MemorySpace.SMEM),  # tmap coefficients
            ],
            out_specs=[
                pl.BlockSpec((bm, LANES), lambda i: (i, 0)),        # r
                pl.BlockSpec((bm, LANES), lambda i: (i, 0)),        # logdet
            ],
        ),
        compiler_params=pltpu.CompilerParams(
            dimension_semantics=("parallel",),
            vmem_limit_bytes=32 * 1024 * 1024,   # headroom over v5e's 16 MiB scoped default
        ),
    )(xr, yr, w1, b1, w2, b2, coef)

    r = r2.reshape(n_pad, 1)[:N]
    logdet = ld2.reshape(n_pad, 1)[:N]
    return r, logdet


def make_params():
    key = jax.random.PRNGKey(0)
    k1, k2, k3, k4 = jax.random.split(key, 4)

    # linear1: torch weight (300, 1), bias (300,) -> column layout (HPAD, 1), zero-padded
    w1 = 0.5 * jax.random.normal(k1, (HIDDEN, 1), dtype=jnp.float32)
    w1 = jnp.pad(w1, ((0, HPAD - HIDDEN), (0, 0)))
    b1 = 0.1 * jax.random.normal(k2, (HIDDEN, 1), dtype=jnp.float32)
    b1 = jnp.pad(b1, ((0, HPAD - HIDDEN), (0, 0)))

    # linear2: torch weight (2, 300) -> (8, 384), zero-padded rows/cols
    w2 = (1.0 / jnp.sqrt(HIDDEN)) * jax.random.normal(
        k3, (COND_DIM, HIDDEN), dtype=jnp.float32)
    w2 = jnp.pad(w2, ((0, W2_ROWS - COND_DIM), (0, HPAD - HIDDEN)))
    b2 = 0.1 * jax.random.normal(k4, (COND_DIM,), dtype=jnp.float32)

    # synthetic triangular-map coefficients: [c0..c5, alpha>0, beta>0]
    coef = jnp.array([0.10, 0.50, -0.30, 0.20, 0.05, -0.10, 0.70, 0.20],
                     dtype=jnp.float32)
    return w1, b1, w2, b2, coef


def reference_forward(x, y, w1, b1, w2, b2, coef):
    # layer 1 is K=1, so it is exactly a broadcast multiply-add
    h = x * w1[:, 0][None, :] + b1[:, 0][None, :]
    h = jnp.where(h >= 0.0, h, NEG_SLOPE * h)
    z = jnp.dot(h, w2.T, precision=jax.lax.Precision.HIGHEST)   # (N, 8)
    x1 = z[:, 0:1] + b2[0]
    x2 = z[:, 1:2] + b2[1]
    x3 = y
    c = coef
    p = c[0] + c[1] * x1 + c[2] * x2 + c[3] * x1 * x2 + c[4] * x1 ** 2 + c[5] * x2 ** 2
    r = p + c[6] * x3 + c[7] * x3 ** 3
    logdet = jnp.log(c[6] + 3.0 * c[7] * x3 ** 2)
    return r, logdet


if __name__ == "__main__":
    # num_plot * num_samples_per_point = 200 * 10 = 2000 samples (spec shape, still small)
    N = 2000
    key = jax.random.PRNGKey(0)
    kx, ky = jax.random.split(key)
    x = jax.random.normal(kx, (N, 1), dtype=jnp.float32)
    y = jax.random.normal(ky, (N, 1), dtype=jnp.float32)

    params = make_params()

    r, logdet = map_model_forward(x, y, *params)
    jax.block_until_ready((r, logdet))

    r_ref, ld_ref = reference_forward(x, y, *params)
    assert r.shape == (N, 1) and logdet.shape == (N, 1)
    assert jnp.allclose(r, r_ref, atol=5e-4, rtol=5e-4)
    assert jnp.allclose(logdet, ld_ref, atol=5e-4, rtol=5e-4)

    print("KERNEL_OK")
</pallas_src>

<mosaic_0001>
module attributes {stable_mosaic.version = 11 : i64} {
  func.func @map_model_kernel(%arg0: i32, %arg1: memref<8x128xf32, #tpu.memory_space<vmem>>, %arg2: memref<8x128xf32, #tpu.memory_space<vmem>>, %arg3: memref<384x1xf32, #tpu.memory_space<vmem>>, %arg4: memref<384x1xf32, #tpu.memory_space<vmem>>, %arg5: memref<8x384xf32, #tpu.memory_space<vmem>>, %arg6: memref<2xf32, #tpu.memory_space<smem>>, %arg7: memref<8xf32, #tpu.memory_space<smem>>, %arg8: memref<8x128xf32, #tpu.memory_space<vmem>>, %arg9: memref<8x128xf32, #tpu.memory_space<vmem>>) attributes {dimension_semantics = [#tpu.dimension_semantics<parallel>], iteration_bounds = array<i64: 2>, scalar_prefetch = 0 : i64, scratch_operands = 0 : i64, tpu.core_type = #tpu.core_type<tc>, window_params = [{transform_indices = @transform_0, window_bounds = array<i64: 8, 128>}, {transform_indices = @transform_1, window_bounds = array<i64: 8, 128>}, {pipeline_mode = #tpu.pipeline_mode<synchronous>, transform_indices = @transform_2, window_bounds = array<i64: 384, 1>}, {pipeline_mode = #tpu.pipeline_mode<synchronous>, transform_indices = @transform_3, window_bounds = array<i64: 384, 1>}, {pipeline_mode = #tpu.pipeline_mode<synchronous>, transform_indices = @transform_4, window_bounds = array<i64: 8, 384>}, {transform_indices = @transform_5, window_bounds = array<i64: 2>}, {transform_indices = @transform_6, window_bounds = array<i64: 8>}, {transform_indices = @transform_7, window_bounds = array<i64: 8, 128>}, {transform_indices = @transform_8, window_bounds = array<i64: 8, 128>}]} {
    %c0 = arith.constant 0 : index
    %0 = memref.load %arg7[%c0] : memref<8xf32, #tpu.memory_space<smem>>
    %c1 = arith.constant 1 : index
    %1 = memref.load %arg7[%c1] : memref<8xf32, #tpu.memory_space<smem>>
    %c2 = arith.constant 2 : index
    %2 = memref.load %arg7[%c2] : memref<8xf32, #tpu.memory_space<smem>>
    %c3 = arith.constant 3 : index
    %3 = memref.load %arg7[%c3] : memref<8xf32, #tpu.memory_space<smem>>
    %c4 = arith.constant 4 : index
    %4 = memref.load %arg7[%c4] : memref<8xf32, #tpu.memory_space<smem>>
    %c5 = arith.constant 5 : index
    %5 = memref.load %arg7[%c5] : memref<8xf32, #tpu.memory_space<smem>>
    %c6 = arith.constant 6 : index
    %6 = memref.load %arg7[%c6] : memref<8xf32, #tpu.memory_space<smem>>
    %c7 = arith.constant 7 : index
    %7 = memref.load %arg7[%c7] : memref<8xf32, #tpu.memory_space<smem>>
    %cst = arith.constant 3.000000e+00 : f32
    %8 = arith.mulf %cst, %7 : f32
    %c0_0 = arith.constant 0 : index
    %9 = memref.load %arg6[%c0_0] : memref<2xf32, #tpu.memory_space<smem>>
    %c1_1 = arith.constant 1 : index
    %10 = memref.load %arg6[%c1_1] : memref<2xf32, #tpu.memory_space<smem>>
    %c0_2 = arith.constant 0 : index
    %c0_3 = arith.constant 0 : index
    %11 = vector.load %arg3[%c0_2, %c0_3] : memref<384x1xf32, #tpu.memory_space<vmem>>, vector<384x1xf32>
    %12 = vector.shape_cast %11 : vector<384x1xf32> to vector<384x1xf32>
    %13 = vector.broadcast %12 : vector<384x1xf32> to vector<384x128xf32>
    %c0_4 = arith.constant 0 : index
    %c0_5 = arith.constant 0 : index
    %14 = vector.load %arg4[%c0_4, %c0_5] : memref<384x1xf32, #tpu.memory_space<vmem>>, vector<384x1xf32>
    %15 = vector.shape_cast %14 : vector<384x1xf32> to vector<384x1xf32>
    %16 = vector.broadcast %15 : vector<384x1xf32> to vector<384x128xf32>
    %c0_6 = arith.constant 0 : index
    %c0_7 = arith.constant 0 : index
    %17 = vector.load %arg5[%c0_6, %c0_7] : memref<8x384xf32, #tpu.memory_space<vmem>>, vector<8x384xf32>
    %c0_8 = arith.constant 0 : index
    %c0_9 = arith.constant 0 : index
    %18 = vector.load %arg1[%c0_8, %c0_9] : memref<8x128xf32, #tpu.memory_space<vmem>>, vector<1x128xf32>
    %c0_10 = arith.constant 0 : index
    %c0_11 = arith.constant 0 : index
    %19 = vector.load %arg2[%c0_10, %c0_11] : memref<8x128xf32, #tpu.memory_space<vmem>>, vector<1x128xf32>
    %20 = vector.broadcast %18 : vector<1x128xf32> to vector<384x128xf32>
    %21 = arith.mulf %13, %20 : vector<384x128xf32>
    %22 = arith.addf %21, %16 : vector<384x128xf32>
    %cst_12 = arith.constant 0.000000e+00 : f32
    %23 = vector.broadcast %cst_12 : f32 to vector<384x128xf32>
    %24 = arith.cmpf oge, %22, %23 : vector<384x128xf32>
    %cst_13 = arith.constant 0.00999999977 : f32
    %25 = vector.broadcast %cst_13 : f32 to vector<384x128xf32>
    %26 = arith.mulf %25, %22 : vector<384x128xf32>
    %27 = arith.select %24, %22, %26 : vector<384x128xi1>, vector<384x128xf32>
    %cst_14 = arith.constant dense<0.000000e+00> : vector<8x128xf32>
    %28 = tpu.matmul %17, %27, %cst_14 {dimension_numbers = #tpu.dot_dimension_numbers<[1], [0], [0], [1], [0, 0, 1, 1], [], []>} : vector<8x384xf32>, vector<384x128xf32>, vector<8x128xf32> -> vector<8x128xf32>
    %29 = vector.extract_strided_slice %28 {offsets = [0, 0], sizes = [1, 128], strides = [1, 1]} : vector<8x128xf32> to vector<1x128xf32>
    %30 = vector.broadcast %9 : f32 to vector<1x128xf32>
    %31 = arith.addf %29, %30 : vector<1x128xf32>
    %32 = vector.extract_strided_slice %28 {offsets = [1, 0], sizes = [1, 128], strides = [1, 1]} : vector<8x128xf32> to vector<1x128xf32>
    %33 = vector.broadcast %10 : f32 to vector<1x128xf32>
    %34 = arith.addf %32, %33 : vector<1x128xf32>
    %35 = vector.broadcast %1 : f32 to vector<1x128xf32>
    %36 = arith.mulf %35, %31 : vector<1x128xf32>
    %37 = vector.broadcast %0 : f32 to vector<1x128xf32>
    %38 = arith.addf %37, %36 : vector<1x128xf32>
    %39 = vector.broadcast %2 : f32 to vector<1x128xf32>
    %40 = arith.mulf %39, %34 : vector<1x128xf32>
    %41 = arith.addf %38, %40 : vector<1x128xf32>
    %42 = arith.mulf %31, %34 : vector<1x128xf32>
    %43 = vector.broadcast %3 : f32 to vector<1x128xf32>
    %44 = arith.mulf %43, %42 : vector<1x128xf32>
    %45 = arith.addf %41, %44 : vector<1x128xf32>
    %46 = arith.mulf %31, %31 : vector<1x128xf32>
    %47 = vector.broadcast %4 : f32 to vector<1x128xf32>
    %48 = arith.mulf %47, %46 : vector<1x128xf32>
    %49 = arith.addf %45, %48 : vector<1x128xf32>
    %50 = arith.mulf %34, %34 : vector<1x128xf32>
    %51 = vector.broadcast %5 : f32 to vector<1x128xf32>
    %52 = arith.mulf %51, %50 : vector<1x128xf32>
    %53 = arith.addf %49, %52 : vector<1x128xf32>
    %54 = arith.mulf %19, %19 : vector<1x128xf32>
    %55 = vector.broadcast %6 : f32 to vector<1x128xf32>
    %56 = arith.mulf %55, %19 : vector<1x128xf32>
    %57 = arith.addf %53, %56 : vector<1x128xf32>
    %58 = arith.mulf %54, %19 : vector<1x128xf32>
    %59 = vector.broadcast %7 : f32 to vector<1x128xf32>
    %60 = arith.mulf %59, %58 : vector<1x128xf32>
    %61 = arith.addf %57, %60 : vector<1x128xf32>
    %c0_15 = arith.constant 0 : index
    %c0_16 = arith.constant 0 : index
    %62 = vector.load %arg8[%c0_15, %c0_16] : memref<8x128xf32, #tpu.memory_space<vmem>>, vector<1x128xf32>
    tpu.vector_store %arg8[%c0_15, %c0_16], %61 {strides = array<i32>} : memref<8x128xf32, #tpu.memory_space<vmem>>, vector<1x128xf32>,
    %63 = vector.broadcast %8 : f32 to vector<1x128xf32>
    %64 = arith.mulf %63, %54 : vector<1x128xf32>
    %65 = vector.broadcast %6 : f32 to vector<1x128xf32>
    %66 = arith.addf %65, %64 : vector<1x128xf32>
    %67 = math.log %66 : vector<1x128xf32>
    %c0_17 = arith.constant 0 : index
    %c0_18 = arith.constant 0 : index
    %68 = vector.load %arg9[%c0_17, %c0_18] : memref<8x128xf32, #tpu.memory_space<vmem>>, vector<1x128xf32>
    tpu.vector_store %arg9[%c0_17, %c0_18], %67 {strides = array<i32>} : memref<8x128xf32, #tpu.memory_space<vmem>>, vector<1x128xf32>,
    %c1_19 = arith.constant 1 : index
    %c0_20 = arith.constant 0 : index
    %69 = vector.load %arg1[%c1_19, %c0_20] : memref<8x128xf32, #tpu.memory_space<vmem>>, vector<1x128xf32>
    %c1_21 = arith.constant 1 : index
    %c0_22 = arith.constant 0 : index
    %70 = vector.load %arg2[%c1_21, %c0_22] : memref<8x128xf32, #tpu.memory_space<vmem>>, vector<1x128xf32>
    %71 = vector.broadcast %69 : vector<1x128xf32> to vector<384x128xf32>
    %72 = arith.mulf %13, %71 : vector<384x128xf32>
    %73 = arith.addf %72, %16 : vector<384x128xf32>
    %cst_23 = arith.constant 0.000000e+00 : f32
    %74 = vector.broadcast %cst_23 : f32 to vector<384x128xf32>
    %75 = arith.cmpf oge, %73, %74 : vector<384x128xf32>
    %cst_24 = arith.constant 0.00999999977 : f32
    %76 = vector.broadcast %cst_24 : f32 to vector<384x128xf32>
    %77 = arith.mulf %76, %73 : vector<384x128xf32>
    %78 = arith.select %75, %73, %77 : vector<384x128xi1>, vector<384x128xf32>
    %cst_25 = arith.constant dense<0.000000e+00> : vector<8x128xf32>
    %79 = tpu.matmul %17, %78, %cst_25 {dimension_numbers = #tpu.dot_dimension_numbers<[1], [0], [0], [1], [0, 0, 1, 1], [], []>} : vector<8x384xf32>, vector<384x128xf32>, vector<8x128xf32> -> vector<8x128xf32>
    %80 = vector.extract_strided_slice %79 {offsets = [0, 0], sizes = [1, 128], strides = [1, 1]} : vector<8x128xf32> to vector<1x128xf32>
    %81 = vector.broadcast %9 : f32 to vector<1x128xf32>
    %82 = arith.addf %80, %81 : vector<1x128xf32>
    %83 = vector.extract_strided_slice %79 {offsets = [1, 0], sizes = [1, 128], strides = [1, 1]} : vector<8x128xf32> to vector<1x128xf32>
    %84 = vector.broadcast %10 : f32 to vector<1x128xf32>
    %85 = arith.addf %83, %84 : vector<1x128xf32>
    %86 = vector.broadcast %1 : f32 to vector<1x128xf32>
    %87 = arith.mulf %86, %82 : vector<1x128xf32>
    %88 = vector.broadcast %0 : f32 to vector<1x128xf32>
    %89 = arith.addf %88, %87 : vector<1x128xf32>
    %90 = vector.broadcast %2 : f32 to vector<1x128xf32>
    %91 = arith.mulf %90, %85 : vector<1x128xf32>
    %92 = arith.addf %89, %91 : vector<1x128xf32>
    %93 = arith.mulf %82, %85 : vector<1x128xf32>
    %94 = vector.broadcast %3 : f32 to vector<1x128xf32>
    %95 = arith.mulf %94, %93 : vector<1x128xf32>
    %96 = arith.addf %92, %95 : vector<1x128xf32>
    %97 = arith.mulf %82, %82 : vector<1x128xf32>
    %98 = vector.broadcast %4 : f32 to vector<1x128xf32>
    %99 = arith.mulf %98, %97 : vector<1x128xf32>
    %100 = arith.addf %96, %99 : vector<1x128xf32>
    %101 = arith.mulf %85, %85 : vector<1x128xf32>
    %102 = vector.broadcast %5 : f32 to vector<1x128xf32>
    %103 = arith.mulf %102, %101 : vector<1x128xf32>
    %104 = arith.addf %100, %103 : vector<1x128xf32>
    %105 = arith.mulf %70, %70 : vector<1x128xf32>
    %106 = vector.broadcast %6 : f32 to vector<1x128xf32>
    %107 = arith.mulf %106, %70 : vector<1x128xf32>
    %108 = arith.addf %104, %107 : vector<1x128xf32>
    %109 = arith.mulf %105, %70 : vector<1x128xf32>
    %110 = vector.broadcast %7 : f32 to vector<1x128xf32>
    %111 = arith.mulf %110, %109 : vector<1x128xf32>
    %112 = arith.addf %108, %111 : vector<1x128xf32>
    %c1_26 = arith.constant 1 : index
    %c0_27 = arith.constant 0 : index
    %113 = vector.load %arg8[%c1_26, %c0_27] : memref<8x128xf32, #tpu.memory_space<vmem>>, vector<1x128xf32>
    tpu.vector_store %arg8[%c1_26, %c0_27], %112 {strides = array<i32>} : memref<8x128xf32, #tpu.memory_space<vmem>>, vector<1x128xf32>,
    %114 = vector.broadcast %8 : f32 to vector<1x128xf32>
    %115 = arith.mulf %114, %105 : vector<1x128xf32>
    %116 = vector.broadcast %6 : f32 to vector<1x128xf32>
    %117 = arith.addf %116, %115 : vector<1x128xf32>
    %118 = math.log %117 : vector<1x128xf32>
    %c1_28 = arith.constant 1 : index
    %c0_29 = arith.constant 0 : index
    %119 = vector.load %arg9[%c1_28, %c0_29] : memref<8x128xf32, #tpu.memory_space<vmem>>, vector<1x128xf32>
    tpu.vector_store %arg9[%c1_28, %c0_29], %118 {strides = array<i32>} : memref<8x128xf32, #tpu.memory_space<vmem>>, vector<1x128xf32>,
    %c2_30 = arith.constant 2 : index
    %c0_31 = arith.constant 0 : index
    %120 = vector.load %arg1[%c2_30, %c0_31] : memref<8x128xf32, #tpu.memory_space<vmem>>, vector<1x128xf32>
    %c2_32 = arith.constant 2 : index
    %c0_33 = arith.constant 0 : index
    %121 = vector.load %arg2[%c2_32, %c0_33] : memref<8x128xf32, #tpu.memory_space<vmem>>, vector<1x128xf32>
    %122 = vector.broadcast %120 : vector<1x128xf32> to vector<384x128xf32>
    %123 = arith.mulf %13, %122 : vector<384x128xf32>
    %124 = arith.addf %123, %16 : vector<384x128xf32>
    %cst_34 = arith.constant 0.000000e+00 : f32
    %125 = vector.broadcast %cst_34 : f32 to vector<384x128xf32>
    %126 = arith.cmpf oge, %124, %125 : vector<384x128xf32>
    %cst_35 = arith.constant 0.00999999977 : f32
    %127 = vector.broadcast %cst_35 : f32 to vector<384x128xf32>
    %128 = arith.mulf %127, %124 : vector<384x128xf32>
    %129 = arith.select %126, %124, %128 : vector<384x128xi1>, vector<384x128xf32>
    %cst_36 = arith.constant dense<0.000000e+00> : vector<8x128xf32>
    %130 = tpu.matmul %17, %129, %cst_36 {dimension_numbers = #tpu.dot_dimension_numbers<[1], [0], [0], [1], [0, 0, 1, 1], [], []>} : vector<8x384xf32>, vector<384x128xf32>, vector<8x128xf32> -> vector<8x128xf32>
    %131 = vector.extract_strided_slice %130 {offsets = [0, 0], sizes = [1, 128], strides = [1, 1]} : vector<8x128xf32> to vector<1x128xf32>
    %132 = vector.broadcast %9 : f32 to vector<1x128xf32>
    %133 = arith.addf %131, %132 : vector<1x128xf32>
    %134 = vector.extract_strided_slice %130 {offsets = [1, 0], sizes = [1, 128], strides = [1, 1]} : vector<8x128xf32> to vector<1x128xf32>
    %135 = vector.broadcast %10 : f32 to vector<1x128xf32>
    %136 = arith.addf %134, %135 : vector<1x128xf32>
    %137 = vector.broadcast %1 : f32 to vector<1x128xf32>
    %138 = arith.mulf %137, %133 : vector<1x128xf32>
    %139 = vector.broadcast %0 : f32 to vector<1x128xf32>
    %140 = arith.addf %139, %138 : vector<1x128xf32>
    %141 = vector.broadcast %2 : f32 to vector<1x128xf32>
    %142 = arith.mulf %141, %136 : vector<1x128xf32>
    %143 = arith.addf %140, %142 : vector<1x128xf32>
    %144 = arith.mulf %133, %136 : vector<1x128xf32>
    %145 = vector.broadcast %3 : f32 to vector<1x128xf32>
    %146 = arith.mulf %145, %144 : vector<1x128xf32>
    %147 = arith.addf %143, %146 : vector<1x128xf32>
    %148 = arith.mulf %133, %133 : vector<1x128xf32>
    %149 = vector.broadcast %4 : f32 to vector<1x128xf32>
    %150 = arith.mulf %149, %148 : vector<1x128xf32>
    %151 = arith.addf %147, %150 : vector<1x128xf32>
    %152 = arith.mulf %136, %136 : vector<1x128xf32>
    %153 = vector.broadcast %5 : f32 to vector<1x128xf32>
    %154 = arith.mulf %153, %152 : vector<1x128xf32>
    %155 = arith.addf %151, %154 : vector<1x128xf32>
    %156 = arith.mulf %121, %121 : vector<1x128xf32>
    %157 = vector.broadcast %6 : f32 to vector<1x128xf32>
    %158 = arith.mulf %157, %121 : vector<1x128xf32>
    %159 = arith.addf %155, %158 : vector<1x128xf32>
    %160 = arith.mulf %156, %121 : vector<1x128xf32>
    %161 = vector.broadcast %7 : f32 to vector<1x128xf32>
    %162 = arith.mulf %161, %160 : vector<1x128xf32>
    %163 = arith.addf %159, %162 : vector<1x128xf32>
    %c2_37 = arith.constant 2 : index
    %c0_38 = arith.constant 0 : index
    %164 = vector.load %arg8[%c2_37, %c0_38] : memref<8x128xf32, #tpu.memory_space<vmem>>, vector<1x128xf32>
    tpu.vector_store %arg8[%c2_37, %c0_38], %163 {strides = array<i32>} : memref<8x128xf32, #tpu.memory_space<vmem>>, vector<1x128xf32>,
    %165 = vector.broadcast %8 : f32 to vector<1x128xf32>
    %166 = arith.mulf %165, %156 : vector<1x128xf32>
    %167 = vector.broadcast %6 : f32 to vector<1x128xf32>
    %168 = arith.addf %167, %166 : vector<1x128xf32>
    %169 = math.log %168 : vector<1x128xf32>
    %c2_39 = arith.constant 2 : index
    %c0_40 = arith.constant 0 : index
    %170 = vector.load %arg9[%c2_39, %c0_40] : memref<8x128xf32, #tpu.memory_space<vmem>>, vector<1x128xf32>
    tpu.vector_store %arg9[%c2_39, %c0_40], %169 {strides = array<i32>} : memref<8x128xf32, #tpu.memory_space<vmem>>, vector<1x128xf32>,
    %c3_41 = arith.constant 3 : index
    %c0_42 = arith.constant 0 : index
    %171 = vector.load %arg1[%c3_41, %c0_42] : memref<8x128xf32, #tpu.memory_space<vmem>>, vector<1x128xf32>
    %c3_43 = arith.constant 3 : index
    %c0_44 = arith.constant 0 : index
    %172 = vector.load %arg2[%c3_43, %c0_44] : memref<8x128xf32, #tpu.memory_space<vmem>>, vector<1x128xf32>
    %173 = vector.broadcast %171 : vector<1x128xf32> to vector<384x128xf32>
    %174 = arith.mulf %13, %173 : vector<384x128xf32>
    %175 = arith.addf %174, %16 : vector<384x128xf32>
    %cst_45 = arith.constant 0.000000e+00 : f32
    %176 = vector.broadcast %cst_45 : f32 to vector<384x128xf32>
    %177 = arith.cmpf oge, %175, %176 : vector<384x128xf32>
    %cst_46 = arith.constant 0.00999999977 : f32
    %178 = vector.broadcast %cst_46 : f32 to vector<384x128xf32>
    %179 = arith.mulf %178, %175 : vector<384x128xf32>
    %180 = arith.select %177, %175, %179 : vector<384x128xi1>, vector<384x128xf32>
    %cst_47 = arith.constant dense<0.000000e+00> : vector<8x128xf32>
    %181 = tpu.matmul %17, %180, %cst_47 {dimension_numbers = #tpu.dot_dimension_numbers<[1], [0], [0], [1], [0, 0, 1, 1], [], []>} : vector<8x384xf32>, vector<384x128xf32>, vector<8x128xf32> -> vector<8x128xf32>
    %182 = vector.extract_strided_slice %181 {offsets = [0, 0], sizes = [1, 128], strides = [1, 1]} : vector<8x128xf32> to vector<1x128xf32>
    %183 = vector.broadcast %9 : f32 to vector<1x128xf32>
    %184 = arith.addf %182, %183 : vector<1x128xf32>
    %185 = vector.extract_strided_slice %181 {offsets = [1, 0], sizes = [1, 128], strides = [1, 1]} : vector<8x128xf32> to vector<1x128xf32>
    %186 = vector.broadcast %10 : f32 to vector<1x128xf32>
    %187 = arith.addf %185, %186 : vector<1x128xf32>
    %188 = vector.broadcast %1 : f32 to vector<1x128xf32>
    %189 = arith.mulf %188, %184 : vector<1x128xf32>
    %190 = vector.broadcast %0 : f32 to vector<1x128xf32>
    %191 = arith.addf %190, %189 : vector<1x128xf32>
    %192 = vector.broadcast %2 : f32 to vector<1x128xf32>
    %193 = arith.mulf %192, %187 : vector<1x128xf32>
    %194 = arith.addf %191, %193 : vector<1x128xf32>
    %195 = arith.mulf %184, %187 : vector<1x128xf32>
    %196 = vector.broadcast %3 : f32 to vector<1x128xf32>
    %197 = arith.mulf %196, %195 : vector<1x128xf32>
    %198 = arith.addf %194, %197 : vector<1x128xf32>
    %199 = arith.mulf %184, %184 : vector<1x128xf32>
    %200 = vector.broadcast %4 : f32 to vector<1x128xf32>
    %201 = arith.mulf %200, %199 : vector<1x128xf32>
    %202 = arith.addf %198, %201 : vector<1x128xf32>
    %203 = arith.mulf %187, %187 : vector<1x128xf32>
    %204 = vector.broadcast %5 : f32 to vector<1x128xf32>
    %205 = arith.mulf %204, %203 : vector<1x128xf32>
    %206 = arith.addf %202, %205 : vector<1x128xf32>
    %207 = arith.mulf %172, %172 : vector<1x128xf32>
    %208 = vector.broadcast %6 : f32 to vector<1x128xf32>
    %209 = arith.mulf %208, %172 : vector<1x128xf32>
    %210 = arith.addf %206, %209 : vector<1x128xf32>
    %211 = arith.mulf %207, %172 : vector<1x128xf32>
    %212 = vector.broadcast %7 : f32 to vector<1x128xf32>
    %213 = arith.mulf %212, %211 : vector<1x128xf32>
    %214 = arith.addf %210, %213 : vector<1x128xf32>
    %c3_48 = arith.constant 3 : index
    %c0_49 = arith.constant 0 : index
    %215 = vector.load %arg8[%c3_48, %c0_49] : memref<8x128xf32, #tpu.memory_space<vmem>>, vector<1x128xf32>
    tpu.vector_store %arg8[%c3_48, %c0_49], %214 {strides = array<i32>} : memref<8x128xf32, #tpu.memory_space<vmem>>, vector<1x128xf32>,
    %216 = vector.broadcast %8 : f32 to vector<1x128xf32>
    %217 = arith.mulf %216, %207 : vector<1x128xf32>
    %218 = vector.broadcast %6 : f32 to vector<1x128xf32>
    %219 = arith.addf %218, %217 : vector<1x128xf32>
    %220 = math.log %219 : vector<1x128xf32>
    %c3_50 = arith.constant 3 : index
    %c0_51 = arith.constant 0 : index
    %221 = vector.load %arg9[%c3_50, %c0_51] : memref<8x128xf32, #tpu.memory_space<vmem>>, vector<1x128xf32>
    tpu.vector_store %arg9[%c3_50, %c0_51], %220 {strides = array<i32>} : memref<8x128xf32, #tpu.memory_space<vmem>>, vector<1x128xf32>,
    %c4_52 = arith.constant 4 : index
    %c0_53 = arith.constant 0 : index
    %222 = vector.load %arg1[%c4_52, %c0_53] : memref<8x128xf32, #tpu.memory_space<vmem>>, vector<1x128xf32>
    %c4_54 = arith.constant 4 : index
    %c0_55 = arith.constant 0 : index
    %223 = vector.load %arg2[%c4_54, %c0_55] : memref<8x128xf32, #tpu.memory_space<vmem>>, vector<1x128xf32>
    %224 = vector.broadcast %222 : vector<1x128xf32> to vector<384x128xf32>
    %225 = arith.mulf %13, %224 : vector<384x128xf32>
    %226 = arith.addf %225, %16 : vector<384x128xf32>
    %cst_56 = arith.constant 0.000000e+00 : f32
    %227 = vector.broadcast %cst_56 : f32 to vector<384x128xf32>
    %228 = arith.cmpf oge, %226, %227 : vector<384x128xf32>
    %cst_57 = arith.constant 0.00999999977 : f32
    %229 = vector.broadcast %cst_57 : f32 to vector<384x128xf32>
    %230 = arith.mulf %229, %226 : vector<384x128xf32>
    %231 = arith.select %228, %226, %230 : vector<384x128xi1>, vector<384x128xf32>
    %cst_58 = arith.constant dense<0.000000e+00> : vector<8x128xf32>
    %232 = tpu.matmul %17, %231, %cst_58 {dimension_numbers = #tpu.dot_dimension_numbers<[1], [0], [0], [1], [0, 0, 1, 1], [], []>} : vector<8x384xf32>, vector<384x128xf32>, vector<8x128xf32> -> vector<8x128xf32>
    %233 = vector.extract_strided_slice %232 {offsets = [0, 0], sizes = [1, 128], strides = [1, 1]} : vector<8x128xf32> to vector<1x128xf32>
    %234 = vector.broadcast %9 : f32 to vector<1x128xf32>
    %235 = arith.addf %233, %234 : vector<1x128xf32>
    %236 = vector.extract_strided_slice %232 {offsets = [1, 0], sizes = [1, 128], strides = [1, 1]} : vector<8x128xf32> to vector<1x128xf32>
    %237 = vector.broadcast %10 : f32 to vector<1x128xf32>
    %238 = arith.addf %236, %237 : vector<1x128xf32>
    %239 = vector.broadcast %1 : f32 to vector<1x128xf32>
    %240 = arith.mulf %239, %235 : vector<1x128xf32>
    %241 = vector.broadcast %0 : f32 to vector<1x128xf32>
    %242 = arith.addf %241, %240 : vector<1x128xf32>
    %243 = vector.broadcast %2 : f32 to vector<1x128xf32>
    %244 = arith.mulf %243, %238 : vector<1x128xf32>
    %245 = arith.addf %242, %244 : vector<1x128xf32>
    %246 = arith.mulf %235, %238 : vector<1x128xf32>
    %247 = vector.broadcast %3 : f32 to vector<1x128xf32>
    %248 = arith.mulf %247, %246 : vector<1x128xf32>
    %249 = arith.addf %245, %248 : vector<1x128xf32>
    %250 = arith.mulf %235, %235 : vector<1x128xf32>
    %251 = vector.broadcast %4 : f32 to vector<1x128xf32>
    %252 = arith.mulf %251, %250 : vector<1x128xf32>
    %253 = arith.addf %249, %252 : vector<1x128xf32>
    %254 = arith.mulf %238, %238 : vector<1x128xf32>
    %255 = vector.broadcast %5 : f32 to vector<1x128xf32>
    %256 = arith.mulf %255, %254 : vector<1x128xf32>
    %257 = arith.addf %253, %256 : vector<1x128xf32>
    %258 = arith.mulf %223, %223 : vector<1x128xf32>
    %259 = vector.broadcast %6 : f32 to vector<1x128xf32>
    %260 = arith.mulf %259, %223 : vector<1x128xf32>
    %261 = arith.addf %257, %260 : vector<1x128xf32>
    %262 = arith.mulf %258, %223 : vector<1x128xf32>
    %263 = vector.broadcast %7 : f32 to vector<1x128xf32>
    %264 = arith.mulf %263, %262 : vector<1x128xf32>
    %265 = arith.addf %261, %264 : vector<1x128xf32>
    %c4_59 = arith.constant 4 : index
    %c0_60 = arith.constant 0 : index
    %266 = vector.load %arg8[%c4_59, %c0_60] : memref<8x128xf32, #tpu.memory_space<vmem>>, vector<1x128xf32>
    tpu.vector_store %arg8[%c4_59, %c0_60], %265 {strides = array<i32>} : memref<8x128xf32, #tpu.memory_space<vmem>>, vector<1x128xf32>,
    %267 = vector.broadcast %8 : f32 to vector<1x128xf32>
    %268 = arith.mulf %267, %258 : vector<1x128xf32>
    %269 = vector.broadcast %6 : f32 to vector<1x128xf32>
    %270 = arith.addf %269, %268 : vector<1x128xf32>
    %271 = math.log %270 : vector<1x128xf32>
    %c4_61 = arith.constant 4 : index
    %c0_62 = arith.constant 0 : index
    %272 = vector.load %arg9[%c4_61, %c0_62] : memref<8x128xf32, #tpu.memory_space<vmem>>, vector<1x128xf32>
    tpu.vector_store %arg9[%c4_61, %c0_62], %271 {strides = array<i32>} : memref<8x128xf32, #tpu.memory_space<vmem>>, vector<1x128xf32>,
    %c5_63 = arith.constant 5 : index
    %c0_64 = arith.constant 0 : index
    %273 = vector.load %arg1[%c5_63, %c0_64] : memref<8x128xf32, #tpu.memory_space<vmem>>, vector<1x128xf32>
    %c5_65 = arith.constant 5 : index
    %c0_66 = arith.constant 0 : index
    %274 = vector.load %arg2[%c5_65, %c0_66] : memref<8x128xf32, #tpu.memory_space<vmem>>, vector<1x128xf32>
    %275 = vector.broadcast %273 : vector<1x128xf32> to vector<384x128xf32>
    %276 = arith.mulf %13, %275 : vector<384x128xf32>
    %277 = arith.addf %276, %16 : vector<384x128xf32>
    %cst_67 = arith.constant 0.000000e+00 : f32
    %278 = vector.broadcast %cst_67 : f32 to vector<384x128xf32>
    %279 = arith.cmpf oge, %277, %278 : vector<384x128xf32>
    %cst_68 = arith.constant 0.00999999977 : f32
    %280 = vector.broadcast %cst_68 : f32 to vector<384x128xf32>
    %281 = arith.mulf %280, %277 : vector<384x128xf32>
    %282 = arith.select %279, %277, %281 : vector<384x128xi1>, vector<384x128xf32>
    %cst_69 = arith.constant dense<0.000000e+00> : vector<8x128xf32>
    %283 = tpu.matmul %17, %282, %cst_69 {dimension_numbers = #tpu.dot_dimension_numbers<[1], [0], [0], [1], [0, 0, 1, 1], [], []>} : vector<8x384xf32>, vector<384x128xf32>, vector<8x128xf32> -> vector<8x128xf32>
    %284 = vector.extract_strided_slice %283 {offsets = [0, 0], sizes = [1, 128], strides = [1, 1]} : vector<8x128xf32> to vector<1x128xf32>
    %285 = vector.broadcast %9 : f32 to vector<1x128xf32>
    %286 = arith.addf %284, %285 : vector<1x128xf32>
    %287 = vector.extract_strided_slice %283 {offsets = [1, 0], sizes = [1, 128], strides = [1, 1]} : vector<8x128xf32> to vector<1x128xf32>
    %288 = vector.broadcast %10 : f32 to vector<1x128xf32>
    %289 = arith.addf %287, %288 : vector<1x128xf32>
    %290 = vector.broadcast %1 : f32 to vector<1x128xf32>
    %291 = arith.mulf %290, %286 : vector<1x128xf32>
    %292 = vector.broadcast %0 : f32 to vector<1x128xf32>
    %293 = arith.addf %292, %291 : vector<1x128xf32>
    %294 = vector.broadcast %2 : f32 to vector<1x128xf32>
    %295 = arith.mulf %294, %289 : vector<1x128xf32>
    %296 = arith.addf %293, %295 : vector<1x128xf32>
    %297 = arith.mulf %286, %289 : vector<1x128xf32>
    %298 = vector.broadcast %3 : f32 to vector<1x128xf32>
    %299 = arith.mulf %298, %297 : vector<1x128xf32>
    %300 = arith.addf %296, %299 : vector<1x128xf32>
    %301 = arith.mulf %286, %286 : vector<1x128xf32>
    %302 = vector.broadcast %4 : f32 to vector<1x128xf32>
    %303 = arith.mulf %302, %301 : vector<1x128xf32>
    %304 = arith.addf %300, %303 : vector<1x128xf32>
    %305 = arith.mulf %289, %289 : vector<1x128xf32>
    %306 = vector.broadcast %5 : f32 to vector<1x128xf32>
    %307 = arith.mulf %306, %305 : vector<1x128xf32>
    %308 = arith.addf %304, %307 : vector<1x128xf32>
    %309 = arith.mulf %274, %274 : vector<1x128xf32>
    %310 = vector.broadcast %6 : f32 to vector<1x128xf32>
    %311 = arith.mulf %310, %274 : vector<1x128xf32>
    %312 = arith.addf %308, %311 : vector<1x128xf32>
    %313 = arith.mulf %309, %274 : vector<1x128xf32>
    %314 = vector.broadcast %7 : f32 to vector<1x128xf32>
    %315 = arith.mulf %314, %313 : vector<1x128xf32>
    %316 = arith.addf %312, %315 : vector<1x128xf32>
    %c5_70 = arith.constant 5 : index
    %c0_71 = arith.constant 0 : index
    %317 = vector.load %arg8[%c5_70, %c0_71] : memref<8x128xf32, #tpu.memory_space<vmem>>, vector<1x128xf32>
    tpu.vector_store %arg8[%c5_70, %c0_71], %316 {strides = array<i32>} : memref<8x128xf32, #tpu.memory_space<vmem>>, vector<1x128xf32>,
    %318 = vector.broadcast %8 : f32 to vector<1x128xf32>
    %319 = arith.mulf %318, %309 : vector<1x128xf32>
    %320 = vector.broadcast %6 : f32 to vector<1x128xf32>
    %321 = arith.addf %320, %319 : vector<1x128xf32>
    %322 = math.log %321 : vector<1x128xf32>
    %c5_72 = arith.constant 5 : index
    %c0_73 = arith.constant 0 : index
    %323 = vector.load %arg9[%c5_72, %c0_73] : memref<8x128xf32, #tpu.memory_space<vmem>>, vector<1x128xf32>
    tpu.vector_store %arg9[%c5_72, %c0_73], %322 {strides = array<i32>} : memref<8x128xf32, #tpu.memory_space<vmem>>, vector<1x128xf32>,
    %c6_74 = arith.constant 6 : index
    %c0_75 = arith.constant 0 : index
    %324 = vector.load %arg1[%c6_74, %c0_75] : memref<8x128xf32, #tpu.memory_space<vmem>>, vector<1x128xf32>
    %c6_76 = arith.constant 6 : index
    %c0_77 = arith.constant 0 : index
    %325 = vector.load %arg2[%c6_76, %c0_77] : memref<8x128xf32, #tpu.memory_space<vmem>>, vector<1x128xf32>
    %326 = vector.broadcast %324 : vector<1x128xf32> to vector<384x128xf32>
    %327 = arith.mulf %13, %326 : vector<384x128xf32>
    %328 = arith.addf %327, %16 : vector<384x128xf32>
    %cst_78 = arith.constant 0.000000e+00 : f32
    %329 = vector.broadcast %cst_78 : f32 to vector<384x128xf32>
    %330 = arith.cmpf oge, %328, %329 : vector<384x128xf32>
    %cst_79 = arith.constant 0.00999999977 : f32
    %331 = vector.broadcast %cst_79 : f32 to vector<384x128xf32>
    %332 = arith.mulf %331, %328 : vector<384x128xf32>
    %333 = arith.select %330, %328, %332 : vector<384x128xi1>, vector<384x128xf32>
    %cst_80 = arith.constant dense<0.000000e+00> : vector<8x128xf32>
    %334 = tpu.matmul %17, %333, %cst_80 {dimension_numbers = #tpu.dot_dimension_numbers<[1], [0], [0], [1], [0, 0, 1, 1], [], []>} : vector<8x384xf32>, vector<384x128xf32>, vector<8x128xf32> -> vector<8x128xf32>
    %335 = vector.extract_strided_slice %334 {offsets = [0, 0], sizes = [1, 128], strides = [1, 1]} : vector<8x128xf32> to vector<1x128xf32>
    %336 = vector.broadcast %9 : f32 to vector<1x128xf32>
    %337 = arith.addf %335, %336 : vector<1x128xf32>
    %338 = vector.extract_strided_slice %334 {offsets = [1, 0], sizes = [1, 128], strides = [1, 1]} : vector<8x128xf32> to vector<1x128xf32>
    %339 = vector.broadcast %10 : f32 to vector<1x128xf32>
    %340 = arith.addf %338, %339 : vector<1x128xf32>
    %341 = vector.broadcast %1 : f32 to vector<1x128xf32>
    %342 = arith.mulf %341, %337 : vector<1x128xf32>
    %343 = vector.broadcast %0 : f32 to vector<1x128xf32>
    %344 = arith.addf %343, %342 : vector<1x128xf32>
    %345 = vector.broadcast %2 : f32 to vector<1x128xf32>
    %346 = arith.mulf %345, %340 : vector<1x128xf32>
    %347 = arith.addf %344, %346 : vector<1x128xf32>
    %348 = arith.mulf %337, %340 : vector<1x128xf32>
    %349 = vector.broadcast %3 : f32 to vector<1x128xf32>
    %350 = arith.mulf %349, %348 : vector<1x128xf32>
    %351 = arith.addf %347, %350 : vector<1x128xf32>
    %352 = arith.mulf %337, %337 : vector<1x128xf32>
    %353 = vector.broadcast %4 : f32 to vector<1x128xf32>
    %354 = arith.mulf %353, %352 : vector<1x128xf32>
    %355 = arith.addf %351, %354 : vector<1x128xf32>
    %356 = arith.mulf %340, %340 : vector<1x128xf32>
    %357 = vector.broadcast %5 : f32 to vector<1x128xf32>
    %358 = arith.mulf %357, %356 : vector<1x128xf32>
    %359 = arith.addf %355, %358 : vector<1x128xf32>
    %360 = arith.mulf %325, %325 : vector<1x128xf32>
    %361 = vector.broadcast %6 : f32 to vector<1x128xf32>
    %362 = arith.mulf %361, %325 : vector<1x128xf32>
    %363 = arith.addf %359, %362 : vector<1x128xf32>
    %364 = arith.mulf %360, %325 : vector<1x128xf32>
    %365 = vector.broadcast %7 : f32 to vector<1x128xf32>
    %366 = arith.mulf %365, %364 : vector<1x128xf32>
    %367 = arith.addf %363, %366 : vector<1x128xf32>
    %c6_81 = arith.constant 6 : index
    %c0_82 = arith.constant 0 : index
    %368 = vector.load %arg8[%c6_81, %c0_82] : memref<8x128xf32, #tpu.memory_space<vmem>>, vector<1x128xf32>
    tpu.vector_store %arg8[%c6_81, %c0_82], %367 {strides = array<i32>} : memref<8x128xf32, #tpu.memory_space<vmem>>, vector<1x128xf32>,
    %369 = vector.broadcast %8 : f32 to vector<1x128xf32>
    %370 = arith.mulf %369, %360 : vector<1x128xf32>
    %371 = vector.broadcast %6 : f32 to vector<1x128xf32>
    %372 = arith.addf %371, %370 : vector<1x128xf32>
    %373 = math.log %372 : vector<1x128xf32>
    %c6_83 = arith.constant 6 : index
    %c0_84 = arith.constant 0 : index
    %374 = vector.load %arg9[%c6_83, %c0_84] : memref<8x128xf32, #tpu.memory_space<vmem>>, vector<1x128xf32>
    tpu.vector_store %arg9[%c6_83, %c0_84], %373 {strides = array<i32>} : memref<8x128xf32, #tpu.memory_space<vmem>>, vector<1x128xf32>,
    %c7_85 = arith.constant 7 : index
    %c0_86 = arith.constant 0 : index
    %375 = vector.load %arg1[%c7_85, %c0_86] : memref<8x128xf32, #tpu.memory_space<vmem>>, vector<1x128xf32>
    %c7_87 = arith.constant 7 : index
    %c0_88 = arith.constant 0 : index
    %376 = vector.load %arg2[%c7_87, %c0_88] : memref<8x128xf32, #tpu.memory_space<vmem>>, vector<1x128xf32>
    %377 = vector.broadcast %375 : vector<1x128xf32> to vector<384x128xf32>
    %378 = arith.mulf %13, %377 : vector<384x128xf32>
    %379 = arith.addf %378, %16 : vector<384x128xf32>
    %cst_89 = arith.constant 0.000000e+00 : f32
    %380 = vector.broadcast %cst_89 : f32 to vector<384x128xf32>
    %381 = arith.cmpf oge, %379, %380 : vector<384x128xf32>
    %cst_90 = arith.constant 0.00999999977 : f32
    %382 = vector.broadcast %cst_90 : f32 to vector<384x128xf32>
    %383 = arith.mulf %382, %379 : vector<384x128xf32>
    %384 = arith.select %381, %379, %383 : vector<384x128xi1>, vector<384x128xf32>
    %cst_91 = arith.constant dense<0.000000e+00> : vector<8x128xf32>
    %385 = tpu.matmul %17, %384, %cst_91 {dimension_numbers = #tpu.dot_dimension_numbers<[1], [0], [0], [1], [0, 0, 1, 1], [], []>} : vector<8x384xf32>, vector<384x128xf32>, vector<8x128xf32> -> vector<8x128xf32>
    %386 = vector.extract_strided_slice %385 {offsets = [0, 0], sizes = [1, 128], strides = [1, 1]} : vector<8x128xf32> to vector<1x128xf32>
    %387 = vector.broadcast %9 : f32 to vector<1x128xf32>
    %388 = arith.addf %386, %387 : vector<1x128xf32>
    %389 = vector.extract_strided_slice %385 {offsets = [1, 0], sizes = [1, 128], strides = [1, 1]} : vector<8x128xf32> to vector<1x128xf32>
    %390 = vector.broadcast %10 : f32 to vector<1x128xf32>
    %391 = arith.addf %389, %390 : vector<1x128xf32>
    %392 = vector.broadcast %1 : f32 to vector<1x128xf32>
    %393 = arith.mulf %392, %388 : vector<1x128xf32>
    %394 = vector.broadcast %0 : f32 to vector<1x128xf32>
    %395 = arith.addf %394, %393 : vector<1x128xf32>
    %396 = vector.broadcast %2 : f32 to vector<1x128xf32>
    %397 = arith.mulf %396, %391 : vector<1x128xf32>
    %398 = arith.addf %395, %397 : vector<1x128xf32>
    %399 = arith.mulf %388, %391 : vector<1x128xf32>
    %400 = vector.broadcast %3 : f32 to vector<1x128xf32>
    %401 = arith.mulf %400, %399 : vector<1x128xf32>
    %402 = arith.addf %398, %401 : vector<1x128xf32>
    %403 = arith.mulf %388, %388 : vector<1x128xf32>
    %404 = vector.broadcast %4 : f32 to vector<1x128xf32>
    %405 = arith.mulf %404, %403 : vector<1x128xf32>
    %406 = arith.addf %402, %405 : vector<1x128xf32>
    %407 = arith.mulf %391, %391 : vector<1x128xf32>
    %408 = vector.broadcast %5 : f32 to vector<1x128xf32>
    %409 = arith.mulf %408, %407 : vector<1x128xf32>
    %410 = arith.addf %406, %409 : vector<1x128xf32>
    %411 = arith.mulf %376, %376 : vector<1x128xf32>
    %412 = vector.broadcast %6 : f32 to vector<1x128xf32>
    %413 = arith.mulf %412, %376 : vector<1x128xf32>
    %414 = arith.addf %410, %413 : vector<1x128xf32>
    %415 = arith.mulf %411, %376 : vector<1x128xf32>
    %416 = vector.broadcast %7 : f32 to vector<1x128xf32>
    %417 = arith.mulf %416, %415 : vector<1x128xf32>
    %418 = arith.addf %414, %417 : vector<1x128xf32>
    %c7_92 = arith.constant 7 : index
    %c0_93 = arith.constant 0 : index
    %419 = vector.load %arg8[%c7_92, %c0_93] : memref<8x128xf32, #tpu.memory_space<vmem>>, vector<1x128xf32>
    tpu.vector_store %arg8[%c7_92, %c0_93], %418 {strides = array<i32>} : memref<8x128xf32, #tpu.memory_space<vmem>>, vector<1x128xf32>,
    %420 = vector.broadcast %8 : f32 to vector<1x128xf32>
    %421 = arith.mulf %420, %411 : vector<1x128xf32>
    %422 = vector.broadcast %6 : f32 to vector<1x128xf32>
    %423 = arith.addf %422, %421 : vector<1x128xf32>
    %424 = math.log %423 : vector<1x128xf32>
    %c7_94 = arith.constant 7 : index
    %c0_95 = arith.constant 0 : index
    %425 = vector.load %arg9[%c7_94, %c0_95] : memref<8x128xf32, #tpu.memory_space<vmem>>, vector<1x128xf32>
    tpu.vector_store %arg9[%c7_94, %c0_95], %424 {strides = array<i32>} : memref<8x128xf32, #tpu.memory_space<vmem>>, vector<1x128xf32>,
    return
  }
  func.func @transform_0(%arg0: i32) -> (i32, i32) {
    %c0_i32 = arith.constant 0 : i32
    %c0_i32_0 = arith.constant 0 : i32
    return %arg0, %c0_i32 : i32, i32
  }
  func.func @transform_1(%arg0: i32) -> (i32, i32) {
    %c0_i32 = arith.constant 0 : i32
    %c0_i32_0 = arith.constant 0 : i32
    return %arg0, %c0_i32 : i32, i32
  }
  func.func @transform_2(%arg0: i32) -> (i32, i32) {
    %c0_i32 = arith.constant 0 : i32
    %c0_i32_0 = arith.constant 0 : i32
    %c0_i32_1 = arith.constant 0 : i32
    return %c0_i32, %c0_i32_0 : i32, i32
  }
  func.func @transform_3(%arg0: i32) -> (i32, i32) {
    %c0_i32 = arith.constant 0 : i32
    %c0_i32_0 = arith.constant 0 : i32
    %c0_i32_1 = arith.constant 0 : i32
    return %c0_i32, %c0_i32_0 : i32, i32
  }
  func.func @transform_4(%arg0: i32) -> (i32, i32) {
    %c0_i32 = arith.constant 0 : i32
    %c0_i32_0 = arith.constant 0 : i32
    %c0_i32_1 = arith.constant 0 : i32
    return %c0_i32, %c0_i32_0 : i32, i32
  }
  func.func @transform_5(%arg0: i32) -> i32 {
    %c0_i32 = arith.constant 0 : i32
    %c0_i32_0 = arith.constant 0 : i32
    return %c0_i32 : i32
  }
  func.func @transform_6(%arg0: i32) -> i32 {
    %c0_i32 = arith.constant 0 : i32
    %c0_i32_0 = arith.constant 0 : i32
    return %c0_i32 : i32
  }
  func.func @transform_7(%arg0: i32) -> (i32, i32) {
    %c0_i32 = arith.constant 0 : i32
    %c0_i32_0 = arith.constant 0 : i32
    return %arg0, %c0_i32 : i32, i32
  }
  func.func @transform_8(%arg0: i32) -> (i32, i32) {
    %c0_i32 = arith.constant 0 : i32
    %c0_i32_0 = arith.constant 0 : i32
    return %arg0, %c0_i32 : i32, i32
  }
}

</mosaic_0001>

<llo_original>
// kernel: tpu_custom_call.1
$region0: #{tpu_custom_call.1}
  #allocation0 [shape = 'u32[]', space=smem, size = 0x4, offset = 0x4, fixed_abs, tag = 'smem constant byte address 0x4 - core index']
  #allocation1 [shape = 'u32[144,128]{1,0:T(1,128)}', space=vmem, size = 0x12000, scoped, tag = 'internal scratch']
  %s0 = inlined_call_operand.vmem [shape: f32[16,128], index: 0, kind: input, shape index: {}]
  %s1 = inlined_call_operand.vmem [shape: f32[16,128], index: 1, kind: input, shape index: {}]
  %s2 = inlined_call_operand.vmem [shape: f32[384,1], index: 2, kind: input, shape index: {}]
  %s3 = inlined_call_operand.vmem [shape: f32[384,1], index: 3, kind: input, shape index: {}]
  %s4 = inlined_call_operand.vmem [shape: f32[8,384], index: 4, kind: input, shape index: {}]
  %s5 = inlined_call_operand.vmem [shape: f32[2], index: 5, kind: input, shape index: {}]
  %s6 = inlined_call_operand.vmem [shape: f32[8], index: 6, kind: input, shape index: {}]
  %s7 = inlined_call_operand.hbm [shape: f32[16,128], index: 7, kind: output, shape index: {0}]
  %s8 = inlined_call_operand.hbm [shape: f32[16,128], index: 8, kind: output, shape index: {1}]
  %9 = xla_tuple %s7, %s8
  %s10 = sld [smem:[#allocation0]]
  $region77: #{tpu_custom_call.1} parent=0
    _
  %s12 = ssub.s32 1, %s10
  %s13 = scalar_select 0, %s12, %s10
  $region1: #{tpu_custom_call.1} parent=0
    #allocation2 [shape = 'u8[512]{0}', space=smem, size = 0x200, scoped, tag = 'input window, operand 5, single buffered']
    #allocation3 [shape = 's32[2]{0}', space=sflag, size = 0x8, scoped, tag = 'scoped memory for tpu_custom_call.1']
    #allocation4 [shape = 's32[2]{0}', space=sflag, size = 0x8, scoped, tag = 'scoped memory for tpu_custom_call.1']
    #allocation5 [shape = 'u8[512]{0}', space=smem, size = 0x200, scoped, tag = 'input window, operand 6, single buffered']
    #allocation6 [shape = 's32[1]{0}', space=sflag, size = 0x4, scoped, tag = 'scoped memory for tpu_custom_call.1']
    #allocation7 [shape = 'u8[8192]{0}', space=vmem, size = 0x2000, scoped, tag = 'output window, operand 0']
    #allocation8 [shape = 'u8[8192]{0}', space=vmem, size = 0x2000, scoped, tag = 'output window, operand 1']
    #allocation9 [shape = 's32[2]{0}', space=sflag, size = 0x8, scoped, tag = 'scoped memory for tpu_custom_call.1']
    %14 = vsyncpa [#allocation4], 0
    %15 = vsyncpa [#allocation6], 0
    %16 = vsyncpa [#allocation3], 0
    %s17 = scalar_lea.sflag [#allocation3], 1
    %18 = vsyncpa %s17, 0
    %19 = vsyncpa [#allocation9], 0
    %s20 = scalar_lea.sflag [#allocation9], 1
    %21 = vsyncpa %s20, 0
    loop: start=0, step=1, limit=4
    $region2: #{tpu_custom_call.1} parent=1 // loop_pre_header
      _
    $region3: #{tpu_custom_call.1} parent=1 // loop_header
      %s23 = sphi 0, %s27
      %p24 = scmp.ge.s32.totalorder %s23, 4
      %s33 = sphi 0, %s35
      %s36 = sphi 0, %s33
      %s37 = sphi 0, %s36
      %s53 = sphi 0, %s37
      %s59 = sphi 0, %s61
      %s62 = sphi 0, %s59
      %s63 = sphi 0, %s62
      %s79 = sphi 0, %s63
      %s83 = sphi 0, %s83
      %s85 = sphi 0, %s83
      %s86 = sphi 0, %s85
      %s100 = sphi 0, %s86
      %s104 = sphi 0, %s104
      %s106 = sphi 0, %s104
      %s107 = sphi 0, %s106
      %s121 = sphi 0, %s107
      %s125 = sphi 0, %s125
      %s127 = sphi 0, %s125
      %s128 = sphi 0, %s127
      %s142 = sphi 0, %s128
      %s146 = sphi 0, %s146
      %s148 = sphi 0, %s146
      %s149 = sphi 0, %s148
      %s163 = sphi 0, %s149
      %s167 = sphi 0, %s167
      %s169 = sphi 0, %s167
      %s170 = sphi 0, %s169
      %s184 = sphi 0, %s170
      %s190 = sphi 0, %s192
      %s193 = sphi 0, %s190
      %s194 = sphi 0, %s193
      %s210 = sphi 0, %s194
      %s216 = sphi 0, %s218
      %s219 = sphi 0, %s216
      %s220 = sphi 0, %s219
      %s236 = sphi 0, %s220
    $region4: #{tpu_custom_call.1} parent=1 // loop_header_branch
      %26 = sbr.rel (%p24) target = $region8
    $region5: #{tpu_custom_call.1} parent=1 // loop_body
      %s28 = ssub.s32 %s23, 1
      %s29 = ssub.s32 %s23, 2
      %s30 = sadd.s32 %s23, 1
      %s31 = ssub.s32 %s23, %s30
      %p32 = scmp.eq.s32.totalorder %s31, 0
      %s34 = sadd.s32 %s33, 1
      %s35 = scalar_select %p32, %s33, %s34
      %p38 = pneg %p32
      %p39 = scmp.eq.s32.totalorder %s23, 1
      %p40 = por %p38, %p39
      %p41 = scmp.ne.s32.totalorder %s33, %s36
      %p42 = scmp.eq.s32.totalorder %s23, 0
      %p43 = por %p41, %p42
      %p44 = scmp.ne.s32.totalorder %s33, %s36
      %p45 = scmp.eq.s32.totalorder %s28, 1
      %p46 = por %p44, %p45
      %p47 = scmp.ne.s32.totalorder %s36, %s37
      %p48 = scmp.eq.s32.totalorder %s28, 0
      %p49 = por %p47, %p48
      %p50 = scmp.ne.s32.totalorder %s36, %s37
      %p51 = scmp.eq.s32.totalorder %s29, 1
      %p52 = por %p50, %p51
      %p54 = scmp.ne.s32.totalorder %s37, %s53
      %p55 = scmp.eq.s32.totalorder %s29, 0
      %p56 = por %p54, %p55
      %s57 = ssub.s32 %s23, %s30
      %p58 = scmp.eq.s32.totalorder %s57, 0
      %s60 = sadd.s32 %s59, 1
      %s61 = scalar_select %p58, %s59, %s60
      %p64 = pneg %p58
      %p65 = scmp.eq.s32.totalorder %s23, 1
      %p66 = por %p64, %p65
      %p67 = scmp.ne.s32.totalorder %s59, %s62
      %p68 = scmp.eq.s32.totalorder %s23, 0
      %p69 = por %p67, %p68
      %p70 = scmp.ne.s32.totalorder %s59, %s62
      %p71 = scmp.eq.s32.totalorder %s28, 1
      %p72 = por %p70, %p71
      %p73 = scmp.ne.s32.totalorder %s62, %s63
      %p74 = scmp.eq.s32.totalorder %s28, 0
      %p75 = por %p73, %p74
      %p76 = scmp.ne.s32.totalorder %s62, %s63
      %p77 = scmp.eq.s32.totalorder %s29, 1
      %p78 = por %p76, %p77
      %p80 = scmp.ne.s32.totalorder %s63, %s79
      %p81 = scmp.eq.s32.totalorder %s29, 0
      %p82 = por %p80, %p81
      %s84 = sadd.s32 %s83, 1
      %p87 = scmp.eq.s32.totalorder %s23, 1
      %p88 = scmp.ne.s32.totalorder %s83, %s85
      %p89 = scmp.eq.s32.totalorder %s23, 0
      %p90 = por %p88, %p89
      %p91 = scmp.ne.s32.totalorder %s83, %s85
      %p92 = scmp.eq.s32.totalorder %s28, 1
      %p93 = por %p91, %p92
      %p94 = scmp.ne.s32.totalorder %s85, %s86
      %p95 = scmp.eq.s32.totalorder %s28, 0
      %p96 = por %p94, %p95
      %p97 = scmp.ne.s32.totalorder %s85, %s86
      %p98 = scmp.eq.s32.totalorder %s29, 1
      %p99 = por %p97, %p98
      %p101 = scmp.ne.s32.totalorder %s86, %s100
      %p102 = scmp.eq.s32.totalorder %s29, 0
      %p103 = por %p101, %p102
      %s105 = sadd.s32 %s104, 1
      %p108 = scmp.eq.s32.totalorder %s23, 1
      %p109 = scmp.ne.s32.totalorder %s104, %s106
      %p110 = scmp.eq.s32.totalorder %s23, 0
      %p111 = por %p109, %p110
      %p112 = scmp.ne.s32.totalorder %s104, %s106
      %p113 = scmp.eq.s32.totalorder %s28, 1
      %p114 = por %p112, %p113
      %p115 = scmp.ne.s32.totalorder %s106, %s107
      %p116 = scmp.eq.s32.totalorder %s28, 0
      %p117 = por %p115, %p116
      %p118 = scmp.ne.s32.totalorder %s106, %s107
      %p119 = scmp.eq.s32.totalorder %s29, 1
      %p120 = por %p118, %p119
      %p122 = scmp.ne.s32.totalorder %s107, %s121
      %p123 = scmp.eq.s32.totalorder %s29, 0
      %p124 = por %p122, %p123
      %s126 = sadd.s32 %s125, 1
      %p129 = scmp.eq.s32.totalorder %s23, 1
      %p130 = scmp.ne.s32.totalorder %s125, %s127
      %p131 = scmp.eq.s32.totalorder %s23, 0
      %p132 = por %p130, %p131
      %p133 = scmp.ne.s32.totalorder %s125, %s127
      %p134 = scmp.eq.s32.totalorder %s28, 1
      %p135 = por %p133, %p134
      %p136 = scmp.ne.s32.totalorder %s127, %s128
      %p137 = scmp.eq.s32.totalorder %s28, 0
      %p138 = por %p136, %p137
      %p139 = scmp.ne.s32.totalorder %s127, %s128
      %p140 = scmp.eq.s32.totalorder %s29, 1
      %p141 = por %p139, %p140
      %p143 = scmp.ne.s32.totalorder %s128, %s142
      %p144 = scmp.eq.s32.totalorder %s29, 0
      %p145 = por %p143, %p144
      %s147 = sadd.s32 %s146, 1
      %p150 = scmp.eq.s32.totalorder %s23, 1
      %p151 = scmp.ne.s32.totalorder %s146, %s148
      %p152 = scmp.eq.s32.totalorder %s23, 0
      %p153 = por %p151, %p152
      %p154 = scmp.ne.s32.totalorder %s146, %s148
      %p155 = scmp.eq.s32.totalorder %s28, 1
      %p156 = por %p154, %p155
      %p157 = scmp.ne.s32.totalorder %s148, %s149
      %p158 = scmp.eq.s32.totalorder %s28, 0
      %p159 = por %p157, %p158
      %p160 = scmp.ne.s32.totalorder %s148, %s149
      %p161 = scmp.eq.s32.totalorder %s29, 1
      %p162 = por %p160, %p161
      %p164 = scmp.ne.s32.totalorder %s149, %s163
      %p165 = scmp.eq.s32.totalorder %s29, 0
      %p166 = por %p164, %p165
      %s168 = sadd.s32 %s167, 1
      %p171 = scmp.eq.s32.totalorder %s23, 1
      %p172 = scmp.ne.s32.totalorder %s167, %s169
      %p173 = scmp.eq.s32.totalorder %s23, 0
      %p174 = por %p172, %p173
      %p175 = scmp.ne.s32.totalorder %s167, %s169
      %p176 = scmp.eq.s32.totalorder %s28, 1
      %p177 = por %p175, %p176
      %p178 = scmp.ne.s32.totalorder %s169, %s170
      %p179 = scmp.eq.s32.totalorder %s28, 0
      %p180 = por %p178, %p179
      %p181 = scmp.ne.s32.totalorder %s169, %s170
      %p182 = scmp.eq.s32.totalorder %s29, 1
      %p183 = por %p181, %p182
      %p185 = scmp.ne.s32.totalorder %s170, %s184
      %p186 = scmp.eq.s32.totalorder %s29, 0
      %p187 = por %p185, %p186
      %s188 = ssub.s32 %s23, %s30
      %p189 = scmp.eq.s32.totalorder %s188, 0
      %s191 = sadd.s32 %s190, 1
      %s192 = scalar_select %p189, %s190, %s191
      %p195 = pneg %p189
      %p196 = scmp.eq.s32.totalorder %s23, 1
      %p197 = por %p195, %p196
      %p198 = scmp.ne.s32.totalorder %s190, %s193
      %p199 = scmp.eq.s32.totalorder %s23, 0
      %p200 = por %p198, %p199
      %p201 = scmp.ne.s32.totalorder %s190, %s193
      %p202 = scmp.eq.s32.totalorder %s28, 1
      %p203 = por %p201, %p202
      %p204 = scmp.ne.s32.totalorder %s193, %s194
      %p205 = scmp.eq.s32.totalorder %s28, 0
      %p206 = por %p204, %p205
      %p207 = scmp.ne.s32.totalorder %s193, %s194
      %p208 = scmp.eq.s32.totalorder %s29, 1
      %p209 = por %p207, %p208
      %p211 = scmp.ne.s32.totalorder %s194, %s210
      %p212 = scmp.eq.s32.totalorder %s29, 0
      %p213 = por %p211, %p212
      %s214 = ssub.s32 %s23, %s30
      %p215 = scmp.eq.s32.totalorder %s214, 0
      %s217 = sadd.s32 %s216, 1
      %s218 = scalar_select %p215, %s216, %s217
      %p221 = pneg %p215
      %p222 = scmp.eq.s32.totalorder %s23, 1
      %p223 = por %p221, %p222
      %p224 = scmp.ne.s32.totalorder %s216, %s219
      %p225 = scmp.eq.s32.totalorder %s23, 0
      %p226 = por %p224, %p225
      %p227 = scmp.ne.s32.totalorder %s216, %s219
      %p228 = scmp.eq.s32.totalorder %s28, 1
      %p229 = por %p227, %p228
      %p230 = scmp.ne.s32.totalorder %s219, %s220
      %p231 = scmp.eq.s32.totalorder %s28, 0
      %p232 = por %p230, %p231
      %p233 = scmp.ne.s32.totalorder %s219, %s220
      %p234 = scmp.eq.s32.totalorder %s29, 1
      %p235 = por %p233, %p234
      %p237 = scmp.ne.s32.totalorder %s220, %s236
      %p238 = scmp.eq.s32.totalorder %s29, 0
      %p239 = por %p237, %p238
      %p240 = scmp.le.s32.totalorder 1, %s23
      %p241 = scmp.lt.s32.totalorder %s23, 3
      %p242 = pnand %p240, %p241
      %p243 = pneg %p242
      // Predicated region
      $region9: #{tpu_custom_call.1} parent=5 // pred_check
        _
      $region10: #{tpu_custom_call.1} parent=5 // pred_check_branch
        %245 = sbr.rel (%p242) target = $region12
      $region11: #{tpu_custom_call.1} parent=5 // pred_region
        %s246 = ssub.s32 %s23, 1
        // Predicated region
        $region13: #{tpu_custom_call.1} parent=11 // pred_check
          %p247 = pneg %p96
        $region14: #{tpu_custom_call.1} parent=11 // pred_check_branch
          %249 = sbr.rel (%p247) target = $region16
        $region15: #{tpu_custom_call.1} parent=11 // pred_region
          _
        $region16: #{tpu_custom_call.1} parent=11 // pred_fallthru
          _
        // Predicated region
        $region17: #{tpu_custom_call.1} parent=11 // pred_check
          %p250 = pneg %p117
        $region18: #{tpu_custom_call.1} parent=11 // pred_check_branch
          %252 = sbr.rel (%p250) target = $region20
        $region19: #{tpu_custom_call.1} parent=11 // pred_region
          _
        $region20: #{tpu_custom_call.1} parent=11 // pred_fallthru
          _
        // Predicated region
        $region21: #{tpu_custom_call.1} parent=11 // pred_check
          %p253 = pneg %p138
        $region22: #{tpu_custom_call.1} parent=11 // pred_check_branch
          %255 = sbr.rel (%p253) target = $region24
        $region23: #{tpu_custom_call.1} parent=11 // pred_region
          _
        $region24: #{tpu_custom_call.1} parent=11 // pred_fallthru
          _
        // Predicated region
        $region25: #{tpu_custom_call.1} parent=11 // pred_check
          %p256 = pneg %p159
        $region26: #{tpu_custom_call.1} parent=11 // pred_check_branch
          %258 = sbr.rel (%p256) target = $region28
        $region27: #{tpu_custom_call.1} parent=11 // pred_region
          %s260 = ssub.s32 16, 16
          %261 = vsyncadd [#allocation4], %s260
          %s263 = sshll.u32 %s5, 4
          %s264 = int_to_ptr.vmem [resolvable:$true] %s263
          %266 = dma.vmem_to_smem %s264, 16, [#allocation2], [#allocation4]
        $region28: #{tpu_custom_call.1} parent=11 // pred_fallthru
          _
        // Predicated region
        $region29: #{tpu_custom_call.1} parent=11 // pred_check
          %p267 = pneg %p180
        $region30: #{tpu_custom_call.1} parent=11 // pred_check_branch
          %269 = sbr.rel (%p267) target = $region32
        $region31: #{tpu_custom_call.1} parent=11 // pred_region
          %s271 = ssub.s32 16, 16
          %272 = vsyncadd [#allocation6], %s271
          %s274 = sshll.u32 %s6, 4
          %s275 = int_to_ptr.vmem [resolvable:$true] %s274
          %277 = dma.vmem_to_smem %s275, 16, [#allocation5], [#allocation6]
        $region32: #{tpu_custom_call.1} parent=11 // pred_fallthru
          _
      $region12: #{tpu_custom_call.1} parent=5 // pred_fallthru
        _
      %p278 = scmp.lt.s32.totalorder %s23, 2
      // Predicated region
      $region33: #{tpu_custom_call.1} parent=5 // pred_check
        %p279 = pneg %p278
      $region34: #{tpu_custom_call.1} parent=5 // pred_check_branch
        %281 = sbr.rel (%p279) target = $region36
      $region35: #{tpu_custom_call.1} parent=5 // pred_region
        // Predicated region
        $region37: #{tpu_custom_call.1} parent=35 // pred_check
          %p282 = pneg %p43
        $region38: #{tpu_custom_call.1} parent=35 // pred_check_branch
          %284 = sbr.rel (%p282) target = $region40
        $region39: #{tpu_custom_call.1} parent=35 // pred_region
          %p285 = scmp.lt.s32.totalorder %s23, 1
          %s286 = scalar_select %p285, %s23, 1
          %s287 = smul.addr %s286, 8
          %s288 = scalar_lea.vmem %s0, %s287
        $region40: #{tpu_custom_call.1} parent=35 // pred_fallthru
          _
        // Predicated region
        $region41: #{tpu_custom_call.1} parent=35 // pred_check
          %p289 = pneg %p69
        $region42: #{tpu_custom_call.1} parent=35 // pred_check_branch
          %291 = sbr.rel (%p289) target = $region44
        $region43: #{tpu_custom_call.1} parent=35 // pred_region
          %p292 = scmp.lt.s32.totalorder %s23, 1
          %s293 = scalar_select %p292, %s23, 1
          %s294 = smul.addr %s293, 8
          %s295 = scalar_lea.vmem %s1, %s294
        $region44: #{tpu_custom_call.1} parent=35 // pred_fallthru
          _
      $region36: #{tpu_custom_call.1} parent=5 // pred_fallthru
        _
      %p296 = scmp.le.s32.totalorder 1, %s23
      %p297 = scmp.lt.s32.totalorder %s23, 3
      %p298 = pnand %p296, %p297
      %p299 = pneg %p298
      // Predicated region
      $region45: #{tpu_custom_call.1} parent=5 // pred_check
        _
      $region46: #{tpu_custom_call.1} parent=5 // pred_check_branch
        %301 = sbr.rel (%p298) target = $region48
      $region47: #{tpu_custom_call.1} parent=5 // pred_region
        %s302 = ssub.s32 %s23, 1
        // Predicated region
        $region49: #{tpu_custom_call.1} parent=47 // pred_check
          %p303 = pneg %p159
        $region50: #{tpu_custom_call.1} parent=47 // pred_check_branch
          %305 = sbr.rel (%p303) target = $region52
        $region51: #{tpu_custom_call.1} parent=47 // pred_region
          %306 = dma.done [#allocation4], 16
        $region52: #{tpu_custom_call.1} parent=47 // pred_fallthru
          _
        // Predicated region
        $region53: #{tpu_custom_call.1} parent=47 // pred_check
          %p307 = pneg %p180
        $region54: #{tpu_custom_call.1} parent=47 // pred_check_branch
          %309 = sbr.rel (%p307) target = $region56
        $region55: #{tpu_custom_call.1} parent=47 // pred_region
          %310 = dma.done [#allocation6], 16
        $region56: #{tpu_custom_call.1} parent=47 // pred_fallthru
          _
        %311 = sfence
        %p312 = scmp.lt.s32.totalorder %s28, 1
        %s313 = scalar_select %p312, %s28, 1
        %s314 = smul.addr %s313, 8
        %s315 = scalar_lea.vmem %s0, %s314
        %p316 = pneg %p49
        %p317 = pneg %p46
        %p318 = scmp.lt.s32.totalorder %s28, 1
        %s319 = scalar_select %p318, %s28, 1
        %s320 = smul.addr %s319, 8
        %s321 = scalar_lea.vmem %s1, %s320
        %p322 = pneg %p75
        %p323 = pneg %p72
        %p324 = pneg %p96
        %p325 = pneg %p93
        %p326 = pneg %p117
        %p327 = pneg %p114
        %p328 = pneg %p138
        %p329 = pneg %p135
        %p330 = pneg %p159
        %p331 = pneg %p156
        %p332 = pneg %p180
        %p333 = pneg %p177
        %p334 = pneg %p206
        %p335 = pneg %p203
        %s336 = sand.u32 %s193, 1
        %s337 = scalar_lea.sflag [#allocation3], %s336
        %s338 = sand.u32 %s193, 1
        %s339 = smul.addr %s338, 8
        %s340 = scalar_lea.vmem [#allocation7], %s339
        %p341 = pneg %p232
        %p342 = pneg %p229
        %s343 = sand.u32 %s219, 1
        %s344 = scalar_lea.sflag [#allocation9], %s343
        %s345 = sand.u32 %s219, 1
        %s346 = smul.addr %s345, 8
        %s347 = scalar_lea.vmem [#allocation8], %s346
        %p348 = scmp.lt.s32.totalorder %s28, 1
        %s349 = scalar_select %p348, %s28, 1
        %s350 = smul.addr %s349, 8
        %s351 = scalar_lea.vmem %s0, %s350
        %p352 = scmp.lt.s32.totalorder %s28, 1
        %s353 = scalar_select %p352, %s28, 1
        %s354 = smul.addr %s353, 8
        %s355 = scalar_lea.vmem %s1, %s354
        %s356 = sld [smem:[#allocation5]]
        %s357 = sld [smem:[#allocation5 + $0x1]]
        %s358 = sld [smem:[#allocation5 + $0x2]]
        %s359 = sld [smem:[#allocation5 + $0x3]]
        %s360 = sld [smem:[#allocation5 + $0x4]]
        %s361 = sld [smem:[#allocation5 + $0x5]]
        %s362 = sld [smem:[#allocation5 + $0x6]]
        %s363 = sld [smem:[#allocation5 + $0x7]]
        %s364 = smul.f32 %s363, 3.0
        %s365 = sld [smem:[#allocation2]]
        %s366 = sld [smem:[#allocation2 + $0x1]]
        %v367 = vld [vmem:[%s2] sm:$0xff]
        %v368 = vld [vmem:[%s2 + $0x8] sm:$0xff]
        %v369 = vld [vmem:[%s2 + $0x10] sm:$0xff]
        %v370 = vld [vmem:[%s2 + $0x18] sm:$0xff]
        %v371 = vld [vmem:[%s2 + $0x20] sm:$0xff]
        %v372 = vld [vmem:[%s2 + $0x28] sm:$0xff]
        %v373 = vld [vmem:[%s2 + $0x30] sm:$0xff]
        %v374 = vld [vmem:[%s2 + $0x38] sm:$0xff]
        %v375 = vld [vmem:[%s2 + $0x40] sm:$0xff]
        %v376 = vld [vmem:[%s2 + $0x48] sm:$0xff]
        %v377 = vld [vmem:[%s2 + $0x50] sm:$0xff]
        %v378 = vld [vmem:[%s2 + $0x58] sm:$0xff]
        %v379 = vld [vmem:[%s2 + $0x60] sm:$0xff]
        %v380 = vld [vmem:[%s2 + $0x68] sm:$0xff]
        %v381 = vld [vmem:[%s2 + $0x70] sm:$0xff]
        %v382 = vld [vmem:[%s2 + $0x78] sm:$0xff]
        %v383 = vld [vmem:[%s2 + $0x80] sm:$0xff]
        %v384 = vld [vmem:[%s2 + $0x88] sm:$0xff]
        %v385 = vld [vmem:[%s2 + $0x90] sm:$0xff]
        %v386 = vld [vmem:[%s2 + $0x98] sm:$0xff]
        %v387 = vld [vmem:[%s2 + $0xa0] sm:$0xff]
        %v388 = vld [vmem:[%s2 + $0xa8] sm:$0xff]
        %v389 = vld [vmem:[%s2 + $0xb0] sm:$0xff]
        %v390 = vld [vmem:[%s2 + $0xb8] sm:$0xff]
        %v391 = vld [vmem:[%s2 + $0xc0] sm:$0xff]
        %v392 = vld [vmem:[%s2 + $0xc8] sm:$0xff]
        %v393 = vld [vmem:[%s2 + $0xd0] sm:$0xff]
        %v394 = vld [vmem:[%s2 + $0xd8] sm:$0xff]
        %v395 = vld [vmem:[%s2 + $0xe0] sm:$0xff]
        %v396 = vld [vmem:[%s2 + $0xe8] sm:$0xff]
        %v397 = vld [vmem:[%s2 + $0xf0] sm:$0xff]
        %v398 = vld [vmem:[%s2 + $0xf8] sm:$0xff]
        %v399 = vld [vmem:[%s2 + $0x100] sm:$0xff]
        %v400 = vld [vmem:[%s2 + $0x108] sm:$0xff]
        %v401 = vld [vmem:[%s2 + $0x110] sm:$0xff]
        %v402 = vld [vmem:[%s2 + $0x118] sm:$0xff]
        %v403 = vld [vmem:[%s2 + $0x120] sm:$0xff]
        %v404 = vld [vmem:[%s2 + $0x128] sm:$0xff]
        %v405 = vld [vmem:[%s2 + $0x130] sm:$0xff]
        %v406 = vld [vmem:[%s2 + $0x138] sm:$0xff]
        %v407 = vld [vmem:[%s2 + $0x140] sm:$0xff]
        %v408 = vld [vmem:[%s2 + $0x148] sm:$0xff]
        %v409 = vld [vmem:[%s2 + $0x150] sm:$0xff]
        %v410 = vld [vmem:[%s2 + $0x158] sm:$0xff]
        %v411 = vld [vmem:[%s2 + $0x160] sm:$0xff]
        %v412 = vld [vmem:[%s2 + $0x168] sm:$0xff]
        %v413 = vld [vmem:[%s2 + $0x170] sm:$0xff]
        %v414 = vld [vmem:[%s2 + $0x178] sm:$0xff]
        %416 = vset.pattern.permute.xlu0 0
        %417 = vperm.xlu0 %416, %v367
        %v418 = vpop.permute.xlu0 %417
        %421 = vset.pattern.permute.xlu0 0
        %422 = vperm.xlu0 %421, %v368
        %v423 = vpop.permute.xlu0 %422
        %426 = vset.pattern.permute.xlu0 0
        %427 = vperm.xlu0 %426, %v369
        %v428 = vpop.permute.xlu0 %427
        %431 = vset.pattern.permute.xlu0 0
        %432 = vperm.xlu0 %431, %v370
        %v433 = vpop.permute.xlu0 %432
        %436 = vset.pattern.permute.xlu0 0
        %437 = vperm.xlu0 %436, %v371
        %v438 = vpop.permute.xlu0 %437
        %441 = vset.pattern.permute.xlu0 0
        %442 = vperm.xlu0 %441, %v372
        %v443 = vpop.permute.xlu0 %442
        %446 = vset.pattern.permute.xlu0 0
        %447 = vperm.xlu0 %446, %v373
        %v448 = vpop.permute.xlu0 %447
        %451 = vset.pattern.permute.xlu0 0
        %452 = vperm.xlu0 %451, %v374
        %v453 = vpop.permute.xlu0 %452
        %456 = vset.pattern.permute.xlu0 0
        %457 = vperm.xlu0 %456, %v375
        %v458 = vpop.permute.xlu0 %457
        %461 = vset.pattern.permute.xlu0 0
        %462 = vperm.xlu0 %461, %v376
        %v463 = vpop.permute.xlu0 %462
        %466 = vset.pattern.permute.xlu0 0
        %467 = vperm.xlu0 %466, %v377
        %v468 = vpop.permute.xlu0 %467
        %471 = vset.pattern.permute.xlu0 0
        %472 = vperm.xlu0 %471, %v378
        %v473 = vpop.permute.xlu0 %472
        %476 = vset.pattern.permute.xlu0 0
        %477 = vperm.xlu0 %476, %v379
        %v478 = vpop.permute.xlu0 %477
        %481 = vset.pattern.permute.xlu0 0
        %482 = vperm.xlu0 %481, %v380
        %v483 = vpop.permute.xlu0 %482
        %486 = vset.pattern.permute.xlu0 0
        %487 = vperm.xlu0 %486, %v381
        %v488 = vpop.permute.xlu0 %487
        %491 = vset.pattern.permute.xlu0 0
        %492 = vperm.xlu0 %491, %v382
        %v493 = vpop.permute.xlu0 %492
        %496 = vset.pattern.permute.xlu0 0
        %497 = vperm.xlu0 %496, %v383
        %v498 = vpop.permute.xlu0 %497
        %501 = vset.pattern.permute.xlu0 0
        %502 = vperm.xlu0 %501, %v384
        %v503 = vpop.permute.xlu0 %502
        %506 = vset.pattern.permute.xlu0 0
        %507 = vperm.xlu0 %506, %v385
        %v508 = vpop.permute.xlu0 %507
        %511 = vset.pattern.permute.xlu0 0
        %512 = vperm.xlu0 %511, %v386
        %v513 = vpop.permute.xlu0 %512
        %516 = vset.pattern.permute.xlu0 0
        %517 = vperm.xlu0 %516, %v387
        %v518 = vpop.permute.xlu0 %517
        %521 = vset.pattern.permute.xlu0 0
        %522 = vperm.xlu0 %521, %v388
        %v523 = vpop.permute.xlu0 %522
        %526 = vset.pattern.permute.xlu0 0
        %527 = vperm.xlu0 %526, %v389
        %v528 = vpop.permute.xlu0 %527
        %531 = vset.pattern.permute.xlu0 0
        %532 = vperm.xlu0 %531, %v390
        %v533 = vpop.permute.xlu0 %532
        %536 = vset.pattern.permute.xlu0 0
        %537 = vperm.xlu0 %536, %v391
        %v538 = vpop.permute.xlu0 %537
        %541 = vset.pattern.permute.xlu0 0
        %542 = vperm.xlu0 %541, %v392
        %v543 = vpop.permute.xlu0 %542
        %546 = vset.pattern.permute.xlu0 0
        %547 = vperm.xlu0 %546, %v393
        %v548 = vpop.permute.xlu0 %547
        %551 = vset.pattern.permute.xlu0 0
        %552 = vperm.xlu0 %551, %v394
        %v553 = vpop.permute.xlu0 %552
        %556 = vset.pattern.permute.xlu0 0
        %557 = vperm.xlu0 %556, %v395
        %v558 = vpop.permute.xlu0 %557
        %561 = vset.pattern.permute.xlu0 0
        %562 = vperm.xlu0 %561, %v396
        %v563 = vpop.permute.xlu0 %562
        %566 = vset.pattern.permute.xlu0 0
        %567 = vperm.xlu0 %566, %v397
        %v568 = vpop.permute.xlu0 %567
        %571 = vset.pattern.permute.xlu0 0
        %572 = vperm.xlu0 %571, %v398
        %v573 = vpop.permute.xlu0 %572
        %576 = vset.pattern.permute.xlu0 0
        %577 = vperm.xlu0 %576, %v399
        %v578 = vpop.permute.xlu0 %577
        %581 = vset.pattern.permute.xlu0 0
        %582 = vperm.xlu0 %581, %v400
        %v583 = vpop.permute.xlu0 %582
        %586 = vset.pattern.permute.xlu0 0
        %587 = vperm.xlu0 %586, %v401
        %v588 = vpop.permute.xlu0 %587
        %591 = vset.pattern.permute.xlu0 0
        %592 = vperm.xlu0 %591, %v402
        %v593 = vpop.permute.xlu0 %592
        %596 = vset.pattern.permute.xlu0 0
        %597 = vperm.xlu0 %596, %v403
        %v598 = vpop.permute.xlu0 %597
        %601 = vset.pattern.permute.xlu0 0
        %602 = vperm.xlu0 %601, %v404
        %v603 = vpop.permute.xlu0 %602
        %606 = vset.pattern.permute.xlu0 0
        %607 = vperm.xlu0 %606, %v405
        %v608 = vpop.permute.xlu0 %607
        %611 = vset.pattern.permute.xlu0 0
        %612 = vperm.xlu0 %611, %v406
        %v613 = vpop.permute.xlu0 %612
        %616 = vset.pattern.permute.xlu0 0
        %617 = vperm.xlu0 %616, %v407
        %v618 = vpop.permute.xlu0 %617
        %621 = vset.pattern.permute.xlu0 0
        %622 = vperm.xlu0 %621, %v408
        %v623 = vpop.permute.xlu0 %622
        %626 = vset.pattern.permute.xlu0 0
        %627 = vperm.xlu0 %626, %v409
        %v628 = vpop.permute.xlu0 %627
        %631 = vset.pattern.permute.xlu0 0
        %632 = vperm.xlu0 %631, %v410
        %v633 = vpop.permute.xlu0 %632
        %636 = vset.pattern.permute.xlu0 0
        %637 = vperm.xlu0 %636, %v411
        %v638 = vpop.permute.xlu0 %637
        %641 = vset.pattern.permute.xlu0 0
        %642 = vperm.xlu0 %641, %v412
        %v643 = vpop.permute.xlu0 %642
        %646 = vset.pattern.permute.xlu0 0
        %647 = vperm.xlu0 %646, %v413
        %v648 = vpop.permute.xlu0 %647
        %651 = vset.pattern.permute.xlu0 0
        %652 = vperm.xlu0 %651, %v414
        %v653 = vpop.permute.xlu0 %652
        %v655 = vld [vmem:[%s3] sm:$0xff]
        %v656 = vld [vmem:[%s3 + $0x8] sm:$0xff]
        %v657 = vld [vmem:[%s3 + $0x10] sm:$0xff]
        %v658 = vld [vmem:[%s3 + $0x18] sm:$0xff]
        %v659 = vld [vmem:[%s3 + $0x20] sm:$0xff]
        %v660 = vld [vmem:[%s3 + $0x28] sm:$0xff]
        %v661 = vld [vmem:[%s3 + $0x30] sm:$0xff]
        %v662 = vld [vmem:[%s3 + $0x38] sm:$0xff]
        %v663 = vld [vmem:[%s3 + $0x40] sm:$0xff]
        %v664 = vld [vmem:[%s3 + $0x48] sm:$0xff]
        %v665 = vld [vmem:[%s3 + $0x50] sm:$0xff]
        %v666 = vld [vmem:[%s3 + $0x58] sm:$0xff]
        %v667 = vld [vmem:[%s3 + $0x60] sm:$0xff]
        %v668 = vld [vmem:[%s3 + $0x68] sm:$0xff]
        %v669 = vld [vmem:[%s3 + $0x70] sm:$0xff]
        %v670 = vld [vmem:[%s3 + $0x78] sm:$0xff]
        %v671 = vld [vmem:[%s3 + $0x80] sm:$0xff]
        %v672 = vld [vmem:[%s3 + $0x88] sm:$0xff]
        %v673 = vld [vmem:[%s3 + $0x90] sm:$0xff]
        %v674 = vld [vmem:[%s3 + $0x98] sm:$0xff]
        %v675 = vld [vmem:[%s3 + $0xa0] sm:$0xff]
        %v676 = vld [vmem:[%s3 + $0xa8] sm:$0xff]
        %v677 = vld [vmem:[%s3 + $0xb0] sm:$0xff]
        %v678 = vld [vmem:[%s3 + $0xb8] sm:$0xff]
        %v679 = vld [vmem:[%s3 + $0xc0] sm:$0xff]
        %v680 = vld [vmem:[%s3 + $0xc8] sm:$0xff]
        %v681 = vld [vmem:[%s3 + $0xd0] sm:$0xff]
        %v682 = vld [vmem:[%s3 + $0xd8] sm:$0xff]
        %v683 = vld [vmem:[%s3 + $0xe0] sm:$0xff]
        %v684 = vld [vmem:[%s3 + $0xe8] sm:$0xff]
        %v685 = vld [vmem:[%s3 + $0xf0] sm:$0xff]
        %v686 = vld [vmem:[%s3 + $0xf8] sm:$0xff]
        %v687 = vld [vmem:[%s3 + $0x100] sm:$0xff]
        %v688 = vld [vmem:[%s3 + $0x108] sm:$0xff]
        %v689 = vld [vmem:[%s3 + $0x110] sm:$0xff]
        %v690 = vld [vmem:[%s3 + $0x118] sm:$0xff]
        %v691 = vld [vmem:[%s3 + $0x120] sm:$0xff]
        %v692 = vld [vmem:[%s3 + $0x128] sm:$0xff]
        %v693 = vld [vmem:[%s3 + $0x130] sm:$0xff]
        %v694 = vld [vmem:[%s3 + $0x138] sm:$0xff]
        %v695 = vld [vmem:[%s3 + $0x140] sm:$0xff]
        %v696 = vld [vmem:[%s3 + $0x148] sm:$0xff]
        %v697 = vld [vmem:[%s3 + $0x150] sm:$0xff]
        %v698 = vld [vmem:[%s3 + $0x158] sm:$0xff]
        %v699 = vld [vmem:[%s3 + $0x160] sm:$0xff]
        %v700 = vld [vmem:[%s3 + $0x168] sm:$0xff]
        %v701 = vld [vmem:[%s3 + $0x170] sm:$0xff]
        %v702 = vld [vmem:[%s3 + $0x178] sm:$0xff]
        %704 = vset.pattern.permute.xlu0 0
        %705 = vperm.xlu0 %704, %v655
        %v706 = vpop.permute.xlu0 %705
        %709 = vset.pattern.permute.xlu0 0
        %710 = vperm.xlu0 %709, %v656
        %v711 = vpop.permute.xlu0 %710
        %714 = vset.pattern.permute.xlu0 0
        %715 = vperm.xlu0 %714, %v657
        %v716 = vpop.permute.xlu0 %715
        %719 = vset.pattern.permute.xlu0 0
        %720 = vperm.xlu0 %719, %v658
        %v721 = vpop.permute.xlu0 %720
        %724 = vset.pattern.permute.xlu0 0
        %725 = vperm.xlu0 %724, %v659
        %v726 = vpop.permute.xlu0 %725
        %729 = vset.pattern.permute.xlu0 0
        %730 = vperm.xlu0 %729, %v660
        %v731 = vpop.permute.xlu0 %730
        %734 = vset.pattern.permute.xlu0 0
        %735 = vperm.xlu0 %734, %v661
        %v736 = vpop.permute.xlu0 %735
        %739 = vset.pattern.permute.xlu0 0
        %740 = vperm.xlu0 %739, %v662
        %v741 = vpop.permute.xlu0 %740
        %744 = vset.pattern.permute.xlu0 0
        %745 = vperm.xlu0 %744, %v663
        %v746 = vpop.permute.xlu0 %745
        %749 = vset.pattern.permute.xlu0 0
        %750 = vperm.xlu0 %749, %v664
        %v751 = vpop.permute.xlu0 %750
        %754 = vset.pattern.permute.xlu0 0
        %755 = vperm.xlu0 %754, %v665
        %v756 = vpop.permute.xlu0 %755
        %759 = vset.pattern.permute.xlu0 0
        %760 = vperm.xlu0 %759, %v666
        %v761 = vpop.permute.xlu0 %760
        %764 = vset.pattern.permute.xlu0 0
        %765 = vperm.xlu0 %764, %v667
        %v766 = vpop.permute.xlu0 %765
        %769 = vset.pattern.permute.xlu0 0
        %770 = vperm.xlu0 %769, %v668
        %v771 = vpop.permute.xlu0 %770
        %774 = vset.pattern.permute.xlu0 0
        %775 = vperm.xlu0 %774, %v669
        %v776 = vpop.permute.xlu0 %775
        %779 = vset.pattern.permute.xlu0 0
        %780 = vperm.xlu0 %779, %v670
        %v781 = vpop.permute.xlu0 %780
        %784 = vset.pattern.permute.xlu0 0
        %785 = vperm.xlu0 %784, %v671
        %v786 = vpop.permute.xlu0 %785
        %789 = vset.pattern.permute.xlu0 0
        %790 = vperm.xlu0 %789, %v672
        %v791 = vpop.permute.xlu0 %790
        %794 = vset.pattern.permute.xlu0 0
        %795 = vperm.xlu0 %794, %v673
        %v796 = vpop.permute.xlu0 %795
        %799 = vset.pattern.permute.xlu0 0
        %800 = vperm.xlu0 %799, %v674
        %v801 = vpop.permute.xlu0 %800
        %804 = vset.pattern.permute.xlu0 0
        %805 = vperm.xlu0 %804, %v675
        %v806 = vpop.permute.xlu0 %805
        %809 = vset.pattern.permute.xlu0 0
        %810 = vperm.xlu0 %809, %v676
        %v811 = vpop.permute.xlu0 %810
        %814 = vset.pattern.permute.xlu0 0
        %815 = vperm.xlu0 %814, %v677
        %v816 = vpop.permute.xlu0 %815
        %819 = vset.pattern.permute.xlu0 0
        %820 = vperm.xlu0 %819, %v678
        %v821 = vpop.permute.xlu0 %820
        %824 = vset.pattern.permute.xlu0 0
        %825 = vperm.xlu0 %824, %v679
        %v826 = vpop.permute.xlu0 %825
        %829 = vset.pattern.permute.xlu0 0
        %830 = vperm.xlu0 %829, %v680
        %v831 = vpop.permute.xlu0 %830
        %834 = vset.pattern.permute.xlu0 0
        %835 = vperm.xlu0 %834, %v681
        %v836 = vpop.permute.xlu0 %835
        %839 = vset.pattern.permute.xlu0 0
        %840 = vperm.xlu0 %839, %v682
        %v841 = vpop.permute.xlu0 %840
        %844 = vset.pattern.permute.xlu0 0
        %845 = vperm.xlu0 %844, %v683
        %v846 = vpop.permute.xlu0 %845
        %849 = vset.pattern.permute.xlu0 0
        %850 = vperm.xlu0 %849, %v684
        %v851 = vpop.permute.xlu0 %850
        %854 = vset.pattern.permute.xlu0 0
        %855 = vperm.xlu0 %854, %v685
        %v856 = vpop.permute.xlu0 %855
        %859 = vset.pattern.permute.xlu0 0
        %860 = vperm.xlu0 %859, %v686
        %v861 = vpop.permute.xlu0 %860
        %864 = vset.pattern.permute.xlu0 0
        %865 = vperm.xlu0 %864, %v687
        %v866 = vpop.permute.xlu0 %865
        %869 = vset.pattern.permute.xlu0 0
        %870 = vperm.xlu0 %869, %v688
        %v871 = vpop.permute.xlu0 %870
        %874 = vset.pattern.permute.xlu0 0
        %875 = vperm.xlu0 %874, %v689
        %v876 = vpop.permute.xlu0 %875
        %879 = vset.pattern.permute.xlu0 0
        %880 = vperm.xlu0 %879, %v690
        %v881 = vpop.permute.xlu0 %880
        %884 = vset.pattern.permute.xlu0 0
        %885 = vperm.xlu0 %884, %v691
        %v886 = vpop.permute.xlu0 %885
        %889 = vset.pattern.permute.xlu0 0
        %890 = vperm.xlu0 %889, %v692
        %v891 = vpop.permute.xlu0 %890
        %894 = vset.pattern.permute.xlu0 0
        %895 = vperm.xlu0 %894, %v693
        %v896 = vpop.permute.xlu0 %895
        %899 = vset.pattern.permute.xlu0 0
        %900 = vperm.xlu0 %899, %v694
        %v901 = vpop.permute.xlu0 %900
        %904 = vset.pattern.permute.xlu0 0
        %905 = vperm.xlu0 %904, %v695
        %v906 = vpop.permute.xlu0 %905
        %909 = vset.pattern.permute.xlu0 0
        %910 = vperm.xlu0 %909, %v696
        %v911 = vpop.permute.xlu0 %910
        %914 = vset.pattern.permute.xlu0 0
        %915 = vperm.xlu0 %914, %v697
        %v916 = vpop.permute.xlu0 %915
        %919 = vset.pattern.permute.xlu0 0
        %920 = vperm.xlu0 %919, %v698
        %v921 = vpop.permute.xlu0 %920
        %924 = vset.pattern.permute.xlu0 0
        %925 = vperm.xlu0 %924, %v699
        %v926 = vpop.permute.xlu0 %925
        %929 = vset.pattern.permute.xlu0 0
        %930 = vperm.xlu0 %929, %v700
        %v931 = vpop.permute.xlu0 %930
        %934 = vset.pattern.permute.xlu0 0
        %935 = vperm.xlu0 %934, %v701
        %v936 = vpop.permute.xlu0 %935
        %939 = vset.pattern.permute.xlu0 0
        %940 = vperm.xlu0 %939, %v702
        %v941 = vpop.permute.xlu0 %940
        %v943 = vld [vmem:[%s4] sm:$0xff]
        %v944 = vld [vmem:[%s4 + $0x8] sm:$0xff]
        %v945 = vld [vmem:[%s4 + $0x10] sm:$0xff]
        %v946 = vld [vmem:[%s351] sm:$0x1]
        %v947 = vld [vmem:[%s355] sm:$0x1]
        %v948 = vlaneseq
        %v949 = vshrl.u32 %v948, 7
        %v950 = vsub.s32 0, %v949
        %v951 = vrot.slane %v946, %v950
        %v952 = vmul.f32 %v418, %v951
        %v953 = vmul.f32 %v423, %v951
        %v954 = vmul.f32 %v428, %v951
        %v955 = vmul.f32 %v433, %v951
        %v956 = vmul.f32 %v438, %v951
        %v957 = vmul.f32 %v443, %v951
        %v958 = vmul.f32 %v448, %v951
        %v959 = vmul.f32 %v453, %v951
        %v960 = vmul.f32 %v458, %v951
        %v961 = vmul.f32 %v463, %v951
        %v962 = vmul.f32 %v468, %v951
        %v963 = vmul.f32 %v473, %v951
        %v964 = vmul.f32 %v478, %v951
        %v965 = vmul.f32 %v483, %v951
        %v966 = vmul.f32 %v488, %v951
        %v967 = vmul.f32 %v493, %v951
        %v968 = vmul.f32 %v498, %v951
        %v969 = vmul.f32 %v503, %v951
        %v970 = vmul.f32 %v508, %v951
        %v971 = vmul.f32 %v513, %v951
        %v972 = vmul.f32 %v518, %v951
        %v973 = vmul.f32 %v523, %v951
        %v974 = vmul.f32 %v528, %v951
        %v975 = vmul.f32 %v533, %v951
        %v976 = vmul.f32 %v538, %v951
        %v977 = vmul.f32 %v543, %v951
        %v978 = vmul.f32 %v548, %v951
        %v979 = vmul.f32 %v553, %v951
        %v980 = vmul.f32 %v558, %v951
        %v981 = vmul.f32 %v563, %v951
        %v982 = vmul.f32 %v568, %v951
        %v983 = vmul.f32 %v573, %v951
        %v984 = vmul.f32 %v578, %v951
        %v985 = vmul.f32 %v583, %v951
        %v986 = vmul.f32 %v588, %v951
        %v987 = vmul.f32 %v593, %v951
        %v988 = vmul.f32 %v598, %v951
        %v989 = vmul.f32 %v603, %v951
        %v990 = vmul.f32 %v608, %v951
        %v991 = vmul.f32 %v613, %v951
        %v992 = vmul.f32 %v618, %v951
        %v993 = vmul.f32 %v623, %v951
        %v994 = vmul.f32 %v628, %v951
        %v995 = vmul.f32 %v633, %v951
        %v996 = vmul.f32 %v638, %v951
        %v997 = vmul.f32 %v643, %v951
        %v998 = vmul.f32 %v648, %v951
        %v999 = vmul.f32 %v653, %v951
        %v1000 = vadd.f32 %v952, %v706
        %v1001 = vadd.f32 %v953, %v711
        %v1002 = vadd.f32 %v954, %v716
        %v1003 = vadd.f32 %v955, %v721
        %v1004 = vadd.f32 %v956, %v726
        %v1005 = vadd.f32 %v957, %v731
        %v1006 = vadd.f32 %v958, %v736
        %v1007 = vadd.f32 %v959, %v741
        %v1008 = vadd.f32 %v960, %v746
        %v1009 = vadd.f32 %v961, %v751
        %v1010 = vadd.f32 %v962, %v756
        %v1011 = vadd.f32 %v963, %v761
        %v1012 = vadd.f32 %v964, %v766
        %v1013 = vadd.f32 %v965, %v771
        %v1014 = vadd.f32 %v966, %v776
        %v1015 = vadd.f32 %v967, %v781
        %v1016 = vadd.f32 %v968, %v786
        %v1017 = vadd.f32 %v969, %v791
        %v1018 = vadd.f32 %v970, %v796
        %v1019 = vadd.f32 %v971, %v801
        %v1020 = vadd.f32 %v972, %v806
        %v1021 = vadd.f32 %v973, %v811
        %v1022 = vadd.f32 %v974, %v816
        %v1023 = vadd.f32 %v975, %v821
        %v1024 = vadd.f32 %v976, %v826
        %v1025 = vadd.f32 %v977, %v831
        %v1026 = vadd.f32 %v978, %v836
        %v1027 = vadd.f32 %v979, %v841
        %v1028 = vadd.f32 %v980, %v846
        %v1029 = vadd.f32 %v981, %v851
        %v1030 = vadd.f32 %v982, %v856
        %v1031 = vadd.f32 %v983, %v861
        %v1032 = vadd.f32 %v984, %v866
        %v1033 = vadd.f32 %v985, %v871
        %v1034 = vadd.f32 %v986, %v876
        %v1035 = vadd.f32 %v987, %v881
        %v1036 = vadd.f32 %v988, %v886
        %v1037 = vadd.f32 %v989, %v891
        %v1038 = vadd.f32 %v990, %v896
        %v1039 = vadd.f32 %v991, %v901
        %v1040 = vadd.f32 %v992, %v906
        %v1041 = vadd.f32 %v993, %v911
        %v1042 = vadd.f32 %v994, %v916
        %v1043 = vadd.f32 %v995, %v921
        %v1044 = vadd.f32 %v996, %v926
        %v1045 = vadd.f32 %v997, %v931
        %v1046 = vadd.f32 %v998, %v936
        %v1047 = vadd.f32 %v999, %v941
        %vm1048 = vcmp.ge.f32.partialorder %v1000, 0.0
        %vm1049 = vcmp.ge.f32.partialorder %v1001, 0.0
        %vm1050 = vcmp.ge.f32.partialorder %v1002, 0.0
        %vm1051 = vcmp.ge.f32.partialorder %v1003, 0.0
        %vm1052 = vcmp.ge.f32.partialorder %v1004, 0.0
        %vm1053 = vcmp.ge.f32.partialorder %v1005, 0.0
        %vm1054 = vcmp.ge.f32.partialorder %v1006, 0.0
        %vm1055 = vcmp.ge.f32.partialorder %v1007, 0.0
        %vm1056 = vcmp.ge.f32.partialorder %v1008, 0.0
        %vm1057 = vcmp.ge.f32.partialorder %v1009, 0.0
        %vm1058 = vcmp.ge.f32.partialorder %v1010, 0.0
        %vm1059 = vcmp.ge.f32.partialorder %v1011, 0.0
        %vm1060 = vcmp.ge.f32.partialorder %v1012, 0.0
        %vm1061 = vcmp.ge.f32.partialorder %v1013, 0.0
        %vm1062 = vcmp.ge.f32.partialorder %v1014, 0.0
        %vm1063 = vcmp.ge.f32.partialorder %v1015, 0.0
        %vm1064 = vcmp.ge.f32.partialorder %v1016, 0.0
        %vm1065 = vcmp.ge.f32.partialorder %v1017, 0.0
        %vm1066 = vcmp.ge.f32.partialorder %v1018, 0.0
        %vm1067 = vcmp.ge.f32.partialorder %v1019, 0.0
        %vm1068 = vcmp.ge.f32.partialorder %v1020, 0.0
        %vm1069 = vcmp.ge.f32.partialorder %v1021, 0.0
        %vm1070 = vcmp.ge.f32.partialorder %v1022, 0.0
        %vm1071 = vcmp.ge.f32.partialorder %v1023, 0.0
        %vm1072 = vcmp.ge.f32.partialorder %v1024, 0.0
        %vm1073 = vcmp.ge.f32.partialorder %v1025, 0.0
        %vm1074 = vcmp.ge.f32.partialorder %v1026, 0.0
        %vm1075 = vcmp.ge.f32.partialorder %v1027, 0.0
        %vm1076 = vcmp.ge.f32.partialorder %v1028, 0.0
        %vm1077 = vcmp.ge.f32.partialorder %v1029, 0.0
        %vm1078 = vcmp.ge.f32.partialorder %v1030, 0.0
        %vm1079 = vcmp.ge.f32.partialorder %v1031, 0.0
        %vm1080 = vcmp.ge.f32.partialorder %v1032, 0.0
        %vm1081 = vcmp.ge.f32.partialorder %v1033, 0.0
        %vm1082 = vcmp.ge.f32.partialorder %v1034, 0.0
        %vm1083 = vcmp.ge.f32.partialorder %v1035, 0.0
        %vm1084 = vcmp.ge.f32.partialorder %v1036, 0.0
        %vm1085 = vcmp.ge.f32.partialorder %v1037, 0.0
        %vm1086 = vcmp.ge.f32.partialorder %v1038, 0.0
        %vm1087 = vcmp.ge.f32.partialorder %v1039, 0.0
        %vm1088 = vcmp.ge.f32.partialorder %v1040, 0.0
        %vm1089 = vcmp.ge.f32.partialorder %v1041, 0.0
        %vm1090 = vcmp.ge.f32.partialorder %v1042, 0.0
        %vm1091 = vcmp.ge.f32.partialorder %v1043, 0.0
        %vm1092 = vcmp.ge.f32.partialorder %v1044, 0.0
        %vm1093 = vcmp.ge.f32.partialorder %v1045, 0.0
        %vm1094 = vcmp.ge.f32.partialorder %v1046, 0.0
        %vm1095 = vcmp.ge.f32.partialorder %v1047, 0.0
        %v1096 = vmul.f32 %v1000, 0.01
        %v1097 = vmul.f32 %v1001, 0.01
        %v1098 = vmul.f32 %v1002, 0.01
        %v1099 = vmul.f32 %v1003, 0.01
        %v1100 = vmul.f32 %v1004, 0.01
        %v1101 = vmul.f32 %v1005, 0.01
        %v1102 = vmul.f32 %v1006, 0.01
        %v1103 = vmul.f32 %v1007, 0.01
        %v1104 = vmul.f32 %v1008, 0.01
        %v1105 = vmul.f32 %v1009, 0.01
        %v1106 = vmul.f32 %v1010, 0.01
        %v1107 = vmul.f32 %v1011, 0.01
        %v1108 = vmul.f32 %v1012, 0.01
        %v1109 = vmul.f32 %v1013, 0.01
        %v1110 = vmul.f32 %v1014, 0.01
        %v1111 = vmul.f32 %v1015, 0.01
        %v1112 = vmul.f32 %v1016, 0.01
        %v1113 = vmul.f32 %v1017, 0.01
        %v1114 = vmul.f32 %v1018, 0.01
        %v1115 = vmul.f32 %v1019, 0.01
        %v1116 = vmul.f32 %v1020, 0.01
        %v1117 = vmul.f32 %v1021, 0.01
        %v1118 = vmul.f32 %v1022, 0.01
        %v1119 = vmul.f32 %v1023, 0.01
        %v1120 = vmul.f32 %v1024, 0.01
        %v1121 = vmul.f32 %v1025, 0.01
        %v1122 = vmul.f32 %v1026, 0.01
        %v1123 = vmul.f32 %v1027, 0.01
        %v1124 = vmul.f32 %v1028, 0.01
        %v1125 = vmul.f32 %v1029, 0.01
        %v1126 = vmul.f32 %v1030, 0.01
        %v1127 = vmul.f32 %v1031, 0.01
        %v1128 = vmul.f32 %v1032, 0.01
        %v1129 = vmul.f32 %v1033, 0.01
        %v1130 = vmul.f32 %v1034, 0.01
        %v1131 = vmul.f32 %v1035, 0.01
        %v1132 = vmul.f32 %v1036, 0.01
        %v1133 = vmul.f32 %v1037, 0.01
        %v1134 = vmul.f32 %v1038, 0.01
        %v1135 = vmul.f32 %v1039, 0.01
        %v1136 = vmul.f32 %v1040, 0.01
        %v1137 = vmul.f32 %v1041, 0.01
        %v1138 = vmul.f32 %v1042, 0.01
        %v1139 = vmul.f32 %v1043, 0.01
        %v1140 = vmul.f32 %v1044, 0.01
        %v1141 = vmul.f32 %v1045, 0.01
        %v1142 = vmul.f32 %v1046, 0.01
        %v1143 = vmul.f32 %v1047, 0.01
        %v1144 = vsel %vm1048, %v1000, %v1096
        %v1145 = vsel %vm1049, %v1001, %v1097
        %v1146 = vsel %vm1050, %v1002, %v1098
        %v1147 = vsel %vm1051, %v1003, %v1099
        %v1148 = vsel %vm1052, %v1004, %v1100
        %v1149 = vsel %vm1053, %v1005, %v1101
        %v1150 = vsel %vm1054, %v1006, %v1102
        %v1151 = vsel %vm1055, %v1007, %v1103
        %v1152 = vsel %vm1056, %v1008, %v1104
        %v1153 = vsel %vm1057, %v1009, %v1105
        %v1154 = vsel %vm1058, %v1010, %v1106
        %v1155 = vsel %vm1059, %v1011, %v1107
        %v1156 = vsel %vm1060, %v1012, %v1108
        %v1157 = vsel %vm1061, %v1013, %v1109
        %v1158 = vsel %vm1062, %v1014, %v1110
        %v1159 = vsel %vm1063, %v1015, %v1111
        %v1160 = vsel %vm1064, %v1016, %v1112
        %v1161 = vsel %vm1065, %v1017, %v1113
        %v1162 = vsel %vm1066, %v1018, %v1114
        %v1163 = vsel %vm1067, %v1019, %v1115
        %v1164 = vsel %vm1068, %v1020, %v1116
        %v1165 = vsel %vm1069, %v1021, %v1117
        %v1166 = vsel %vm1070, %v1022, %v1118
        %v1167 = vsel %vm1071, %v1023, %v1119
        %v1168 = vsel %vm1072, %v1024, %v1120
        %v1169 = vsel %vm1073, %v1025, %v1121
        %v1170 = vsel %vm1074, %v1026, %v1122
        %v1171 = vsel %vm1075, %v1027, %v1123
        %v1172 = vsel %vm1076, %v1028, %v1124
        %v1173 = vsel %vm1077, %v1029, %v1125
        %v1174 = vsel %vm1078, %v1030, %v1126
        %v1175 = vsel %vm1079, %v1031, %v1127
        %v1176 = vsel %vm1080, %v1032, %v1128
        %v1177 = vsel %vm1081, %v1033, %v1129
        %v1178 = vsel %vm1082, %v1034, %v1130
        %v1179 = vsel %vm1083, %v1035, %v1131
        %v1180 = vsel %vm1084, %v1036, %v1132
        %v1181 = vsel %vm1085, %v1037, %v1133
        %v1182 = vsel %vm1086, %v1038, %v1134
        %v1183 = vsel %vm1087, %v1039, %v1135
        %v1184 = vsel %vm1088, %v1040, %v1136
        %v1185 = vsel %vm1089, %v1041, %v1137
        %v1186 = vsel %vm1090, %v1042, %v1138
        %v1187 = vsel %vm1091, %v1043, %v1139
        %v1188 = vsel %vm1092, %v1044, %v1140
        %v1189 = vsel %vm1093, %v1045, %v1141
        %v1190 = vsel %vm1094, %v1046, %v1142
        %v1191 = vsel %vm1095, %v1047, %v1143
        %1192 = vmatprep.subr.mxu0 0.0
        %1193 = vmatpush1.msra.mxu0 %v1144
        %1194 = vmatprep.subr.mxu0 0.0
        %1195 = vmatpush1.msra.mxu0 %v1145
        %1196 = vmatprep.subr.mxu0 0.0
        %1197 = vmatpush1.msra.mxu0 %v1146
        %1198 = vmatprep.subr.mxu0 0.0
        %1199 = vmatpush1.msra.mxu0 %v1147
        %1200 = vmatprep.subr.mxu0 0.0
        %1201 = vmatpush1.msra.mxu0 %v1148
        %1202 = vmatprep.subr.mxu0 0.0
        %1203 = vmatpush1.msra.mxu0 %v1149
        %1204 = vmatprep.subr.mxu0 0.0
        %1205 = vmatpush1.msra.mxu0 %v1150
        %1206 = vmatprep.subr.mxu0 0.0
        %1207 = vmatpush1.msra.mxu0 %v1151
        %1208 = vmatprep.subr.mxu0 0.0
        %1209 = vmatpush1.msra.mxu0 %v1152
        %1210 = vmatprep.subr.mxu0 0.0
        %1211 = vmatpush1.msra.mxu0 %v1153
        %1212 = vmatprep.subr.mxu0 0.0
        %1213 = vmatpush1.msra.mxu0 %v1154
        %1214 = vmatprep.subr.mxu0 0.0
        %1215 = vmatpush1.msra.mxu0 %v1155
        %1216 = vmatprep.subr.mxu0 0.0
        %1217 = vmatpush1.msra.mxu0 %v1156
        %1218 = vmatprep.subr.mxu0 0.0
        %1219 = vmatpush1.msra.mxu0 %v1157
        %1220 = vmatprep.subr.mxu0 0.0
        %1221 = vmatpush1.msra.mxu0 %v1158
        %1222 = vmatprep.subr.mxu0 0.0
        %1223 = vmatpush1.msra.mxu0 %v1159
        %1224 = vmatprep.subr.mxu0 0.0
        %1225 = vmatpush1.msra.mxu0 %v1160
        %1226 = vmatprep.subr.mxu0 0.0
        %1227 = vmatpush1.msra.mxu0 %v1161
        %1228 = vmatprep.subr.mxu0 0.0
        %1229 = vmatpush1.msra.mxu0 %v1162
        %1230 = vmatprep.subr.mxu0 0.0
        %1231 = vmatpush1.msra.mxu0 %v1163
        %1232 = vmatprep.subr.mxu0 0.0
        %1233 = vmatpush1.msra.mxu0 %v1164
        %1234 = vmatprep.subr.mxu0 0.0
        %1235 = vmatpush1.msra.mxu0 %v1165
        %1236 = vmatprep.subr.mxu0 0.0
        %1237 = vmatpush1.msra.mxu0 %v1166
        %1238 = vmatprep.subr.mxu0 0.0
        %1239 = vmatpush1.msra.mxu0 %v1167
        %1240 = vmatprep.subr.mxu0 0.0
        %1241 = vmatpush1.msra.mxu0 %v1168
        %1242 = vmatprep.subr.mxu0 0.0
        %1243 = vmatpush1.msra.mxu0 %v1169
        %1244 = vmatprep.subr.mxu0 0.0
        %1245 = vmatpush1.msra.mxu0 %v1170
        %1246 = vmatprep.subr.mxu0 0.0
        %1247 = vmatpush1.msra.mxu0 %v1171
        %1248 = vmatprep.subr.mxu0 0.0
        %1249 = vmatpush1.msra.mxu0 %v1172
        %1250 = vmatprep.subr.mxu0 0.0
        %1251 = vmatpush1.msra.mxu0 %v1173
        %1252 = vmatprep.subr.mxu0 0.0
        %1253 = vmatpush1.msra.mxu0 %v1174
        %1254 = vmatprep.subr.mxu0 0.0
        %1255 = vmatpush1.msra.mxu0 %v1175
        %1256 = vmatprep.mubr.f32.mxu0 %v944
        %1257 = vmatmul.mubr.f32.gmra.mrb[0].mxu0 %v943
        %v1258 = vpop.f32.mrb[0].mxu0
        %v1259 = vadd.f32 0.0, %v1258
        %v1260 = vpop.f32.mrb[0].mxu0
        %1261 = vdwg.mxu0
        %1262 = vmatprep.subr.mxu0 0.0
        %1263 = vmatpush1.msra.mxu0 %v1176
        %1264 = vmatprep.subr.mxu0 0.0
        %1265 = vmatpush1.msra.mxu0 %v1177
        %1266 = vmatprep.subr.mxu0 0.0
        %1267 = vmatpush1.msra.mxu0 %v1178
        %1268 = vmatprep.subr.mxu0 0.0
        %1269 = vmatpush1.msra.mxu0 %v1179
        %1270 = vmatprep.subr.mxu0 0.0
        %1271 = vmatpush1.msra.mxu0 %v1180
        %1272 = vmatprep.subr.mxu0 0.0
        %1273 = vmatpush1.msra.mxu0 %v1181
        %1274 = vmatprep.subr.mxu0 0.0
        %1275 = vmatpush1.msra.mxu0 %v1182
        %1276 = vmatprep.subr.mxu0 0.0
        %1277 = vmatpush1.msra.mxu0 %v1183
        %1278 = vmatprep.subr.mxu0 0.0
        %1279 = vmatpush1.msra.mxu0 %v1184
        %1280 = vmatprep.subr.mxu0 0.0
        %1281 = vmatpush1.msra.mxu0 %v1185
        %1282 = vmatprep.subr.mxu0 0.0
        %1283 = vmatpush1.msra.mxu0 %v1186
        %1284 = vmatprep.subr.mxu0 0.0
        %1285 = vmatpush1.msra.mxu0 %v1187
        %1286 = vmatprep.subr.mxu0 0.0
        %1287 = vmatpush1.msra.mxu0 %v1188
        %1288 = vmatprep.subr.mxu0 0.0
        %1289 = vmatpush1.msra.mxu0 %v1189
        %1290 = vmatprep.subr.mxu0 0.0
        %1291 = vmatpush1.msra.mxu0 %v1190
        %1292 = vmatprep.subr.mxu0 0.0
        %1293 = vmatpush1.msra.mxu0 %v1191
        %1294 = vmatprep.subr.mxu0 0.0
        %1295 = vmatpush1.msra.mxu0 0.0
        %1296 = vmatprep.subr.mxu0 0.0
        %1297 = vmatpush1.msra.mxu0 0.0
        %1298 = vmatprep.subr.mxu0 0.0
        %1299 = vmatpush1.msra.mxu0 0.0
        %1300 = vmatprep.subr.mxu0 0.0
        %1301 = vmatpush1.msra.mxu0 0.0
        %1302 = vmatprep.subr.mxu0 0.0
        %1303 = vmatpush1.msra.mxu0 0.0
        %1304 = vmatprep.subr.mxu0 0.0
        %1305 = vmatpush1.msra.mxu0 0.0
        %1306 = vmatprep.subr.mxu0 0.0
        %1307 = vmatpush1.msra.mxu0 0.0
        %1308 = vmatprep.subr.mxu0 0.0
        %1309 = vmatpush1.msra.mxu0 0.0
        %1310 = vmatprep.subr.mxu0 0.0
        %1311 = vmatpush1.msra.mxu0 0.0
        %1312 = vmatprep.subr.mxu0 0.0
        %1313 = vmatpush1.msra.mxu0 0.0
        %1314 = vmatprep.subr.mxu0 0.0
        %1315 = vmatpush1.msra.mxu0 0.0
        %1316 = vmatprep.subr.mxu0 0.0
        %1317 = vmatpush1.msra.mxu0 0.0
        %1318 = vmatprep.subr.mxu0 0.0
        %1319 = vmatpush1.msra.mxu0 0.0
        %1320 = vmatprep.subr.mxu0 0.0
        %1321 = vmatpush1.msra.mxu0 0.0
        %1322 = vmatprep.subr.mxu0 0.0
        %1323 = vmatpush1.msra.mxu0 0.0
        %1324 = vmatprep.subr.mxu0 0.0
        %1325 = vmatpush1.msra.mxu0 0.0
        %1326 = vmatprep.mubr.f32.mxu0 0.0
        %1327 = vmatmul.mubr.f32.gmra.mrb[0].mxu0 %v945
        %v1328 = vpop.f32.mrb[0].mxu0
        %v1329 = vadd.f32 %v1259, %v1328
        %v1330 = vpop.f32.mrb[0].mxu0
        %1331 = vdwg.mxu0
        %v1332 = vstv %s365
        %v1333 = vadd.f32 %v1329, %v1332
        %v1334 = vstv %s366
        %v1335 = vadd.f32 %v1329, %v1334
        %v1336 = vstv %s357
        %v1337 = vmul.f32 %v1336, %v1333
        %v1338 = vstv %s356
        %v1339 = vadd.f32 %v1338, %v1337
        %v1340 = vstv %s358
        %v1341 = vmul.f32 %v1340, %v1335
        %v1343 = vrot.slane %v1341, 1
        %v1345 = vadd.f32 %v1339, %v1343
        %v1347 = vrot.slane %v1335, 1
        %v1349 = vmul.f32 %v1333, %v1347
        %v1350 = vstv %s359
        %v1351 = vmul.f32 %v1350, %v1349
        %v1352 = vadd.f32 %v1345, %v1351
        %v1353 = vmul.f32 %v1333, %v1333
        %v1354 = vstv %s360
        %v1355 = vmul.f32 %v1354, %v1353
        %v1356 = vadd.f32 %v1352, %v1355
        %v1357 = vmul.f32 %v1335, %v1335
        %v1358 = vstv %s361
        %v1359 = vmul.f32 %v1358, %v1357
        %v1361 = vrot.slane %v1359, 1
        %v1363 = vadd.f32 %v1356, %v1361
        %v1364 = vmul.f32 %v947, %v947
        %v1365 = vstv %s362
        %v1366 = vmul.f32 %v1365, %v947
        %v1367 = vadd.f32 %v1363, %v1366
        %v1368 = vmul.f32 %v1364, %v947
        %v1369 = vstv %s363
        %v1370 = vmul.f32 %v1369, %v1368
        %v1371 = vadd.f32 %v1367, %v1370
        %1372 = vst [vmem:[%s340] sm:$0x1] %v1371
        %v1373 = vstv %s364
        %v1374 = vmul.f32 %v1373, %v1364
        %v1375 = vadd.f32 %v1365, %v1374
        %v1376 = vlog2.pop %v1375
        %v1377 = vmul.f32 %v1376, 0.6931472
        %1378 = vst [vmem:[%s347] sm:$0x1] %v1377
        %v1379 = vld [vmem:[%s351 + $0x1] sm:$0x1]
        %v1380 = vld [vmem:[%s355 + $0x1] sm:$0x1]
        %v1381 = vlaneseq
        %v1382 = vshrl.u32 %v1381, 7
        %v1383 = vsub.s32 0, %v1382
        %v1384 = vrot.slane %v1379, %v1383
        %v1385 = vmul.f32 %v418, %v1384
        %v1386 = vmul.f32 %v423, %v1384
        %v1387 = vmul.f32 %v428, %v1384
        %v1388 = vmul.f32 %v433, %v1384
        %v1389 = vmul.f32 %v438, %v1384
        %v1390 = vmul.f32 %v443, %v1384
        %v1391 = vmul.f32 %v448, %v1384
        %v1392 = vmul.f32 %v453, %v1384
        %v1393 = vmul.f32 %v458, %v1384
        %v1394 = vmul.f32 %v463, %v1384
        %v1395 = vmul.f32 %v468, %v1384
        %v1396 = vmul.f32 %v473, %v1384
        %v1397 = vmul.f32 %v478, %v1384
        %v1398 = vmul.f32 %v483, %v1384
        %v1399 = vmul.f32 %v488, %v1384
        %v1400 = vmul.f32 %v493, %v1384
        %v1401 = vmul.f32 %v498, %v1384
        %v1402 = vmul.f32 %v503, %v1384
        %v1403 = vmul.f32 %v508, %v1384
        %v1404 = vmul.f32 %v513, %v1384
        %v1405 = vmul.f32 %v518, %v1384
        %v1406 = vmul.f32 %v523, %v1384
        %v1407 = vmul.f32 %v528, %v1384
        %v1408 = vmul.f32 %v533, %v1384
        %v1409 = vmul.f32 %v538, %v1384
        %v1410 = vmul.f32 %v543, %v1384
        %v1411 = vmul.f32 %v548, %v1384
        %v1412 = vmul.f32 %v553, %v1384
        %v1413 = vmul.f32 %v558, %v1384
        %v1414 = vmul.f32 %v563, %v1384
        %v1415 = vmul.f32 %v568, %v1384
        %v1416 = vmul.f32 %v573, %v1384
        %v1417 = vmul.f32 %v578, %v1384
        %v1418 = vmul.f32 %v583, %v1384
        %v1419 = vmul.f32 %v588, %v1384
        %v1420 = vmul.f32 %v593, %v1384
        %v1421 = vmul.f32 %v598, %v1384
        %v1422 = vmul.f32 %v603, %v1384
        %v1423 = vmul.f32 %v608, %v1384
        %v1424 = vmul.f32 %v613, %v1384
        %v1425 = vmul.f32 %v618, %v1384
        %v1426 = vmul.f32 %v623, %v1384
        %v1427 = vmul.f32 %v628, %v1384
        %v1428 = vmul.f32 %v633, %v1384
        %v1429 = vmul.f32 %v638, %v1384
        %v1430 = vmul.f32 %v643, %v1384
        %v1431 = vmul.f32 %v648, %v1384
        %v1432 = vmul.f32 %v653, %v1384
        %v1433 = vadd.f32 %v1385, %v706
        %v1434 = vadd.f32 %v1386, %v711
        %v1435 = vadd.f32 %v1387, %v716
        %v1436 = vadd.f32 %v1388, %v721
        %v1437 = vadd.f32 %v1389, %v726
        %v1438 = vadd.f32 %v1390, %v731
        %v1439 = vadd.f32 %v1391, %v736
        %v1440 = vadd.f32 %v1392, %v741
        %v1441 = vadd.f32 %v1393, %v746
        %v1442 = vadd.f32 %v1394, %v751
        %v1443 = vadd.f32 %v1395, %v756
        %v1444 = vadd.f32 %v1396, %v761
        %v1445 = vadd.f32 %v1397, %v766
        %v1446 = vadd.f32 %v1398, %v771
        %v1447 = vadd.f32 %v1399, %v776
        %v1448 = vadd.f32 %v1400, %v781
        %v1449 = vadd.f32 %v1401, %v786
        %v1450 = vadd.f32 %v1402, %v791
        %v1451 = vadd.f32 %v1403, %v796
        %v1452 = vadd.f32 %v1404, %v801
        %v1453 = vadd.f32 %v1405, %v806
        %v1454 = vadd.f32 %v1406, %v811
        %v1455 = vadd.f32 %v1407, %v816
        %v1456 = vadd.f32 %v1408, %v821
        %v1457 = vadd.f32 %v1409, %v826
        %v1458 = vadd.f32 %v1410, %v831
        %v1459 = vadd.f32 %v1411, %v836
        %v1460 = vadd.f32 %v1412, %v841
        %v1461 = vadd.f32 %v1413, %v846
        %v1462 = vadd.f32 %v1414, %v851
        %v1463 = vadd.f32 %v1415, %v856
        %v1464 = vadd.f32 %v1416, %v861
        %v1465 = vadd.f32 %v1417, %v866
        %v1466 = vadd.f32 %v1418, %v871
        %v1467 = vadd.f32 %v1419, %v876
        %v1468 = vadd.f32 %v1420, %v881
        %v1469 = vadd.f32 %v1421, %v886
        %v1470 = vadd.f32 %v1422, %v891
        %v1471 = vadd.f32 %v1423, %v896
        %v1472 = vadd.f32 %v1424, %v901
        %v1473 = vadd.f32 %v1425, %v906
        %v1474 = vadd.f32 %v1426, %v911
        %v1475 = vadd.f32 %v1427, %v916
        %v1476 = vadd.f32 %v1428, %v921
        %v1477 = vadd.f32 %v1429, %v926
        %v1478 = vadd.f32 %v1430, %v931
        %v1479 = vadd.f32 %v1431, %v936
        %v1480 = vadd.f32 %v1432, %v941
        %vm1481 = vcmp.ge.f32.partialorder %v1433, 0.0
        %vm1482 = vcmp.ge.f32.partialorder %v1434, 0.0
        %vm1483 = vcmp.ge.f32.partialorder %v1435, 0.0
        %vm1484 = vcmp.ge.f32.partialorder %v1436, 0.0
        %vm1485 = vcmp.ge.f32.partialorder %v1437, 0.0
        %vm1486 = vcmp.ge.f32.partialorder %v1438, 0.0
        %vm1487 = vcmp.ge.f32.partialorder %v1439, 0.0
        %vm1488 = vcmp.ge.f32.partialorder %v1440, 0.0
        %vm1489 = vcmp.ge.f32.partialorder %v1441, 0.0
        %vm1490 = vcmp.ge.f32.partialorder %v1442, 0.0
        %vm1491 = vcmp.ge.f32.partialorder %v1443, 0.0
        %vm1492 = vcmp.ge.f32.partialorder %v1444, 0.0
        %vm1493 = vcmp.ge.f32.partialorder %v1445, 0.0
        %vm1494 = vcmp.ge.f32.partialorder %v1446, 0.0
        %vm1495 = vcmp.ge.f32.partialorder %v1447, 0.0
        %vm1496 = vcmp.ge.f32.partialorder %v1448, 0.0
        %vm1497 = vcmp.ge.f32.partialorder %v1449, 0.0
        %vm1498 = vcmp.ge.f32.partialorder %v1450, 0.0
        %vm1499 = vcmp.ge.f32.partialorder %v1451, 0.0
        %vm1500 = vcmp.ge.f32.partialorder %v1452, 0.0
        %vm1501 = vcmp.ge.f32.partialorder %v1453, 0.0
        %vm1502 = vcmp.ge.f32.partialorder %v1454, 0.0
        %vm1503 = vcmp.ge.f32.partialorder %v1455, 0.0
        %vm1504 = vcmp.ge.f32.partialorder %v1456, 0.0
        %vm1505 = vcmp.ge.f32.partialorder %v1457, 0.0
        %vm1506 = vcmp.ge.f32.partialorder %v1458, 0.0
        %vm1507 = vcmp.ge.f32.partialorder %v1459, 0.0
        %vm1508 = vcmp.ge.f32.partialorder %v1460, 0.0
        %vm1509 = vcmp.ge.f32.partialorder %v1461, 0.0
        %vm1510 = vcmp.ge.f32.partialorder %v1462, 0.0
        %vm1511 = vcmp.ge.f32.partialorder %v1463, 0.0
        %vm1512 = vcmp.ge.f32.partialorder %v1464, 0.0
        %vm1513 = vcmp.ge.f32.partialorder %v1465, 0.0
        %vm1514 = vcmp.ge.f32.partialorder %v1466, 0.0
        %vm1515 = vcmp.ge.f32.partialorder %v1467, 0.0
        %vm1516 = vcmp.ge.f32.partialorder %v1468, 0.0
        %vm1517 = vcmp.ge.f32.partialorder %v1469, 0.0
        %vm1518 = vcmp.ge.f32.partialorder %v1470, 0.0
        %vm1519 = vcmp.ge.f32.partialorder %v1471, 0.0
        %vm1520 = vcmp.ge.f32.partialorder %v1472, 0.0
        %vm1521 = vcmp.ge.f32.partialorder %v1473, 0.0
        %vm1522 = vcmp.ge.f32.partialorder %v1474, 0.0
        %vm1523 = vcmp.ge.f32.partialorder %v1475, 0.0
        %vm1524 = vcmp.ge.f32.partialorder %v1476, 0.0
        %vm1525 = vcmp.ge.f32.partialorder %v1477, 0.0
        %vm1526 = vcmp.ge.f32.partialorder %v1478, 0.0
        %vm1527 = vcmp.ge.f32.partialorder %v1479, 0.0
        %vm1528 = vcmp.ge.f32.partialorder %v1480, 0.0
        %v1529 = vmul.f32 %v1433, 0.01
        %v1530 = vmul.f32 %v1434, 0.01
        %v1531 = vmul.f32 %v1435, 0.01
        %v1532 = vmul.f32 %v1436, 0.01
        %v1533 = vmul.f32 %v1437, 0.01
        %v1534 = vmul.f32 %v1438, 0.01
        %v1535 = vmul.f32 %v1439, 0.01
        %v1536 = vmul.f32 %v1440, 0.01
        %v1537 = vmul.f32 %v1441, 0.01
        %v1538 = vmul.f32 %v1442, 0.01
        %v1539 = vmul.f32 %v1443, 0.01
        %v1540 = vmul.f32 %v1444, 0.01
        %v1541 = vmul.f32 %v1445, 0.01
        %v1542 = vmul.f32 %v1446, 0.01
        %v1543 = vmul.f32 %v1447, 0.01
        %v1544 = vmul.f32 %v1448, 0.01
        %v1545 = vmul.f32 %v1449, 0.01
        %v1546 = vmul.f32 %v1450, 0.01
        %v1547 = vmul.f32 %v1451, 0.01
        %v1548 = vmul.f32 %v1452, 0.01
        %v1549 = vmul.f32 %v1453, 0.01
        %v1550 = vmul.f32 %v1454, 0.01
        %v1551 = vmul.f32 %v1455, 0.01
        %v1552 = vmul.f32 %v1456, 0.01
        %v1553 = vmul.f32 %v1457, 0.01
        %v1554 = vmul.f32 %v1458, 0.01
        %v1555 = vmul.f32 %v1459, 0.01
        %v1556 = vmul.f32 %v1460, 0.01
        %v1557 = vmul.f32 %v1461, 0.01
        %v1558 = vmul.f32 %v1462, 0.01
        %v1559 = vmul.f32 %v1463, 0.01
        %v1560 = vmul.f32 %v1464, 0.01
        %v1561 = vmul.f32 %v1465, 0.01
        %v1562 = vmul.f32 %v1466, 0.01
        %v1563 = vmul.f32 %v1467, 0.01
        %v1564 = vmul.f32 %v1468, 0.01
        %v1565 = vmul.f32 %v1469, 0.01
        %v1566 = vmul.f32 %v1470, 0.01
        %v1567 = vmul.f32 %v1471, 0.01
        %v1568 = vmul.f32 %v1472, 0.01
        %v1569 = vmul.f32 %v1473, 0.01
        %v1570 = vmul.f32 %v1474, 0.01
        %v1571 = vmul.f32 %v1475, 0.01
        %v1572 = vmul.f32 %v1476, 0.01
        %v1573 = vmul.f32 %v1477, 0.01
        %v1574 = vmul.f32 %v1478, 0.01
        %v1575 = vmul.f32 %v1479, 0.01
        %v1576 = vmul.f32 %v1480, 0.01
        %v1577 = vsel %vm1481, %v1433, %v1529
        %v1578 = vsel %vm1482, %v1434, %v1530
        %v1579 = vsel %vm1483, %v1435, %v1531
        %v1580 = vsel %vm1484, %v1436, %v1532
        %v1581 = vsel %vm1485, %v1437, %v1533
        %v1582 = vsel %vm1486, %v1438, %v1534
        %v1583 = vsel %vm1487, %v1439, %v1535
        %v1584 = vsel %vm1488, %v1440, %v1536
        %v1585 = vsel %vm1489, %v1441, %v1537
        %v1586 = vsel %vm1490, %v1442, %v1538
        %v1587 = vsel %vm1491, %v1443, %v1539
        %v1588 = vsel %vm1492, %v1444, %v1540
        %v1589 = vsel %vm1493, %v1445, %v1541
        %v1590 = vsel %vm1494, %v1446, %v1542
        %v1591 = vsel %vm1495, %v1447, %v1543
        %v1592 = vsel %vm1496, %v1448, %v1544
        %v1593 = vsel %vm1497, %v1449, %v1545
        %v1594 = vsel %vm1498, %v1450, %v1546
        %v1595 = vsel %vm1499, %v1451, %v1547
        %v1596 = vsel %vm1500, %v1452, %v1548
        %v1597 = vsel %vm1501, %v1453, %v1549
        %v1598 = vsel %vm1502, %v1454, %v1550
        %v1599 = vsel %vm1503, %v1455, %v1551
        %v1600 = vsel %vm1504, %v1456, %v1552
        %v1601 = vsel %vm1505, %v1457, %v1553
        %v1602 = vsel %vm1506, %v1458, %v1554
        %v1603 = vsel %vm1507, %v1459, %v1555
        %v1604 = vsel %vm1508, %v1460, %v1556
        %v1605 = vsel %vm1509, %v1461, %v1557
        %v1606 = vsel %vm1510, %v1462, %v1558
        %v1607 = vsel %vm1511, %v1463, %v1559
        %v1608 = vsel %vm1512, %v1464, %v1560
        %v1609 = vsel %vm1513, %v1465, %v1561
        %v1610 = vsel %vm1514, %v1466, %v1562
        %v1611 = vsel %vm1515, %v1467, %v1563
        %v1612 = vsel %vm1516, %v1468, %v1564
        %v1613 = vsel %vm1517, %v1469, %v1565
        %v1614 = vsel %vm1518, %v1470, %v1566
        %v1615 = vsel %vm1519, %v1471, %v1567
        %v1616 = vsel %vm1520, %v1472, %v1568
        %v1617 = vsel %vm1521, %v1473, %v1569
        %v1618 = vsel %vm1522, %v1474, %v1570
        %v1619 = vsel %vm1523, %v1475, %v1571
        %v1620 = vsel %vm1524, %v1476, %v1572
        %v1621 = vsel %vm1525, %v1477, %v1573
        %v1622 = vsel %vm1526, %v1478, %v1574
        %v1623 = vsel %vm1527, %v1479, %v1575
        %v1624 = vsel %vm1528, %v1480, %v1576
        %1625 = vmatprep.subr.mxu0 0.0
        %1626 = vmatpush1.msra.mxu0 %v1577
        %1627 = vmatprep.subr.mxu0 0.0
        %1628 = vmatpush1.msra.mxu0 %v1578
        %1629 = vmatprep.subr.mxu0 0.0
        %1630 = vmatpush1.msra.mxu0 %v1579
        %1631 = vmatprep.subr.mxu0 0.0
        %1632 = vmatpush1.msra.mxu0 %v1580
        %1633 = vmatprep.subr.mxu0 0.0
        %1634 = vmatpush1.msra.mxu0 %v1581
        %1635 = vmatprep.subr.mxu0 0.0
        %1636 = vmatpush1.msra.mxu0 %v1582
        %1637 = vmatprep.subr.mxu0 0.0
        %1638 = vmatpush1.msra.mxu0 %v1583
        %1639 = vmatprep.subr.mxu0 0.0
        %1640 = vmatpush1.msra.mxu0 %v1584
        %1641 = vmatprep.subr.mxu0 0.0
        %1642 = vmatpush1.msra.mxu0 %v1585
        %1643 = vmatprep.subr.mxu0 0.0
        %1644 = vmatpush1.msra.mxu0 %v1586
        %1645 = vmatprep.subr.mxu0 0.0
        %1646 = vmatpush1.msra.mxu0 %v1587
        %1647 = vmatprep.subr.mxu0 0.0
        %1648 = vmatpush1.msra.mxu0 %v1588
        %1649 = vmatprep.subr.mxu0 0.0
        %1650 = vmatpush1.msra.mxu0 %v1589
        %1651 = vmatprep.subr.mxu0 0.0
        %1652 = vmatpush1.msra.mxu0 %v1590
        %1653 = vmatprep.subr.mxu0 0.0
        %1654 = vmatpush1.msra.mxu0 %v1591
        %1655 = vmatprep.subr.mxu0 0.0
        %1656 = vmatpush1.msra.mxu0 %v1592
        %1657 = vmatprep.subr.mxu0 0.0
        %1658 = vmatpush1.msra.mxu0 %v1593
        %1659 = vmatprep.subr.mxu0 0.0
        %1660 = vmatpush1.msra.mxu0 %v1594
        %1661 = vmatprep.subr.mxu0 0.0
        %1662 = vmatpush1.msra.mxu0 %v1595
        %1663 = vmatprep.subr.mxu0 0.0
        %1664 = vmatpush1.msra.mxu0 %v1596
        %1665 = vmatprep.subr.mxu0 0.0
        %1666 = vmatpush1.msra.mxu0 %v1597
        %1667 = vmatprep.subr.mxu0 0.0
        %1668 = vmatpush1.msra.mxu0 %v1598
        %1669 = vmatprep.subr.mxu0 0.0
        %1670 = vmatpush1.msra.mxu0 %v1599
        %1671 = vmatprep.subr.mxu0 0.0
        %1672 = vmatpush1.msra.mxu0 %v1600
        %1673 = vmatprep.subr.mxu0 0.0
        %1674 = vmatpush1.msra.mxu0 %v1601
        %1675 = vmatprep.subr.mxu0 0.0
        %1676 = vmatpush1.msra.mxu0 %v1602
        %1677 = vmatprep.subr.mxu0 0.0
        %1678 = vmatpush1.msra.mxu0 %v1603
        %1679 = vmatprep.subr.mxu0 0.0
        %1680 = vmatpush1.msra.mxu0 %v1604
        %1681 = vmatprep.subr.mxu0 0.0
        %1682 = vmatpush1.msra.mxu0 %v1605
        %1683 = vmatprep.subr.mxu0 0.0
        %1684 = vmatpush1.msra.mxu0 %v1606
        %1685 = vmatprep.subr.mxu0 0.0
        %1686 = vmatpush1.msra.mxu0 %v1607
        %1687 = vmatprep.subr.mxu0 0.0
        %1688 = vmatpush1.msra.mxu0 %v1608
        %1689 = vmatprep.mubr.f32.mxu0 %v944
        %1690 = vmatmul.mubr.f32.gmra.mrb[0].mxu0 %v943
        %v1691 = vpop.f32.mrb[0].mxu0
        %v1692 = vadd.f32 0.0, %v1691
        %v1693 = vpop.f32.mrb[0].mxu0
        %1694 = vdwg.mxu0
        %1695 = vmatprep.subr.mxu0 0.0
        %1696 = vmatpush1.msra.mxu0 %v1609
        %1697 = vmatprep.subr.mxu0 0.0
        %1698 = vmatpush1.msra.mxu0 %v1610
        %1699 = vmatprep.subr.mxu0 0.0
        %1700 = vmatpush1.msra.mxu0 %v1611
        %1701 = vmatprep.subr.mxu0 0.0
        %1702 = vmatpush1.msra.mxu0 %v1612
        %1703 = vmatprep.subr.mxu0 0.0
        %1704 = vmatpush1.msra.mxu0 %v1613
        %1705 = vmatprep.subr.mxu0 0.0
        %1706 = vmatpush1.msra.mxu0 %v1614
        %1707 = vmatprep.subr.mxu0 0.0
        %1708 = vmatpush1.msra.mxu0 %v1615
        %1709 = vmatprep.subr.mxu0 0.0
        %1710 = vmatpush1.msra.mxu0 %v1616
        %1711 = vmatprep.subr.mxu0 0.0
        %1712 = vmatpush1.msra.mxu0 %v1617
        %1713 = vmatprep.subr.mxu0 0.0
        %1714 = vmatpush1.msra.mxu0 %v1618
        %1715 = vmatprep.subr.mxu0 0.0
        %1716 = vmatpush1.msra.mxu0 %v1619
        %1717 = vmatprep.subr.mxu0 0.0
        %1718 = vmatpush1.msra.mxu0 %v1620
        %1719 = vmatprep.subr.mxu0 0.0
        %1720 = vmatpush1.msra.mxu0 %v1621
        %1721 = vmatprep.subr.mxu0 0.0
        %1722 = vmatpush1.msra.mxu0 %v1622
        %1723 = vmatprep.subr.mxu0 0.0
        %1724 = vmatpush1.msra.mxu0 %v1623
        %1725 = vmatprep.subr.mxu0 0.0
        %1726 = vmatpush1.msra.mxu0 %v1624
        %1727 = vmatprep.subr.mxu0 0.0
        %1728 = vmatpush1.msra.mxu0 0.0
        %1729 = vmatprep.subr.mxu0 0.0
        %1730 = vmatpush1.msra.mxu0 0.0
        %1731 = vmatprep.subr.mxu0 0.0
        %1732 = vmatpush1.msra.mxu0 0.0
        %1733 = vmatprep.subr.mxu0 0.0
        %1734 = vmatpush1.msra.mxu0 0.0
        %1735 = vmatprep.subr.mxu0 0.0
        %1736 = vmatpush1.msra.mxu0 0.0
        %1737 = vmatprep.subr.mxu0 0.0
        %1738 = vmatpush1.msra.mxu0 0.0
        %1739 = vmatprep.subr.mxu0 0.0
        %1740 = vmatpush1.msra.mxu0 0.0
        %1741 = vmatprep.subr.mxu0 0.0
        %1742 = vmatpush1.msra.mxu0 0.0
        %1743 = vmatprep.subr.mxu0 0.0
        %1744 = vmatpush1.msra.mxu0 0.0
        %1745 = vmatprep.subr.mxu0 0.0
        %1746 = vmatpush1.msra.mxu0 0.0
        %1747 = vmatprep.subr.mxu0 0.0
        %1748 = vmatpush1.msra.mxu0 0.0
        %1749 = vmatprep.subr.mxu0 0.0
        %1750 = vmatpush1.msra.mxu0 0.0
        %1751 = vmatprep.subr.mxu0 0.0
        %1752 = vmatpush1.msra.mxu0 0.0
        %1753 = vmatprep.subr.mxu0 0.0
        %1754 = vmatpush1.msra.mxu0 0.0
        %1755 = vmatprep.subr.mxu0 0.0
        %1756 = vmatpush1.msra.mxu0 0.0
        %1757 = vmatprep.subr.mxu0 0.0
        %1758 = vmatpush1.msra.mxu0 0.0
        %1759 = vmatprep.mubr.f32.mxu0 0.0
        %1760 = vmatmul.mubr.f32.gmra.mrb[0].mxu0 %v945
        %v1761 = vpop.f32.mrb[0].mxu0
        %v1762 = vadd.f32 %v1692, %v1761
        %v1763 = vpop.f32.mrb[0].mxu0
        %1764 = vdwg.mxu0
        %v1765 = vadd.f32 %v1762, %v1332
        %v1766 = vadd.f32 %v1762, %v1334
        %v1767 = vmul.f32 %v1336, %v1765
        %v1768 = vadd.f32 %v1338, %v1767
        %v1769 = vmul.f32 %v1340, %v1766
        %v1771 = vrot.slane %v1769, 1
        %v1773 = vadd.f32 %v1768, %v1771
        %v1775 = vrot.slane %v1766, 1
        %v1777 = vmul.f32 %v1765, %v1775
        %v1778 = vmul.f32 %v1350, %v1777
        %v1779 = vadd.f32 %v1773, %v1778
        %v1780 = vmul.f32 %v1765, %v1765
        %v1781 = vmul.f32 %v1354, %v1780
        %v1782 = vadd.f32 %v1779, %v1781
        %v1783 = vmul.f32 %v1766, %v1766
        %v1784 = vmul.f32 %v1358, %v1783
        %v1786 = vrot.slane %v1784, 1
        %v1788 = vadd.f32 %v1782, %v1786
        %v1789 = vmul.f32 %v1380, %v1380
        %v1790 = vmul.f32 %v1365, %v1380
        %v1791 = vadd.f32 %v1788, %v1790
        %v1792 = vmul.f32 %v1789, %v1380
        %v1793 = vmul.f32 %v1369, %v1792
        %v1794 = vadd.f32 %v1791, %v1793
        %1795 = vst [vmem:[%s340 + $0x1] sm:$0x1] %v1794
        %v1796 = vmul.f32 %v1373, %v1789
        %v1797 = vadd.f32 %v1365, %v1796
        %v1798 = vlog2.pop %v1797
        %v1799 = vmul.f32 %v1798, 0.6931472
        %1800 = vst [vmem:[%s347 + $0x1] sm:$0x1] %v1799
        %v1801 = vld [vmem:[%s351 + $0x2] sm:$0x1]
        %v1802 = vld [vmem:[%s355 + $0x2] sm:$0x1]
        %v1803 = vlaneseq
        %v1804 = vshrl.u32 %v1803, 7
        %v1805 = vsub.s32 0, %v1804
        %v1806 = vrot.slane %v1801, %v1805
        %v1807 = vmul.f32 %v418, %v1806
        %v1808 = vmul.f32 %v423, %v1806
        %v1809 = vmul.f32 %v428, %v1806
        %v1810 = vmul.f32 %v433, %v1806
        %v1811 = vmul.f32 %v438, %v1806
        %v1812 = vmul.f32 %v443, %v1806
        %v1813 = vmul.f32 %v448, %v1806
        %v1814 = vmul.f32 %v453, %v1806
        %v1815 = vmul.f32 %v458, %v1806
        %v1816 = vmul.f32 %v463, %v1806
        %v1817 = vmul.f32 %v468, %v1806
        %v1818 = vmul.f32 %v473, %v1806
        %v1819 = vmul.f32 %v478, %v1806
        %v1820 = vmul.f32 %v483, %v1806
        %v1821 = vmul.f32 %v488, %v1806
        %v1822 = vmul.f32 %v493, %v1806
        %v1823 = vmul.f32 %v498, %v1806
        %v1824 = vmul.f32 %v503, %v1806
        %v1825 = vmul.f32 %v508, %v1806
        %v1826 = vmul.f32 %v513, %v1806
        %v1827 = vmul.f32 %v518, %v1806
        %v1828 = vmul.f32 %v523, %v1806
        %v1829 = vmul.f32 %v528, %v1806
        %v1830 = vmul.f32 %v533, %v1806
        %v1831 = vmul.f32 %v538, %v1806
        %v1832 = vmul.f32 %v543, %v1806
        %v1833 = vmul.f32 %v548, %v1806
        %v1834 = vmul.f32 %v553, %v1806
        %v1835 = vmul.f32 %v558, %v1806
        %v1836 = vmul.f32 %v563, %v1806
        %v1837 = vmul.f32 %v568, %v1806
        %v1838 = vmul.f32 %v573, %v1806
        %v1839 = vmul.f32 %v578, %v1806
        %v1840 = vmul.f32 %v583, %v1806
        %v1841 = vmul.f32 %v588, %v1806
        %v1842 = vmul.f32 %v593, %v1806
        %v1843 = vmul.f32 %v598, %v1806
        %v1844 = vmul.f32 %v603, %v1806
        %v1845 = vmul.f32 %v608, %v1806
        %v1846 = vmul.f32 %v613, %v1806
        %v1847 = vmul.f32 %v618, %v1806
        %v1848 = vmul.f32 %v623, %v1806
        %v1849 = vmul.f32 %v628, %v1806
        %v1850 = vmul.f32 %v633, %v1806
        %v1851 = vmul.f32 %v638, %v1806
        %v1852 = vmul.f32 %v643, %v1806
        %v1853 = vmul.f32 %v648, %v1806
        %v1854 = vmul.f32 %v653, %v1806
        %v1855 = vadd.f32 %v1807, %v706
        %v1856 = vadd.f32 %v1808, %v711
        %v1857 = vadd.f32 %v1809, %v716
        %v1858 = vadd.f32 %v1810, %v721
        %v1859 = vadd.f32 %v1811, %v726
        %v1860 = vadd.f32 %v1812, %v731
        %v1861 = vadd.f32 %v1813, %v736
        %v1862 = vadd.f32 %v1814, %v741
        %v1863 = vadd.f32 %v1815, %v746
        %v1864 = vadd.f32 %v1816, %v751
        %v1865 = vadd.f32 %v1817, %v756
        %v1866 = vadd.f32 %v1818, %v761
        %v1867 = vadd.f32 %v1819, %v766
        %v1868 = vadd.f32 %v1820, %v771
        %v1869 = vadd.f32 %v1821, %v776
        %v1870 = vadd.f32 %v1822, %v781
        %v1871 = vadd.f32 %v1823, %v786
        %v1872 = vadd.f32 %v1824, %v791
        %v1873 = vadd.f32 %v1825, %v796
        %v1874 = vadd.f32 %v1826, %v801
        %v1875 = vadd.f32 %v1827, %v806
        %v1876 = vadd.f32 %v1828, %v811
        %v1877 = vadd.f32 %v1829, %v816
        %v1878 = vadd.f32 %v1830, %v821
        %v1879 = vadd.f32 %v1831, %v826
        %v1880 = vadd.f32 %v1832, %v831
        %v1881 = vadd.f32 %v1833, %v836
        %v1882 = vadd.f32 %v1834, %v841
        %v1883 = vadd.f32 %v1835, %v846
        %v1884 = vadd.f32 %v1836, %v851
        %v1885 = vadd.f32 %v1837, %v856
        %v1886 = vadd.f32 %v1838, %v861
        %v1887 = vadd.f32 %v1839, %v866
        %v1888 = vadd.f32 %v1840, %v871
        %v1889 = vadd.f32 %v1841, %v876
        %v1890 = vadd.f32 %v1842, %v881
        %v1891 = vadd.f32 %v1843, %v886
        %v1892 = vadd.f32 %v1844, %v891
        %v1893 = vadd.f32 %v1845, %v896
        %v1894 = vadd.f32 %v1846, %v901
        %v1895 = vadd.f32 %v1847, %v906
        %v1896 = vadd.f32 %v1848, %v911
        %v1897 = vadd.f32 %v1849, %v916
        %v1898 = vadd.f32 %v1850, %v921
        %v1899 = vadd.f32 %v1851, %v926
        %v1900 = vadd.f32 %v1852, %v931
        %v1901 = vadd.f32 %v1853, %v936
        %v1902 = vadd.f32 %v1854, %v941
        %vm1903 = vcmp.ge.f32.partialorder %v1855, 0.0
        %vm1904 = vcmp.ge.f32.partialorder %v1856, 0.0
        %vm1905 = vcmp.ge.f32.partialorder %v1857, 0.0
        %vm1906 = vcmp.ge.f32.partialorder %v1858, 0.0
        %vm1907 = vcmp.ge.f32.partialorder %v1859, 0.0
        %vm1908 = vcmp.ge.f32.partialorder %v1860, 0.0
        %vm1909 = vcmp.ge.f32.partialorder %v1861, 0.0
        %vm1910 = vcmp.ge.f32.partialorder %v1862, 0.0
        %vm1911 = vcmp.ge.f32.partialorder %v1863, 0.0
        %vm1912 = vcmp.ge.f32.partialorder %v1864, 0.0
        %vm1913 = vcmp.ge.f32.partialorder %v1865, 0.0
        %vm1914 = vcmp.ge.f32.partialorder %v1866, 0.0
        %vm1915 = vcmp.ge.f32.partialorder %v1867, 0.0
        %vm1916 = vcmp.ge.f32.partialorder %v1868, 0.0
        %vm1917 = vcmp.ge.f32.partialorder %v1869, 0.0
        %vm1918 = vcmp.ge.f32.partialorder %v1870, 0.0
        %vm1919 = vcmp.ge.f32.partialorder %v1871, 0.0
        %vm1920 = vcmp.ge.f32.partialorder %v1872, 0.0
        %vm1921 = vcmp.ge.f32.partialorder %v1873, 0.0
        %vm1922 = vcmp.ge.f32.partialorder %v1874, 0.0
        %vm1923 = vcmp.ge.f32.partialorder %v1875, 0.0
        %vm1924 = vcmp.ge.f32.partialorder %v1876, 0.0
        %vm1925 = vcmp.ge.f32.partialorder %v1877, 0.0
        %vm1926 = vcmp.ge.f32.partialorder %v1878, 0.0
        %vm1927 = vcmp.ge.f32.partialorder %v1879, 0.0
        %vm1928 = vcmp.ge.f32.partialorder %v1880, 0.0
        %vm1929 = vcmp.ge.f32.partialorder %v1881, 0.0
        %vm1930 = vcmp.ge.f32.partialorder %v1882, 0.0
        %vm1931 = vcmp.ge.f32.partialorder %v1883, 0.0
        %vm1932 = vcmp.ge.f32.partialorder %v1884, 0.0
        %vm1933 = vcmp.ge.f32.partialorder %v1885, 0.0
        %vm1934 = vcmp.ge.f32.partialorder %v1886, 0.0
        %vm1935 = vcmp.ge.f32.partialorder %v1887, 0.0
        %vm1936 = vcmp.ge.f32.partialorder %v1888, 0.0
        %vm1937 = vcmp.ge.f32.partialorder %v1889, 0.0
        %vm1938 = vcmp.ge.f32.partialorder %v1890, 0.0
        %vm1939 = vcmp.ge.f32.partialorder %v1891, 0.0
        %vm1940 = vcmp.ge.f32.partialorder %v1892, 0.0
        %vm1941 = vcmp.ge.f32.partialorder %v1893, 0.0
        %vm1942 = vcmp.ge.f32.partialorder %v1894, 0.0
        %vm1943 = vcmp.ge.f32.partialorder %v1895, 0.0
        %vm1944 = vcmp.ge.f32.partialorder %v1896, 0.0
        %vm1945 = vcmp.ge.f32.partialorder %v1897, 0.0
        %vm1946 = vcmp.ge.f32.partialorder %v1898, 0.0
        %vm1947 = vcmp.ge.f32.partialorder %v1899, 0.0
        %vm1948 = vcmp.ge.f32.partialorder %v1900, 0.0
        %vm1949 = vcmp.ge.f32.partialorder %v1901, 0.0
        %vm1950 = vcmp.ge.f32.partialorder %v1902, 0.0
        %v1951 = vmul.f32 %v1855, 0.01
        %v1952 = vmul.f32 %v1856, 0.01
        %v1953 = vmul.f32 %v1857, 0.01
        %v1954 = vmul.f32 %v1858, 0.01
        %v1955 = vmul.f32 %v1859, 0.01
        %v1956 = vmul.f32 %v1860, 0.01
        %v1957 = vmul.f32 %v1861, 0.01
        %v1958 = vmul.f32 %v1862, 0.01
        %v1959 = vmul.f32 %v1863, 0.01
        %v1960 = vmul.f32 %v1864, 0.01
        %v1961 = vmul.f32 %v1865, 0.01
        %v1962 = vmul.f32 %v1866, 0.01
        %v1963 = vmul.f32 %v1867, 0.01
        %v1964 = vmul.f32 %v1868, 0.01
        %v1965 = vmul.f32 %v1869, 0.01
        %v1966 = vmul.f32 %v1870, 0.01
        %v1967 = vmul.f32 %v1871, 0.01
        %v1968 = vmul.f32 %v1872, 0.01
        %v1969 = vmul.f32 %v1873, 0.01
        %v1970 = vmul.f32 %v1874, 0.01
        %v1971 = vmul.f32 %v1875, 0.01
        %v1972 = vmul.f32 %v1876, 0.01
        %v1973 = vmul.f32 %v1877, 0.01
        %v1974 = vmul.f32 %v1878, 0.01
        %v1975 = vmul.f32 %v1879, 0.01
        %v1976 = vmul.f32 %v1880, 0.01
        %v1977 = vmul.f32 %v1881, 0.01
        %v1978 = vmul.f32 %v1882, 0.01
        %v1979 = vmul.f32 %v1883, 0.01
        %v1980 = vmul.f32 %v1884, 0.01
        %v1981 = vmul.f32 %v1885, 0.01
        %v1982 = vmul.f32 %v1886, 0.01
        %v1983 = vmul.f32 %v1887, 0.01
        %v1984 = vmul.f32 %v1888, 0.01
        %v1985 = vmul.f32 %v1889, 0.01
        %v1986 = vmul.f32 %v1890, 0.01
        %v1987 = vmul.f32 %v1891, 0.01
        %v1988 = vmul.f32 %v1892, 0.01
        %v1989 = vmul.f32 %v1893, 0.01
        %v1990 = vmul.f32 %v1894, 0.01
        %v1991 = vmul.f32 %v1895, 0.01
        %v1992 = vmul.f32 %v1896, 0.01
        %v1993 = vmul.f32 %v1897, 0.01
        %v1994 = vmul.f32 %v1898, 0.01
        %v1995 = vmul.f32 %v1899, 0.01
        %v1996 = vmul.f32 %v1900, 0.01
        %v1997 = vmul.f32 %v1901, 0.01
        %v1998 = vmul.f32 %v1902, 0.01
        %v1999 = vsel %vm1903, %v1855, %v1951
        %v2000 = vsel %vm1904, %v1856, %v1952
        %v2001 = vsel %vm1905, %v1857, %v1953
        %v2002 = vsel %vm1906, %v1858, %v1954
        %v2003 = vsel %vm1907, %v1859, %v1955
        %v2004 = vsel %vm1908, %v1860, %v1956
        %v2005 = vsel %vm1909, %v1861, %v1957
        %v2006 = vsel %vm1910, %v1862, %v1958
        %v2007 = vsel %vm1911, %v1863, %v1959
        %v2008 = vsel %vm1912, %v1864, %v1960
        %v2009 = vsel %vm1913, %v1865, %v1961
        %v2010 = vsel %vm1914, %v1866, %v1962
        %v2011 = vsel %vm1915, %v1867, %v1963
        %v2012 = vsel %vm1916, %v1868, %v1964
        %v2013 = vsel %vm1917, %v1869, %v1965
        %v2014 = vsel %vm1918, %v1870, %v1966
        %v2015 = vsel %vm1919, %v1871, %v1967
        %v2016 = vsel %vm1920, %v1872, %v1968
        %v2017 = vsel %vm1921, %v1873, %v1969
        %v2018 = vsel %vm1922, %v1874, %v1970
        %v2019 = vsel %vm1923, %v1875, %v1971
        %v2020 = vsel %vm1924, %v1876, %v1972
        %v2021 = vsel %vm1925, %v1877, %v1973
        %v2022 = vsel %vm1926, %v1878, %v1974
        %v2023 = vsel %vm1927, %v1879, %v1975
        %v2024 = vsel %vm1928, %v1880, %v1976
        %v2025 = vsel %vm1929, %v1881, %v1977
        %v2026 = vsel %vm1930, %v1882, %v1978
        %v2027 = vsel %vm1931, %v1883, %v1979
        %v2028 = vsel %vm1932, %v1884, %v1980
        %v2029 = vsel %vm1933, %v1885, %v1981
        %v2030 = vsel %vm1934, %v1886, %v1982
        %v2031 = vsel %vm1935, %v1887, %v1983
        %v2032 = vsel %vm1936, %v1888, %v1984
        %v2033 = vsel %vm1937, %v1889, %v1985
        %v2034 = vsel %vm1938, %v1890, %v1986
        %v2035 = vsel %vm1939, %v1891, %v1987
        %v2036 = vsel %vm1940, %v1892, %v1988
        %v2037 = vsel %vm1941, %v1893, %v1989
        %v2038 = vsel %vm1942, %v1894, %v1990
        %v2039 = vsel %vm1943, %v1895, %v1991
        %v2040 = vsel %vm1944, %v1896, %v1992
        %v2041 = vsel %vm1945, %v1897, %v1993
        %v2042 = vsel %vm1946, %v1898, %v1994
        %v2043 = vsel %vm1947, %v1899, %v1995
        %v2044 = vsel %vm1948, %v1900, %v1996
        %v2045 = vsel %vm1949, %v1901, %v1997
        %v2046 = vsel %vm1950, %v1902, %v1998
        %2047 = vmatprep.subr.mxu0 0.0
        %2048 = vmatpush1.msra.mxu0 %v1999
        %2049 = vmatprep.subr.mxu0 0.0
        %2050 = vmatpush1.msra.mxu0 %v2000
        %2051 = vmatprep.subr.mxu0 0.0
        %2052 = vmatpush1.msra.mxu0 %v2001
        %2053 = vmatprep.subr.mxu0 0.0
        %2054 = vmatpush1.msra.mxu0 %v2002
        %2055 = vmatprep.subr.mxu0 0.0
        %2056 = vmatpush1.msra.mxu0 %v2003
        %2057 = vmatprep.subr.mxu0 0.0
        %2058 = vmatpush1.msra.mxu0 %v2004
        %2059 = vmatprep.subr.mxu0 0.0
        %2060 = vmatpush1.msra.mxu0 %v2005
        %2061 = vmatprep.subr.mxu0 0.0
        %2062 = vmatpush1.msra.mxu0 %v2006
        %2063 = vmatprep.subr.mxu0 0.0
        %2064 = vmatpush1.msra.mxu0 %v2007
        %2065 = vmatprep.subr.mxu0 0.0
        %2066 = vmatpush1.msra.mxu0 %v2008
        %2067 = vmatprep.subr.mxu0 0.0
        %2068 = vmatpush1.msra.mxu0 %v2009
        %2069 = vmatprep.subr.mxu0 0.0
        %2070 = vmatpush1.msra.mxu0 %v2010
        %2071 = vmatprep.subr.mxu0 0.0
        %2072 = vmatpush1.msra.mxu0 %v2011
        %2073 = vmatprep.subr.mxu0 0.0
        %2074 = vmatpush1.msra.mxu0 %v2012
        %2075 = vmatprep.subr.mxu0 0.0
        %2076 = vmatpush1.msra.mxu0 %v2013
        %2077 = vmatprep.subr.mxu0 0.0
        %2078 = vmatpush1.msra.mxu0 %v2014
        %2079 = vmatprep.subr.mxu0 0.0
        %2080 = vmatpush1.msra.mxu0 %v2015
        %2081 = vmatprep.subr.mxu0 0.0
        %2082 = vmatpush1.msra.mxu0 %v2016
        %2083 = vmatprep.subr.mxu0 0.0
        %2084 = vmatpush1.msra.mxu0 %v2017
        %2085 = vmatprep.subr.mxu0 0.0
        %2086 = vmatpush1.msra.mxu0 %v2018
        %2087 = vmatprep.subr.mxu0 0.0
        %2088 = vmatpush1.msra.mxu0 %v2019
        %2089 = vmatprep.subr.mxu0 0.0
        %2090 = vmatpush1.msra.mxu0 %v2020
        %2091 = vmatprep.subr.mxu0 0.0
        %2092 = vmatpush1.msra.mxu0 %v2021
        %2093 = vmatprep.subr.mxu0 0.0
        %2094 = vmatpush1.msra.mxu0 %v2022
        %2095 = vmatprep.subr.mxu0 0.0
        %2096 = vmatpush1.msra.mxu0 %v2023
        %2097 = vmatprep.subr.mxu0 0.0
        %2098 = vmatpush1.msra.mxu0 %v2024
        %2099 = vmatprep.subr.mxu0 0.0
        %2100 = vmatpush1.msra.mxu0 %v2025
        %2101 = vmatprep.subr.mxu0 0.0
        %2102 = vmatpush1.msra.mxu0 %v2026
        %2103 = vmatprep.subr.mxu0 0.0
        %2104 = vmatpush1.msra.mxu0 %v2027
        %2105 = vmatprep.subr.mxu0 0.0
        %2106 = vmatpush1.msra.mxu0 %v2028
        %2107 = vmatprep.subr.mxu0 0.0
        %2108 = vmatpush1.msra.mxu0 %v2029
        %2109 = vmatprep.subr.mxu0 0.0
        %2110 = vmatpush1.msra.mxu0 %v2030
        %2111 = vmatprep.mubr.f32.mxu0 %v944
        %2112 = vmatmul.mubr.f32.gmra.mrb[0].mxu0 %v943
        %v2113 = vpop.f32.mrb[0].mxu0
        %v2114 = vadd.f32 0.0, %v2113
        %v2115 = vpop.f32.mrb[0].mxu0
        %2116 = vdwg.mxu0
        %2117 = vmatprep.subr.mxu0 0.0
        %2118 = vmatpush1.msra.mxu0 %v2031
        %2119 = vmatprep.subr.mxu0 0.0
        %2120 = vmatpush1.msra.mxu0 %v2032
        %2121 = vmatprep.subr.mxu0 0.0
        %2122 = vmatpush1.msra.mxu0 %v2033
        %2123 = vmatprep.subr.mxu0 0.0
        %2124 = vmatpush1.msra.mxu0 %v2034
        %2125 = vmatprep.subr.mxu0 0.0
        %2126 = vmatpush1.msra.mxu0 %v2035
        %2127 = vmatprep.subr.mxu0 0.0
        %2128 = vmatpush1.msra.mxu0 %v2036
        %2129 = vmatprep.subr.mxu0 0.0
        %2130 = vmatpush1.msra.mxu0 %v2037
        %2131 = vmatprep.subr.mxu0 0.0
        %2132 = vmatpush1.msra.mxu0 %v2038
        %2133 = vmatprep.subr.mxu0 0.0
        %2134 = vmatpush1.msra.mxu0 %v2039
        %2135 = vmatprep.subr.mxu0 0.0
        %2136 = vmatpush1.msra.mxu0 %v2040
        %2137 = vmatprep.subr.mxu0 0.0
        %2138 = vmatpush1.msra.mxu0 %v2041
        %2139 = vmatprep.subr.mxu0 0.0
        %2140 = vmatpush1.msra.mxu0 %v2042
        %2141 = vmatprep.subr.mxu0 0.0
        %2142 = vmatpush1.msra.mxu0 %v2043
        %2143 = vmatprep.subr.mxu0 0.0
        %2144 = vmatpush1.msra.mxu0 %v2044
        %2145 = vmatprep.subr.mxu0 0.0
        %2146 = vmatpush1.msra.mxu0 %v2045
        %2147 = vmatprep.subr.mxu0 0.0
        %2148 = vmatpush1.msra.mxu0 %v2046
        %2149 = vmatprep.subr.mxu0 0.0
        %2150 = vmatpush1.msra.mxu0 0.0
        %2151 = vmatprep.subr.mxu0 0.0
        %2152 = vmatpush1.msra.mxu0 0.0
        %2153 = vmatprep.subr.mxu0 0.0
        %2154 = vmatpush1.msra.mxu0 0.0
        %2155 = vmatprep.subr.mxu0 0.0
        %2156 = vmatpush1.msra.mxu0 0.0
        %2157 = vmatprep.subr.mxu0 0.0
        %2158 = vmatpush1.msra.mxu0 0.0
        %2159 = vmatprep.subr.mxu0 0.0
        %2160 = vmatpush1.msra.mxu0 0.0
        %2161 = vmatprep.subr.mxu0 0.0
        %2162 = vmatpush1.msra.mxu0 0.0
        %2163 = vmatprep.subr.mxu0 0.0
        %2164 = vmatpush1.msra.mxu0 0.0
        %2165 = vmatprep.subr.mxu0 0.0
        %2166 = vmatpush1.msra.mxu0 0.0
        %2167 = vmatprep.subr.mxu0 0.0
        %2168 = vmatpush1.msra.mxu0 0.0
        %2169 = vmatprep.subr.mxu0 0.0
        %2170 = vmatpush1.msra.mxu0 0.0
        %2171 = vmatprep.subr.mxu0 0.0
        %2172 = vmatpush1.msra.mxu0 0.0
        %2173 = vmatprep.subr.mxu0 0.0
        %2174 = vmatpush1.msra.mxu0 0.0
        %2175 = vmatprep.subr.mxu0 0.0
        %2176 = vmatpush1.msra.mxu0 0.0
        %2177 = vmatprep.subr.mxu0 0.0
        %2178 = vmatpush1.msra.mxu0 0.0
        %2179 = vmatprep.subr.mxu0 0.0
        %2180 = vmatpush1.msra.mxu0 0.0
        %2181 = vmatprep.mubr.f32.mxu0 0.0
        %2182 = vmatmul.mubr.f32.gmra.mrb[0].mxu0 %v945
        %v2183 = vpop.f32.mrb[0].mxu0
        %v2184 = vadd.f32 %v2114, %v2183
        %v2185 = vpop.f32.mrb[0].mxu0
        %2186 = vdwg.mxu0
        %v2187 = vadd.f32 %v2184, %v1332
        %v2188 = vadd.f32 %v2184, %v1334
        %v2189 = vmul.f32 %v1336, %v2187
        %v2190 = vadd.f32 %v1338, %v2189
        %v2191 = vmul.f32 %v1340, %v2188
        %v2193 = vrot.slane %v2191, 1
        %v2195 = vadd.f32 %v2190, %v2193
        %v2197 = vrot.slane %v2188, 1
        %v2199 = vmul.f32 %v2187, %v2197
        %v2200 = vmul.f32 %v1350, %v2199
        %v2201 = vadd.f32 %v2195, %v2200
        %v2202 = vmul.f32 %v2187, %v2187
        %v2203 = vmul.f32 %v1354, %v2202
        %v2204 = vadd.f32 %v2201, %v2203
        %v2205 = vmul.f32 %v2188, %v2188
        %v2206 = vmul.f32 %v1358, %v2205
        %v2208 = vrot.slane %v2206, 1
        %v2210 = vadd.f32 %v2204, %v2208
        %v2211 = vmul.f32 %v1802, %v1802
        %v2212 = vmul.f32 %v1365, %v1802
        %v2213 = vadd.f32 %v2210, %v2212
        %v2214 = vmul.f32 %v2211, %v1802
        %v2215 = vmul.f32 %v1369, %v2214
        %v2216 = vadd.f32 %v2213, %v2215
        %2217 = vst [vmem:[%s340 + $0x2] sm:$0x1] %v2216
        %v2218 = vmul.f32 %v1373, %v2211
        %v2219 = vadd.f32 %v1365, %v2218
        %v2220 = vlog2.pop %v2219
        %v2221 = vmul.f32 %v2220, 0.6931472
        %2222 = vst [vmem:[%s347 + $0x2] sm:$0x1] %v2221
        %v2223 = vld [vmem:[%s351 + $0x3] sm:$0x1]
        %v2224 = vld [vmem:[%s355 + $0x3] sm:$0x1]
        %v2225 = vlaneseq
        %v2226 = vshrl.u32 %v2225, 7
        %v2227 = vsub.s32 0, %v2226
        %v2228 = vrot.slane %v2223, %v2227
        %v2229 = vmul.f32 %v418, %v2228
        %v2230 = vmul.f32 %v423, %v2228
        %v2231 = vmul.f32 %v428, %v2228
        %v2232 = vmul.f32 %v433, %v2228
        %v2233 = vmul.f32 %v438, %v2228
        %v2234 = vmul.f32 %v443, %v2228
        %v2235 = vmul.f32 %v448, %v2228
        %v2236 = vmul.f32 %v453, %v2228
        %v2237 = vmul.f32 %v458, %v2228
        %v2238 = vmul.f32 %v463, %v2228
        %v2239 = vmul.f32 %v468, %v2228
        %v2240 = vmul.f32 %v473, %v2228
        %v2241 = vmul.f32 %v478, %v2228
        %v2242 = vmul.f32 %v483, %v2228
        %v2243 = vmul.f32 %v488, %v2228
        %v2244 = vmul.f32 %v493, %v2228
        %v2245 = vmul.f32 %v498, %v2228
        %v2246 = vmul.f32 %v503, %v2228
        %v2247 = vmul.f32 %v508, %v2228
        %v2248 = vmul.f32 %v513, %v2228
        %v2249 = vmul.f32 %v518, %v2228
        %v2250 = vmul.f32 %v523, %v2228
        %v2251 = vmul.f32 %v528, %v2228
        %v2252 = vmul.f32 %v533, %v2228
        %v2253 = vmul.f32 %v538, %v2228
        %v2254 = vmul.f32 %v543, %v2228
        %v2255 = vmul.f32 %v548, %v2228
        %v2256 = vmul.f32 %v553, %v2228
        %v2257 = vmul.f32 %v558, %v2228
        %v2258 = vmul.f32 %v563, %v2228
        %v2259 = vmul.f32 %v568, %v2228
        %v2260 = vmul.f32 %v573, %v2228
        %v2261 = vmul.f32 %v578, %v2228
        %v2262 = vmul.f32 %v583, %v2228
        %v2263 = vmul.f32 %v588, %v2228
        %v2264 = vmul.f32 %v593, %v2228
        %v2265 = vmul.f32 %v598, %v2228
        %v2266 = vmul.f32 %v603, %v2228
        %v2267 = vmul.f32 %v608, %v2228
        %v2268 = vmul.f32 %v613, %v2228
        %v2269 = vmul.f32 %v618, %v2228
        %v2270 = vmul.f32 %v623, %v2228
        %v2271 = vmul.f32 %v628, %v2228
        %v2272 = vmul.f32 %v633, %v2228
        %v2273 = vmul.f32 %v638, %v2228
        %v2274 = vmul.f32 %v643, %v2228
        %v2275 = vmul.f32 %v648, %v2228
        %v2276 = vmul.f32 %v653, %v2228
        %v2277 = vadd.f32 %v2229, %v706
        %v2278 = vadd.f32 %v2230, %v711
        %v2279 = vadd.f32 %v2231, %v716
        %v2280 = vadd.f32 %v2232, %v721
        %v2281 = vadd.f32 %v2233, %v726
        %v2282 = vadd.f32 %v2234, %v731
        %v2283 = vadd.f32 %v2235, %v736
        %v2284 = vadd.f32 %v2236, %v741
        %v2285 = vadd.f32 %v2237, %v746
        %v2286 = vadd.f32 %v2238, %v751
        %v2287 = vadd.f32 %v2239, %v756
        %v2288 = vadd.f32 %v2240, %v761
        %v2289 = vadd.f32 %v2241, %v766
        %v2290 = vadd.f32 %v2242, %v771
        %v2291 = vadd.f32 %v2243, %v776
        %v2292 = vadd.f32 %v2244, %v781
        %v2293 = vadd.f32 %v2245, %v786
        %v2294 = vadd.f32 %v2246, %v791
        %v2295 = vadd.f32 %v2247, %v796
        %v2296 = vadd.f32 %v2248, %v801
        %v2297 = vadd.f32 %v2249, %v806
        %v2298 = vadd.f32 %v2250, %v811
        %v2299 = vadd.f32 %v2251, %v816
        %v2300 = vadd.f32 %v2252, %v821
        %v2301 = vadd.f32 %v2253, %v826
        %v2302 = vadd.f32 %v2254, %v831
        %v2303 = vadd.f32 %v2255, %v836
        %v2304 = vadd.f32 %v2256, %v841
        %v2305 = vadd.f32 %v2257, %v846
        %v2306 = vadd.f32 %v2258, %v851
        %v2307 = vadd.f32 %v2259, %v856
        %v2308 = vadd.f32 %v2260, %v861
        %v2309 = vadd.f32 %v2261, %v866
        %v2310 = vadd.f32 %v2262, %v871
        %v2311 = vadd.f32 %v2263, %v876
        %v2312 = vadd.f32 %v2264, %v881
        %v2313 = vadd.f32 %v2265, %v886
        %v2314 = vadd.f32 %v2266, %v891
        %v2315 = vadd.f32 %v2267, %v896
        %v2316 = vadd.f32 %v2268, %v901
        %v2317 = vadd.f32 %v2269, %v906
        %v2318 = vadd.f32 %v2270, %v911
        %v2319 = vadd.f32 %v2271, %v916
        %v2320 = vadd.f32 %v2272, %v921
        %v2321 = vadd.f32 %v2273, %v926
        %v2322 = vadd.f32 %v2274, %v931
        %v2323 = vadd.f32 %v2275, %v936
        %v2324 = vadd.f32 %v2276, %v941
        %vm2325 = vcmp.ge.f32.partialorder %v2277, 0.0
        %vm2326 = vcmp.ge.f32.partialorder %v2278, 0.0
        %vm2327 = vcmp.ge.f32.partialorder %v2279, 0.0
        %vm2328 = vcmp.ge.f32.partialorder %v2280, 0.0
        %vm2329 = vcmp.ge.f32.partialorder %v2281, 0.0
        %vm2330 = vcmp.ge.f32.partialorder %v2282, 0.0
        %vm2331 = vcmp.ge.f32.partialorder %v2283, 0.0
        %vm2332 = vcmp.ge.f32.partialorder %v2284, 0.0
        %vm2333 = vcmp.ge.f32.partialorder %v2285, 0.0
        %vm2334 = vcmp.ge.f32.partialorder %v2286, 0.0
        %vm2335 = vcmp.ge.f32.partialorder %v2287, 0.0
        %vm2336 = vcmp.ge.f32.partialorder %v2288, 0.0
        %vm2337 = vcmp.ge.f32.partialorder %v2289, 0.0
        %vm2338 = vcmp.ge.f32.partialorder %v2290, 0.0
        %vm2339 = vcmp.ge.f32.partialorder %v2291, 0.0
        %vm2340 = vcmp.ge.f32.partialorder %v2292, 0.0
        %vm2341 = vcmp.ge.f32.partialorder %v2293, 0.0
        %vm2342 = vcmp.ge.f32.partialorder %v2294, 0.0
        %vm2343 = vcmp.ge.f32.partialorder %v2295, 0.0
        %vm2344 = vcmp.ge.f32.partialorder %v2296, 0.0
        %vm2345 = vcmp.ge.f32.partialorder %v2297, 0.0
        %vm2346 = vcmp.ge.f32.partialorder %v2298, 0.0
        %vm2347 = vcmp.ge.f32.partialorder %v2299, 0.0
        %vm2348 = vcmp.ge.f32.partialorder %v2300, 0.0
        %vm2349 = vcmp.ge.f32.partialorder %v2301, 0.0
        %vm2350 = vcmp.ge.f32.partialorder %v2302, 0.0
        %vm2351 = vcmp.ge.f32.partialorder %v2303, 0.0
        %vm2352 = vcmp.ge.f32.partialorder %v2304, 0.0
        %vm2353 = vcmp.ge.f32.partialorder %v2305, 0.0
        %vm2354 = vcmp.ge.f32.partialorder %v2306, 0.0
        %vm2355 = vcmp.ge.f32.partialorder %v2307, 0.0
        %vm2356 = vcmp.ge.f32.partialorder %v2308, 0.0
        %vm2357 = vcmp.ge.f32.partialorder %v2309, 0.0
        %vm2358 = vcmp.ge.f32.partialorder %v2310, 0.0
        %vm2359 = vcmp.ge.f32.partialorder %v2311, 0.0
        %vm2360 = vcmp.ge.f32.partialorder %v2312, 0.0
        %vm2361 = vcmp.ge.f32.partialorder %v2313, 0.0
        %vm2362 = vcmp.ge.f32.partialorder %v2314, 0.0
        %vm2363 = vcmp.ge.f32.partialorder %v2315, 0.0
        %vm2364 = vcmp.ge.f32.partialorder %v2316, 0.0
        %vm2365 = vcmp.ge.f32.partialorder %v2317, 0.0
        %vm2366 = vcmp.ge.f32.partialorder %v2318, 0.0
        %vm2367 = vcmp.ge.f32.partialorder %v2319, 0.0
        %vm2368 = vcmp.ge.f32.partialorder %v2320, 0.0
        %vm2369 = vcmp.ge.f32.partialorder %v2321, 0.0
        %vm2370 = vcmp.ge.f32.partialorder %v2322, 0.0
        %vm2371 = vcmp.ge.f32.partialorder %v2323, 0.0
        %vm2372 = vcmp.ge.f32.partialorder %v2324, 0.0
        %v2373 = vmul.f32 %v2277, 0.01
        %v2374 = vmul.f32 %v2278, 0.01
        %v2375 = vmul.f32 %v2279, 0.01
        %v2376 = vmul.f32 %v2280, 0.01
        %v2377 = vmul.f32 %v2281, 0.01
        %v2378 = vmul.f32 %v2282, 0.01
        %v2379 = vmul.f32 %v2283, 0.01
        %v2380 = vmul.f32 %v2284, 0.01
        %v2381 = vmul.f32 %v2285, 0.01
        %v2382 = vmul.f32 %v2286, 0.01
        %v2383 = vmul.f32 %v2287, 0.01
        %v2384 = vmul.f32 %v2288, 0.01
        %v2385 = vmul.f32 %v2289, 0.01
        %v2386 = vmul.f32 %v2290, 0.01
        %v2387 = vmul.f32 %v2291, 0.01
        %v2388 = vmul.f32 %v2292, 0.01
        %v2389 = vmul.f32 %v2293, 0.01
        %v2390 = vmul.f32 %v2294, 0.01
        %v2391 = vmul.f32 %v2295, 0.01
        %v2392 = vmul.f32 %v2296, 0.01
        %v2393 = vmul.f32 %v2297, 0.01
        %v2394 = vmul.f32 %v2298, 0.01
        %v2395 = vmul.f32 %v2299, 0.01
        %v2396 = vmul.f32 %v2300, 0.01
        %v2397 = vmul.f32 %v2301, 0.01
        %v2398 = vmul.f32 %v2302, 0.01
        %v2399 = vmul.f32 %v2303, 0.01
        %v2400 = vmul.f32 %v2304, 0.01
        %v2401 = vmul.f32 %v2305, 0.01
        %v2402 = vmul.f32 %v2306, 0.01
        %v2403 = vmul.f32 %v2307, 0.01
        %v2404 = vmul.f32 %v2308, 0.01
        %v2405 = vmul.f32 %v2309, 0.01
        %v2406 = vmul.f32 %v2310, 0.01
        %v2407 = vmul.f32 %v2311, 0.01
        %v2408 = vmul.f32 %v2312, 0.01
        %v2409 = vmul.f32 %v2313, 0.01
        %v2410 = vmul.f32 %v2314, 0.01
        %v2411 = vmul.f32 %v2315, 0.01
        %v2412 = vmul.f32 %v2316, 0.01
        %v2413 = vmul.f32 %v2317, 0.01
        %v2414 = vmul.f32 %v2318, 0.01
        %v2415 = vmul.f32 %v2319, 0.01
        %v2416 = vmul.f32 %v2320, 0.01
        %v2417 = vmul.f32 %v2321, 0.01
        %v2418 = vmul.f32 %v2322, 0.01
        %v2419 = vmul.f32 %v2323, 0.01
        %v2420 = vmul.f32 %v2324, 0.01
        %v2421 = vsel %vm2325, %v2277, %v2373
        %v2422 = vsel %vm2326, %v2278, %v2374
        %v2423 = vsel %vm2327, %v2279, %v2375
        %v2424 = vsel %vm2328, %v2280, %v2376
        %v2425 = vsel %vm2329, %v2281, %v2377
        %v2426 = vsel %vm2330, %v2282, %v2378
        %v2427 = vsel %vm2331, %v2283, %v2379
        %v2428 = vsel %vm2332, %v2284, %v2380
        %v2429 = vsel %vm2333, %v2285, %v2381
        %v2430 = vsel %vm2334, %v2286, %v2382
        %v2431 = vsel %vm2335, %v2287, %v2383
        %v2432 = vsel %vm2336, %v2288, %v2384
        %v2433 = vsel %vm2337, %v2289, %v2385
        %v2434 = vsel %vm2338, %v2290, %v2386
        %v2435 = vsel %vm2339, %v2291, %v2387
        %v2436 = vsel %vm2340, %v2292, %v2388
        %v2437 = vsel %vm2341, %v2293, %v2389
        %v2438 = vsel %vm2342, %v2294, %v2390
        %v2439 = vsel %vm2343, %v2295, %v2391
        %v2440 = vsel %vm2344, %v2296, %v2392
        %v2441 = vsel %vm2345, %v2297, %v2393
        %v2442 = vsel %vm2346, %v2298, %v2394
        %v2443 = vsel %vm2347, %v2299, %v2395
        %v2444 = vsel %vm2348, %v2300, %v2396
        %v2445 = vsel %vm2349, %v2301, %v2397
        %v2446 = vsel %vm2350, %v2302, %v2398
        %v2447 = vsel %vm2351, %v2303, %v2399
        %v2448 = vsel %vm2352, %v2304, %v2400
        %v2449 = vsel %vm2353, %v2305, %v2401
        %v2450 = vsel %vm2354, %v2306, %v2402
        %v2451 = vsel %vm2355, %v2307, %v2403
        %v2452 = vsel %vm2356, %v2308, %v2404
        %v2453 = vsel %vm2357, %v2309, %v2405
        %v2454 = vsel %vm2358, %v2310, %v2406
        %v2455 = vsel %vm2359, %v2311, %v2407
        %v2456 = vsel %vm2360, %v2312, %v2408
        %v2457 = vsel %vm2361, %v2313, %v2409
        %v2458 = vsel %vm2362, %v2314, %v2410
        %v2459 = vsel %vm2363, %v2315, %v2411
        %v2460 = vsel %vm2364, %v2316, %v2412
        %v2461 = vsel %vm2365, %v2317, %v2413
        %v2462 = vsel %vm2366, %v2318, %v2414
        %v2463 = vsel %vm2367, %v2319, %v2415
        %v2464 = vsel %vm2368, %v2320, %v2416
        %v2465 = vsel %vm2369, %v2321, %v2417
        %v2466 = vsel %vm2370, %v2322, %v2418
        %v2467 = vsel %vm2371, %v2323, %v2419
        %v2468 = vsel %vm2372, %v2324, %v2420
        %2469 = vmatprep.subr.mxu0 0.0
        %2470 = vmatpush1.msra.mxu0 %v2421
        %2471 = vmatprep.subr.mxu0 0.0
        %2472 = vmatpush1.msra.mxu0 %v2422
        %2473 = vmatprep.subr.mxu0 0.0
        %2474 = vmatpush1.msra.mxu0 %v2423
        %2475 = vmatprep.subr.mxu0 0.0
        %2476 = vmatpush1.msra.mxu0 %v2424
        %2477 = vmatprep.subr.mxu0 0.0
        %2478 = vmatpush1.msra.mxu0 %v2425
        %2479 = vmatprep.subr.mxu0 0.0
        %2480 = vmatpush1.msra.mxu0 %v2426
        %2481 = vmatprep.subr.mxu0 0.0
        %2482 = vmatpush1.msra.mxu0 %v2427
        %2483 = vmatprep.subr.mxu0 0.0
        %2484 = vmatpush1.msra.mxu0 %v2428
        %2485 = vmatprep.subr.mxu0 0.0
        %2486 = vmatpush1.msra.mxu0 %v2429
        %2487 = vmatprep.subr.mxu0 0.0
        %2488 = vmatpush1.msra.mxu0 %v2430
        %2489 = vmatprep.subr.mxu0 0.0
        %2490 = vmatpush1.msra.mxu0 %v2431
        %2491 = vmatprep.subr.mxu0 0.0
        %2492 = vmatpush1.msra.mxu0 %v2432
        %2493 = vmatprep.subr.mxu0 0.0
        %2494 = vmatpush1.msra.mxu0 %v2433
        %2495 = vmatprep.subr.mxu0 0.0
        %2496 = vmatpush1.msra.mxu0 %v2434
        %2497 = vmatprep.subr.mxu0 0.0
        %2498 = vmatpush1.msra.mxu0 %v2435
        %2499 = vmatprep.subr.mxu0 0.0
        %2500 = vmatpush1.msra.mxu0 %v2436
        %2501 = vmatprep.subr.mxu0 0.0
        %2502 = vmatpush1.msra.mxu0 %v2437
        %2503 = vmatprep.subr.mxu0 0.0
        %2504 = vmatpush1.msra.mxu0 %v2438
        %2505 = vmatprep.subr.mxu0 0.0
        %2506 = vmatpush1.msra.mxu0 %v2439
        %2507 = vmatprep.subr.mxu0 0.0
        %2508 = vmatpush1.msra.mxu0 %v2440
        %2509 = vmatprep.subr.mxu0 0.0
        %2510 = vmatpush1.msra.mxu0 %v2441
        %2511 = vmatprep.subr.mxu0 0.0
        %2512 = vmatpush1.msra.mxu0 %v2442
        %2513 = vmatprep.subr.mxu0 0.0
        %2514 = vmatpush1.msra.mxu0 %v2443
        %2515 = vmatprep.subr.mxu0 0.0
        %2516 = vmatpush1.msra.mxu0 %v2444
        %2517 = vmatprep.subr.mxu0 0.0
        %2518 = vmatpush1.msra.mxu0 %v2445
        %2519 = vmatprep.subr.mxu0 0.0
        %2520 = vmatpush1.msra.mxu0 %v2446
        %2521 = vmatprep.subr.mxu0 0.0
        %2522 = vmatpush1.msra.mxu0 %v2447
        %2523 = vmatprep.subr.mxu0 0.0
        %2524 = vmatpush1.msra.mxu0 %v2448
        %2525 = vmatprep.subr.mxu0 0.0
        %2526 = vmatpush1.msra.mxu0 %v2449
        %2527 = vmatprep.subr.mxu0 0.0
        %2528 = vmatpush1.msra.mxu0 %v2450
        %2529 = vmatprep.subr.mxu0 0.0
        %2530 = vmatpush1.msra.mxu0 %v2451
        %2531 = vmatprep.subr.mxu0 0.0
        %2532 = vmatpush1.msra.mxu0 %v2452
        %2533 = vmatprep.mubr.f32.mxu0 %v944
        %2534 = vmatmul.mubr.f32.gmra.mrb[0].mxu0 %v943
        %v2535 = vpop.f32.mrb[0].mxu0
        %v2536 = vadd.f32 0.0, %v2535
        %v2537 = vpop.f32.mrb[0].mxu0
        %2538 = vdwg.mxu0
        %2539 = vmatprep.subr.mxu0 0.0
        %2540 = vmatpush1.msra.mxu0 %v2453
        %2541 = vmatprep.subr.mxu0 0.0
        %2542 = vmatpush1.msra.mxu0 %v2454
        %2543 = vmatprep.subr.mxu0 0.0
        %2544 = vmatpush1.msra.mxu0 %v2455
        %2545 = vmatprep.subr.mxu0 0.0
        %2546 = vmatpush1.msra.mxu0 %v2456
        %2547 = vmatprep.subr.mxu0 0.0
        %2548 = vmatpush1.msra.mxu0 %v2457
        %2549 = vmatprep.subr.mxu0 0.0
        %2550 = vmatpush1.msra.mxu0 %v2458
        %2551 = vmatprep.subr.mxu0 0.0
        %2552 = vmatpush1.msra.mxu0 %v2459
        %2553 = vmatprep.subr.mxu0 0.0
        %2554 = vmatpush1.msra.mxu0 %v2460
        %2555 = vmatprep.subr.mxu0 0.0
        %2556 = vmatpush1.msra.mxu0 %v2461
        %2557 = vmatprep.subr.mxu0 0.0
        %2558 = vmatpush1.msra.mxu0 %v2462
        %2559 = vmatprep.subr.mxu0 0.0
        %2560 = vmatpush1.msra.mxu0 %v2463
        %2561 = vmatprep.subr.mxu0 0.0
        %2562 = vmatpush1.msra.mxu0 %v2464
        %2563 = vmatprep.subr.mxu0 0.0
        %2564 = vmatpush1.msra.mxu0 %v2465
        %2565 = vmatprep.subr.mxu0 0.0
        %2566 = vmatpush1.msra.mxu0 %v2466
        %2567 = vmatprep.subr.mxu0 0.0
        %2568 = vmatpush1.msra.mxu0 %v2467
        %2569 = vmatprep.subr.mxu0 0.0
        %2570 = vmatpush1.msra.mxu0 %v2468
        %2571 = vmatprep.subr.mxu0 0.0
        %2572 = vmatpush1.msra.mxu0 0.0
        %2573 = vmatprep.subr.mxu0 0.0
        %2574 = vmatpush1.msra.mxu0 0.0
        %2575 = vmatprep.subr.mxu0 0.0
        %2576 = vmatpush1.msra.mxu0 0.0
        %2577 = vmatprep.subr.mxu0 0.0
        %2578 = vmatpush1.msra.mxu0 0.0
        %2579 = vmatprep.subr.mxu0 0.0
        %2580 = vmatpush1.msra.mxu0 0.0
        %2581 = vmatprep.subr.mxu0 0.0
        %2582 = vmatpush1.msra.mxu0 0.0
        %2583 = vmatprep.subr.mxu0 0.0
        %2584 = vmatpush1.msra.mxu0 0.0
        %2585 = vmatprep.subr.mxu0 0.0
        %2586 = vmatpush1.msra.mxu0 0.0
        %2587 = vmatprep.subr.mxu0 0.0
        %2588 = vmatpush1.msra.mxu0 0.0
        %2589 = vmatprep.subr.mxu0 0.0
        %2590 = vmatpush1.msra.mxu0 0.0
        %2591 = vmatprep.subr.mxu0 0.0
        %2592 = vmatpush1.msra.mxu0 0.0
        %2593 = vmatprep.subr.mxu0 0.0
        %2594 = vmatpush1.msra.mxu0 0.0
        %2595 = vmatprep.subr.mxu0 0.0
        %2596 = vmatpush1.msra.mxu0 0.0
        %2597 = vmatprep.subr.mxu0 0.0
        %2598 = vmatpush1.msra.mxu0 0.0
        %2599 = vmatprep.subr.mxu0 0.0
        %2600 = vmatpush1.msra.mxu0 0.0
        %2601 = vmatprep.subr.mxu0 0.0
        %2602 = vmatpush1.msra.mxu0 0.0
        %2603 = vmatprep.mubr.f32.mxu0 0.0
        %2604 = vmatmul.mubr.f32.gmra.mrb[0].mxu0 %v945
        %v2605 = vpop.f32.mrb[0].mxu0
        %v2606 = vadd.f32 %v2536, %v2605
        %v2607 = vpop.f32.mrb[0].mxu0
        %2608 = vdwg.mxu0
        %v2609 = vadd.f32 %v2606, %v1332
        %v2610 = vadd.f32 %v2606, %v1334
        %v2611 = vmul.f32 %v1336, %v2609
        %v2612 = vadd.f32 %v1338, %v2611
        %v2613 = vmul.f32 %v1340, %v2610
        %v2615 = vrot.slane %v2613, 1
        %v2617 = vadd.f32 %v2612, %v2615
        %v2619 = vrot.slane %v2610, 1
        %v2621 = vmul.f32 %v2609, %v2619
        %v2622 = vmul.f32 %v1350, %v2621
        %v2623 = vadd.f32 %v2617, %v2622
        %v2624 = vmul.f32 %v2609, %v2609
        %v2625 = vmul.f32 %v1354, %v2624
        %v2626 = vadd.f32 %v2623, %v2625
        %v2627 = vmul.f32 %v2610, %v2610
        %v2628 = vmul.f32 %v1358, %v2627
        %v2630 = vrot.slane %v2628, 1
        %v2632 = vadd.f32 %v2626, %v2630
        %v2633 = vmul.f32 %v2224, %v2224
        %v2634 = vmul.f32 %v1365, %v2224
        %v2635 = vadd.f32 %v2632, %v2634
        %v2636 = vmul.f32 %v2633, %v2224
        %v2637 = vmul.f32 %v1369, %v2636
        %v2638 = vadd.f32 %v2635, %v2637
        %2639 = vst [vmem:[%s340 + $0x3] sm:$0x1] %v2638
        %v2640 = vmul.f32 %v1373, %v2633
        %v2641 = vadd.f32 %v1365, %v2640
        %v2642 = vlog2.pop %v2641
        %v2643 = vmul.f32 %v2642, 0.6931472
        %2644 = vst [vmem:[%s347 + $0x3] sm:$0x1] %v2643
        %v2645 = vld [vmem:[%s351 + $0x4] sm:$0x1]
        %v2646 = vld [vmem:[%s355 + $0x4] sm:$0x1]
        %v2647 = vlaneseq
        %v2648 = vshrl.u32 %v2647, 7
        %v2649 = vsub.s32 0, %v2648
        %v2650 = vrot.slane %v2645, %v2649
        %v2651 = vmul.f32 %v418, %v2650
        %v2652 = vmul.f32 %v423, %v2650
        %v2653 = vmul.f32 %v428, %v2650
        %v2654 = vmul.f32 %v433, %v2650
        %v2655 = vmul.f32 %v438, %v2650
        %v2656 = vmul.f32 %v443, %v2650
        %v2657 = vmul.f32 %v448, %v2650
        %v2658 = vmul.f32 %v453, %v2650
        %v2659 = vmul.f32 %v458, %v2650
        %v2660 = vmul.f32 %v463, %v2650
        %v2661 = vmul.f32 %v468, %v2650
        %v2662 = vmul.f32 %v473, %v2650
        %v2663 = vmul.f32 %v478, %v2650
        %v2664 = vmul.f32 %v483, %v2650
        %v2665 = vmul.f32 %v488, %v2650
        %v2666 = vmul.f32 %v493, %v2650
        %v2667 = vmul.f32 %v498, %v2650
        %v2668 = vmul.f32 %v503, %v2650
        %v2669 = vmul.f32 %v508, %v2650
        %v2670 = vmul.f32 %v513, %v2650
        %v2671 = vmul.f32 %v518, %v2650
        %v2672 = vmul.f32 %v523, %v2650
        %v2673 = vmul.f32 %v528, %v2650
        %v2674 = vmul.f32 %v533, %v2650
        %v2675 = vmul.f32 %v538, %v2650
        %v2676 = vmul.f32 %v543, %v2650
        %v2677 = vmul.f32 %v548, %v2650
        %v2678 = vmul.f32 %v553, %v2650
        %v2679 = vmul.f32 %v558, %v2650
        %v2680 = vmul.f32 %v563, %v2650
        %v2681 = vmul.f32 %v568, %v2650
        %v2682 = vmul.f32 %v573, %v2650
        %v2683 = vmul.f32 %v578, %v2650
        %v2684 = vmul.f32 %v583, %v2650
        %v2685 = vmul.f32 %v588, %v2650
        %v2686 = vmul.f32 %v593, %v2650
        %v2687 = vmul.f32 %v598, %v2650
        %v2688 = vmul.f32 %v603, %v2650
        %v2689 = vmul.f32 %v608, %v2650
        %v2690 = vmul.f32 %v613, %v2650
        %v2691 = vmul.f32 %v618, %v2650
        %v2692 = vmul.f32 %v623, %v2650
        %v2693 = vmul.f32 %v628, %v2650
        %v2694 = vmul.f32 %v633, %v2650
        %v2695 = vmul.f32 %v638, %v2650
        %v2696 = vmul.f32 %v643, %v2650
        %v2697 = vmul.f32 %v648, %v2650
        %v2698 = vmul.f32 %v653, %v2650
        %v2699 = vadd.f32 %v2651, %v706
        %v2700 = vadd.f32 %v2652, %v711
        %v2701 = vadd.f32 %v2653, %v716
        %v2702 = vadd.f32 %v2654, %v721
        %v2703 = vadd.f32 %v2655, %v726
        %v2704 = vadd.f32 %v2656, %v731
        %v2705 = vadd.f32 %v2657, %v736
        %v2706 = vadd.f32 %v2658, %v741
        %v2707 = vadd.f32 %v2659, %v746
        %v2708 = vadd.f32 %v2660, %v751
        %v2709 = vadd.f32 %v2661, %v756
        %v2710 = vadd.f32 %v2662, %v761
        %v2711 = vadd.f32 %v2663, %v766
        %v2712 = vadd.f32 %v2664, %v771
        %v2713 = vadd.f32 %v2665, %v776
        %v2714 = vadd.f32 %v2666, %v781
        %v2715 = vadd.f32 %v2667, %v786
        %v2716 = vadd.f32 %v2668, %v791
        %v2717 = vadd.f32 %v2669, %v796
        %v2718 = vadd.f32 %v2670, %v801
        %v2719 = vadd.f32 %v2671, %v806
        %v2720 = vadd.f32 %v2672, %v811
        %v2721 = vadd.f32 %v2673, %v816
        %v2722 = vadd.f32 %v2674, %v821
        %v2723 = vadd.f32 %v2675, %v826
        %v2724 = vadd.f32 %v2676, %v831
        %v2725 = vadd.f32 %v2677, %v836
        %v2726 = vadd.f32 %v2678, %v841
        %v2727 = vadd.f32 %v2679, %v846
        %v2728 = vadd.f32 %v2680, %v851
        %v2729 = vadd.f32 %v2681, %v856
        %v2730 = vadd.f32 %v2682, %v861
        %v2731 = vadd.f32 %v2683, %v866
        %v2732 = vadd.f32 %v2684, %v871
        %v2733 = vadd.f32 %v2685, %v876
        %v2734 = vadd.f32 %v2686, %v881
        %v2735 = vadd.f32 %v2687, %v886
        %v2736 = vadd.f32 %v2688, %v891
        %v2737 = vadd.f32 %v2689, %v896
        %v2738 = vadd.f32 %v2690, %v901
        %v2739 = vadd.f32 %v2691, %v906
        %v2740 = vadd.f32 %v2692, %v911
        %v2741 = vadd.f32 %v2693, %v916
        %v2742 = vadd.f32 %v2694, %v921
        %v2743 = vadd.f32 %v2695, %v926
        %v2744 = vadd.f32 %v2696, %v931
        %v2745 = vadd.f32 %v2697, %v936
        %v2746 = vadd.f32 %v2698, %v941
        %vm2747 = vcmp.ge.f32.partialorder %v2699, 0.0
        %vm2748 = vcmp.ge.f32.partialorder %v2700, 0.0
        %vm2749 = vcmp.ge.f32.partialorder %v2701, 0.0
        %vm2750 = vcmp.ge.f32.partialorder %v2702, 0.0
        %vm2751 = vcmp.ge.f32.partialorder %v2703, 0.0
        %vm2752 = vcmp.ge.f32.partialorder %v2704, 0.0
        %vm2753 = vcmp.ge.f32.partialorder %v2705, 0.0
        %vm2754 = vcmp.ge.f32.partialorder %v2706, 0.0
        %vm2755 = vcmp.ge.f32.partialorder %v2707, 0.0
        %vm2756 = vcmp.ge.f32.partialorder %v2708, 0.0
        %vm2757 = vcmp.ge.f32.partialorder %v2709, 0.0
        %vm2758 = vcmp.ge.f32.partialorder %v2710, 0.0
        %vm2759 = vcmp.ge.f32.partialorder %v2711, 0.0
        %vm2760 = vcmp.ge.f32.partialorder %v2712, 0.0
        %vm2761 = vcmp.ge.f32.partialorder %v2713, 0.0
        %vm2762 = vcmp.ge.f32.partialorder %v2714, 0.0
        %vm2763 = vcmp.ge.f32.partialorder %v2715, 0.0
        %vm2764 = vcmp.ge.f32.partialorder %v2716, 0.0
        %vm2765 = vcmp.ge.f32.partialorder %v2717, 0.0
        %vm2766 = vcmp.ge.f32.partialorder %v2718, 0.0
        %vm2767 = vcmp.ge.f32.partialorder %v2719, 0.0
        %vm2768 = vcmp.ge.f32.partialorder %v2720, 0.0
        %vm2769 = vcmp.ge.f32.partialorder %v2721, 0.0
        %vm2770 = vcmp.ge.f32.partialorder %v2722, 0.0
        %vm2771 = vcmp.ge.f32.partialorder %v2723, 0.0
        %vm2772 = vcmp.ge.f32.partialorder %v2724, 0.0
        %vm2773 = vcmp.ge.f32.partialorder %v2725, 0.0
        %vm2774 = vcmp.ge.f32.partialorder %v2726, 0.0
        %vm2775 = vcmp.ge.f32.partialorder %v2727, 0.0
        %vm2776 = vcmp.ge.f32.partialorder %v2728, 0.0
        %vm2777 = vcmp.ge.f32.partialorder %v2729, 0.0
        %vm2778 = vcmp.ge.f32.partialorder %v2730, 0.0
        %vm2779 = vcmp.ge.f32.partialorder %v2731, 0.0
        %vm2780 = vcmp.ge.f32.partialorder %v2732, 0.0
        %vm2781 = vcmp.ge.f32.partialorder %v2733, 0.0
        %vm2782 = vcmp.ge.f32.partialorder %v2734, 0.0
        %vm2783 = vcmp.ge.f32.partialorder %v2735, 0.0
        %vm2784 = vcmp.ge.f32.partialorder %v2736, 0.0
        %vm2785 = vcmp.ge.f32.partialorder %v2737, 0.0
        %vm2786 = vcmp.ge.f32.partialorder %v2738, 0.0
        %vm2787 = vcmp.ge.f32.partialorder %v2739, 0.0
        %vm2788 = vcmp.ge.f32.partialorder %v2740, 0.0
        %vm2789 = vcmp.ge.f32.partialorder %v2741, 0.0
        %vm2790 = vcmp.ge.f32.partialorder %v2742, 0.0
        %vm2791 = vcmp.ge.f32.partialorder %v2743, 0.0
        %vm2792 = vcmp.ge.f32.partialorder %v2744, 0.0
        %vm2793 = vcmp.ge.f32.partialorder %v2745, 0.0
        %vm2794 = vcmp.ge.f32.partialorder %v2746, 0.0
        %v2795 = vmul.f32 %v2699, 0.01
        %v2796 = vmul.f32 %v2700, 0.01
        %v2797 = vmul.f32 %v2701, 0.01
        %v2798 = vmul.f32 %v2702, 0.01
        %v2799 = vmul.f32 %v2703, 0.01
        %v2800 = vmul.f32 %v2704, 0.01
        %v2801 = vmul.f32 %v2705, 0.01
        %v2802 = vmul.f32 %v2706, 0.01
        %v2803 = vmul.f32 %v2707, 0.01
        %v2804 = vmul.f32 %v2708, 0.01
        %v2805 = vmul.f32 %v2709, 0.01
        %v2806 = vmul.f32 %v2710, 0.01
        %v2807 = vmul.f32 %v2711, 0.01
        %v2808 = vmul.f32 %v2712, 0.01
        %v2809 = vmul.f32 %v2713, 0.01
        %v2810 = vmul.f32 %v2714, 0.01
        %v2811 = vmul.f32 %v2715, 0.01
        %v2812 = vmul.f32 %v2716, 0.01
        %v2813 = vmul.f32 %v2717, 0.01
        %v2814 = vmul.f32 %v2718, 0.01
        %v2815 = vmul.f32 %v2719, 0.01
        %v2816 = vmul.f32 %v2720, 0.01
        %v2817 = vmul.f32 %v2721, 0.01
        %v2818 = vmul.f32 %v2722, 0.01
        %v2819 = vmul.f32 %v2723, 0.01
        %v2820 = vmul.f32 %v2724, 0.01
        %v2821 = vmul.f32 %v2725, 0.01
        %v2822 = vmul.f32 %v2726, 0.01
        %v2823 = vmul.f32 %v2727, 0.01
        %v2824 = vmul.f32 %v2728, 0.01
        %v2825 = vmul.f32 %v2729, 0.01
        %v2826 = vmul.f32 %v2730, 0.01
        %v2827 = vmul.f32 %v2731, 0.01
        %v2828 = vmul.f32 %v2732, 0.01
        %v2829 = vmul.f32 %v2733, 0.01
        %v2830 = vmul.f32 %v2734, 0.01
        %v2831 = vmul.f32 %v2735, 0.01
        %v2832 = vmul.f32 %v2736, 0.01
        %v2833 = vmul.f32 %v2737, 0.01
        %v2834 = vmul.f32 %v2738, 0.01
        %v2835 = vmul.f32 %v2739, 0.01
        %v2836 = vmul.f32 %v2740, 0.01
        %v2837 = vmul.f32 %v2741, 0.01
        %v2838 = vmul.f32 %v2742, 0.01
        %v2839 = vmul.f32 %v2743, 0.01
        %v2840 = vmul.f32 %v2744, 0.01
        %v2841 = vmul.f32 %v2745, 0.01
        %v2842 = vmul.f32 %v2746, 0.01
        %v2843 = vsel %vm2747, %v2699, %v2795
        %v2844 = vsel %vm2748, %v2700, %v2796
        %v2845 = vsel %vm2749, %v2701, %v2797
        %v2846 = vsel %vm2750, %v2702, %v2798
        %v2847 = vsel %vm2751, %v2703, %v2799
        %v2848 = vsel %vm2752, %v2704, %v2800
        %v2849 = vsel %vm2753, %v2705, %v2801
        %v2850 = vsel %vm2754, %v2706, %v2802
        %v2851 = vsel %vm2755, %v2707, %v2803
        %v2852 = vsel %vm2756, %v2708, %v2804
        %v2853 = vsel %vm2757, %v2709, %v2805
        %v2854 = vsel %vm2758, %v2710, %v2806
        %v2855 = vsel %vm2759, %v2711, %v2807
        %v2856 = vsel %vm2760, %v2712, %v2808
        %v2857 = vsel %vm2761, %v2713, %v2809
        %v2858 = vsel %vm2762, %v2714, %v2810
        %v2859 = vsel %vm2763, %v2715, %v2811
        %v2860 = vsel %vm2764, %v2716, %v2812
        %v2861 = vsel %vm2765, %v2717, %v2813
        %v2862 = vsel %vm2766, %v2718, %v2814
        %v2863 = vsel %vm2767, %v2719, %v2815
        %v2864 = vsel %vm2768, %v2720, %v2816
        %v2865 = vsel %vm2769, %v2721, %v2817
        %v2866 = vsel %vm2770, %v2722, %v2818
        %v2867 = vsel %vm2771, %v2723, %v2819
        %v2868 = vsel %vm2772, %v2724, %v2820
        %v2869 = vsel %vm2773, %v2725, %v2821
        %v2870 = vsel %vm2774, %v2726, %v2822
        %v2871 = vsel %vm2775, %v2727, %v2823
        %v2872 = vsel %vm2776, %v2728, %v2824
        %v2873 = vsel %vm2777, %v2729, %v2825
        %v2874 = vsel %vm2778, %v2730, %v2826
        %v2875 = vsel %vm2779, %v2731, %v2827
        %v2876 = vsel %vm2780, %v2732, %v2828
        %v2877 = vsel %vm2781, %v2733, %v2829
        %v2878 = vsel %vm2782, %v2734, %v2830
        %v2879 = vsel %vm2783, %v2735, %v2831
        %v2880 = vsel %vm2784, %v2736, %v2832
        %v2881 = vsel %vm2785, %v2737, %v2833
        %v2882 = vsel %vm2786, %v2738, %v2834
        %v2883 = vsel %vm2787, %v2739, %v2835
        %v2884 = vsel %vm2788, %v2740, %v2836
        %v2885 = vsel %vm2789, %v2741, %v2837
        %v2886 = vsel %vm2790, %v2742, %v2838
        %v2887 = vsel %vm2791, %v2743, %v2839
        %v2888 = vsel %vm2792, %v2744, %v2840
        %v2889 = vsel %vm2793, %v2745, %v2841
        %v2890 = vsel %vm2794, %v2746, %v2842
        %2891 = vmatprep.subr.mxu0 0.0
        %2892 = vmatpush1.msra.mxu0 %v2843
        %2893 = vmatprep.subr.mxu0 0.0
        %2894 = vmatpush1.msra.mxu0 %v2844
        %2895 = vmatprep.subr.mxu0 0.0
        %2896 = vmatpush1.msra.mxu0 %v2845
        %2897 = vmatprep.subr.mxu0 0.0
        %2898 = vmatpush1.msra.mxu0 %v2846
        %2899 = vmatprep.subr.mxu0 0.0
        %2900 = vmatpush1.msra.mxu0 %v2847
        %2901 = vmatprep.subr.mxu0 0.0
        %2902 = vmatpush1.msra.mxu0 %v2848
        %2903 = vmatprep.subr.mxu0 0.0
        %2904 = vmatpush1.msra.mxu0 %v2849
        %2905 = vmatprep.subr.mxu0 0.0
        %2906 = vmatpush1.msra.mxu0 %v2850
        %2907 = vmatprep.subr.mxu0 0.0
        %2908 = vmatpush1.msra.mxu0 %v2851
        %2909 = vmatprep.subr.mxu0 0.0
        %2910 = vmatpush1.msra.mxu0 %v2852
        %2911 = vmatprep.subr.mxu0 0.0
        %2912 = vmatpush1.msra.mxu0 %v2853
        %2913 = vmatprep.subr.mxu0 0.0
        %2914 = vmatpush1.msra.mxu0 %v2854
        %2915 = vmatprep.subr.mxu0 0.0
        %2916 = vmatpush1.msra.mxu0 %v2855
        %2917 = vmatprep.subr.mxu0 0.0
        %2918 = vmatpush1.msra.mxu0 %v2856
        %2919 = vmatprep.subr.mxu0 0.0
        %2920 = vmatpush1.msra.mxu0 %v2857
        %2921 = vmatprep.subr.mxu0 0.0
        %2922 = vmatpush1.msra.mxu0 %v2858
        %2923 = vmatprep.subr.mxu0 0.0
        %2924 = vmatpush1.msra.mxu0 %v2859
        %2925 = vmatprep.subr.mxu0 0.0
        %2926 = vmatpush1.msra.mxu0 %v2860
        %2927 = vmatprep.subr.mxu0 0.0
        %2928 = vmatpush1.msra.mxu0 %v2861
        %2929 = vmatprep.subr.mxu0 0.0
        %2930 = vmatpush1.msra.mxu0 %v2862
        %2931 = vmatprep.subr.mxu0 0.0
        %2932 = vmatpush1.msra.mxu0 %v2863
        %2933 = vmatprep.subr.mxu0 0.0
        %2934 = vmatpush1.msra.mxu0 %v2864
        %2935 = vmatprep.subr.mxu0 0.0
        %2936 = vmatpush1.msra.mxu0 %v2865
        %2937 = vmatprep.subr.mxu0 0.0
        %2938 = vmatpush1.msra.mxu0 %v2866
        %2939 = vmatprep.subr.mxu0 0.0
        %2940 = vmatpush1.msra.mxu0 %v2867
        %2941 = vmatprep.subr.mxu0 0.0
        %2942 = vmatpush1.msra.mxu0 %v2868
        %2943 = vmatprep.subr.mxu0 0.0
        %2944 = vmatpush1.msra.mxu0 %v2869
        %2945 = vmatprep.subr.mxu0 0.0
        %2946 = vmatpush1.msra.mxu0 %v2870
        %2947 = vmatprep.subr.mxu0 0.0
        %2948 = vmatpush1.msra.mxu0 %v2871
        %2949 = vmatprep.subr.mxu0 0.0
        %2950 = vmatpush1.msra.mxu0 %v2872
        %2951 = vmatprep.subr.mxu0 0.0
        %2952 = vmatpush1.msra.mxu0 %v2873
        %2953 = vmatprep.subr.mxu0 0.0
        %2954 = vmatpush1.msra.mxu0 %v2874
        %2955 = vmatprep.mubr.f32.mxu0 %v944
        %2956 = vmatmul.mubr.f32.gmra.mrb[0].mxu0 %v943
        %v2957 = vpop.f32.mrb[0].mxu0
        %v2958 = vadd.f32 0.0, %v2957
        %v2959 = vpop.f32.mrb[0].mxu0
        %2960 = vdwg.mxu0
        %2961 = vmatprep.subr.mxu0 0.0
        %2962 = vmatpush1.msra.mxu0 %v2875
        %2963 = vmatprep.subr.mxu0 0.0
        %2964 = vmatpush1.msra.mxu0 %v2876
        %2965 = vmatprep.subr.mxu0 0.0
        %2966 = vmatpush1.msra.mxu0 %v2877
        %2967 = vmatprep.subr.mxu0 0.0
        %2968 = vmatpush1.msra.mxu0 %v2878
        %2969 = vmatprep.subr.mxu0 0.0
        %2970 = vmatpush1.msra.mxu0 %v2879
        %2971 = vmatprep.subr.mxu0 0.0
        %2972 = vmatpush1.msra.mxu0 %v2880
        %2973 = vmatprep.subr.mxu0 0.0
        %2974 = vmatpush1.msra.mxu0 %v2881
        %2975 = vmatprep.subr.mxu0 0.0
        %2976 = vmatpush1.msra.mxu0 %v2882
        %2977 = vmatprep.subr.mxu0 0.0
        %2978 = vmatpush1.msra.mxu0 %v2883
        %2979 = vmatprep.subr.mxu0 0.0
        %2980 = vmatpush1.msra.mxu0 %v2884
        %2981 = vmatprep.subr.mxu0 0.0
        %2982 = vmatpush1.msra.mxu0 %v2885
        %2983 = vmatprep.subr.mxu0 0.0
        %2984 = vmatpush1.msra.mxu0 %v2886
        %2985 = vmatprep.subr.mxu0 0.0
        %2986 = vmatpush1.msra.mxu0 %v2887
        %2987 = vmatprep.subr.mxu0 0.0
        %2988 = vmatpush1.msra.mxu0 %v2888
        %2989 = vmatprep.subr.mxu0 0.0
        %2990 = vmatpush1.msra.mxu0 %v2889
        %2991 = vmatprep.subr.mxu0 0.0
        %2992 = vmatpush1.msra.mxu0 %v2890
        %2993 = vmatprep.subr.mxu0 0.0
        %2994 = vmatpush1.msra.mxu0 0.0
        %2995 = vmatprep.subr.mxu0 0.0
        %2996 = vmatpush1.msra.mxu0 0.0
        %2997 = vmatprep.subr.mxu0 0.0
        %2998 = vmatpush1.msra.mxu0 0.0
        %2999 = vmatprep.subr.mxu0 0.0
        %3000 = vmatpush1.msra.mxu0 0.0
        %3001 = vmatprep.subr.mxu0 0.0
        %3002 = vmatpush1.msra.mxu0 0.0
        %3003 = vmatprep.subr.mxu0 0.0
        %3004 = vmatpush1.msra.mxu0 0.0
        %3005 = vmatprep.subr.mxu0 0.0
        %3006 = vmatpush1.msra.mxu0 0.0
        %3007 = vmatprep.subr.mxu0 0.0
        %3008 = vmatpush1.msra.mxu0 0.0
        %3009 = vmatprep.subr.mxu0 0.0
        %3010 = vmatpush1.msra.mxu0 0.0
        %3011 = vmatprep.subr.mxu0 0.0
        %3012 = vmatpush1.msra.mxu0 0.0
        %3013 = vmatprep.subr.mxu0 0.0
        %3014 = vmatpush1.msra.mxu0 0.0
        %3015 = vmatprep.subr.mxu0 0.0
        %3016 = vmatpush1.msra.mxu0 0.0
        %3017 = vmatprep.subr.mxu0 0.0
        %3018 = vmatpush1.msra.mxu0 0.0
        %3019 = vmatprep.subr.mxu0 0.0
        %3020 = vmatpush1.msra.mxu0 0.0
        %3021 = vmatprep.subr.mxu0 0.0
        %3022 = vmatpush1.msra.mxu0 0.0
        %3023 = vmatprep.subr.mxu0 0.0
        %3024 = vmatpush1.msra.mxu0 0.0
        %3025 = vmatprep.mubr.f32.mxu0 0.0
        %3026 = vmatmul.mubr.f32.gmra.mrb[0].mxu0 %v945
        %v3027 = vpop.f32.mrb[0].mxu0
        %v3028 = vadd.f32 %v2958, %v3027
        %v3029 = vpop.f32.mrb[0].mxu0
        %3030 = vdwg.mxu0
        %v3031 = vadd.f32 %v3028, %v1332
        %v3032 = vadd.f32 %v3028, %v1334
        %v3033 = vmul.f32 %v1336, %v3031
        %v3034 = vadd.f32 %v1338, %v3033
        %v3035 = vmul.f32 %v1340, %v3032
        %v3037 = vrot.slane %v3035, 1
        %v3039 = vadd.f32 %v3034, %v3037
        %v3041 = vrot.slane %v3032, 1
        %v3043 = vmul.f32 %v3031, %v3041
        %v3044 = vmul.f32 %v1350, %v3043
        %v3045 = vadd.f32 %v3039, %v3044
        %v3046 = vmul.f32 %v3031, %v3031
        %v3047 = vmul.f32 %v1354, %v3046
        %v3048 = vadd.f32 %v3045, %v3047
        %v3049 = vmul.f32 %v3032, %v3032
        %v3050 = vmul.f32 %v1358, %v3049
        %v3052 = vrot.slane %v3050, 1
        %v3054 = vadd.f32 %v3048, %v3052
        %v3055 = vmul.f32 %v2646, %v2646
        %v3056 = vmul.f32 %v1365, %v2646
        %v3057 = vadd.f32 %v3054, %v3056
        %v3058 = vmul.f32 %v3055, %v2646
        %v3059 = vmul.f32 %v1369, %v3058
        %v3060 = vadd.f32 %v3057, %v3059
        %3061 = vst [vmem:[%s340 + $0x4] sm:$0x1] %v3060
        %v3062 = vmul.f32 %v1373, %v3055
        %v3063 = vadd.f32 %v1365, %v3062
        %v3064 = vlog2.pop %v3063
        %v3065 = vmul.f32 %v3064, 0.6931472
        %3066 = vst [vmem:[%s347 + $0x4] sm:$0x1] %v3065
        %v3067 = vld [vmem:[%s351 + $0x5] sm:$0x1]
        %v3068 = vld [vmem:[%s355 + $0x5] sm:$0x1]
        %v3069 = vlaneseq
        %v3070 = vshrl.u32 %v3069, 7
        %v3071 = vsub.s32 0, %v3070
        %v3072 = vrot.slane %v3067, %v3071
        %v3073 = vmul.f32 %v418, %v3072
        %v3074 = vmul.f32 %v423, %v3072
        %v3075 = vmul.f32 %v428, %v3072
        %v3076 = vmul.f32 %v433, %v3072
        %v3077 = vmul.f32 %v438, %v3072
        %v3078 = vmul.f32 %v443, %v3072
        %v3079 = vmul.f32 %v448, %v3072
        %v3080 = vmul.f32 %v453, %v3072
        %v3081 = vmul.f32 %v458, %v3072
        %v3082 = vmul.f32 %v463, %v3072
        %v3083 = vmul.f32 %v468, %v3072
        %v3084 = vmul.f32 %v473, %v3072
        %v3085 = vmul.f32 %v478, %v3072
        %v3086 = vmul.f32 %v483, %v3072
        %v3087 = vmul.f32 %v488, %v3072
        %v3088 = vmul.f32 %v493, %v3072
        %v3089 = vmul.f32 %v498, %v3072
        %v3090 = vmul.f32 %v503, %v3072
        %v3091 = vmul.f32 %v508, %v3072
        %v3092 = vmul.f32 %v513, %v3072
        %v3093 = vmul.f32 %v518, %v3072
        %v3094 = vmul.f32 %v523, %v3072
        %v3095 = vmul.f32 %v528, %v3072
        %v3096 = vmul.f32 %v533, %v3072
        %v3097 = vmul.f32 %v538, %v3072
        %v3098 = vmul.f32 %v543, %v3072
        %v3099 = vmul.f32 %v548, %v3072
        %v3100 = vmul.f32 %v553, %v3072
        %v3101 = vmul.f32 %v558, %v3072
        %v3102 = vmul.f32 %v563, %v3072
        %v3103 = vmul.f32 %v568, %v3072
        %v3104 = vmul.f32 %v573, %v3072
        %v3105 = vmul.f32 %v578, %v3072
        %v3106 = vmul.f32 %v583, %v3072
        %v3107 = vmul.f32 %v588, %v3072
        %v3108 = vmul.f32 %v593, %v3072
        %v3109 = vmul.f32 %v598, %v3072
        %v3110 = vmul.f32 %v603, %v3072
        %v3111 = vmul.f32 %v608, %v3072
        %v3112 = vmul.f32 %v613, %v3072
        %v3113 = vmul.f32 %v618, %v3072
        %v3114 = vmul.f32 %v623, %v3072
        %v3115 = vmul.f32 %v628, %v3072
        %v3116 = vmul.f32 %v633, %v3072
        %v3117 = vmul.f32 %v638, %v3072
        %v3118 = vmul.f32 %v643, %v3072
        %v3119 = vmul.f32 %v648, %v3072
        %v3120 = vmul.f32 %v653, %v3072
        %v3121 = vadd.f32 %v3073, %v706
        %v3122 = vadd.f32 %v3074, %v711
        %v3123 = vadd.f32 %v3075, %v716
        %v3124 = vadd.f32 %v3076, %v721
        %v3125 = vadd.f32 %v3077, %v726
        %v3126 = vadd.f32 %v3078, %v731
        %v3127 = vadd.f32 %v3079, %v736
        %v3128 = vadd.f32 %v3080, %v741
        %v3129 = vadd.f32 %v3081, %v746
        %v3130 = vadd.f32 %v3082, %v751
        %v3131 = vadd.f32 %v3083, %v756
        %v3132 = vadd.f32 %v3084, %v761
        %v3133 = vadd.f32 %v3085, %v766
        %v3134 = vadd.f32 %v3086, %v771
        %v3135 = vadd.f32 %v3087, %v776
        %v3136 = vadd.f32 %v3088, %v781
        %v3137 = vadd.f32 %v3089, %v786
        %v3138 = vadd.f32 %v3090, %v791
        %v3139 = vadd.f32 %v3091, %v796
        %v3140 = vadd.f32 %v3092, %v801
        %v3141 = vadd.f32 %v3093, %v806
        %v3142 = vadd.f32 %v3094, %v811
        %v3143 = vadd.f32 %v3095, %v816
        %v3144 = vadd.f32 %v3096, %v821
        %v3145 = vadd.f32 %v3097, %v826
        %v3146 = vadd.f32 %v3098, %v831
        %v3147 = vadd.f32 %v3099, %v836
        %v3148 = vadd.f32 %v3100, %v841
        %v3149 = vadd.f32 %v3101, %v846
        %v3150 = vadd.f32 %v3102, %v851
        %v3151 = vadd.f32 %v3103, %v856
        %v3152 = vadd.f32 %v3104, %v861
        %v3153 = vadd.f32 %v3105, %v866
        %v3154 = vadd.f32 %v3106, %v871
        %v3155 = vadd.f32 %v3107, %v876
        %v3156 = vadd.f32 %v3108, %v881
        %v3157 = vadd.f32 %v3109, %v886
        %v3158 = vadd.f32 %v3110, %v891
        %v3159 = vadd.f32 %v3111, %v896
        %v3160 = vadd.f32 %v3112, %v901
        %v3161 = vadd.f32 %v3113, %v906
        %v3162 = vadd.f32 %v3114, %v911
        %v3163 = vadd.f32 %v3115, %v916
        %v3164 = vadd.f32 %v3116, %v921
        %v3165 = vadd.f32 %v3117, %v926
        %v3166 = vadd.f32 %v3118, %v931
        %v3167 = vadd.f32 %v3119, %v936
        %v3168 = vadd.f32 %v3120, %v941
        %vm3169 = vcmp.ge.f32.partialorder %v3121, 0.0
        %vm3170 = vcmp.ge.f32.partialorder %v3122, 0.0
        %vm3171 = vcmp.ge.f32.partialorder %v3123, 0.0
        %vm3172 = vcmp.ge.f32.partialorder %v3124, 0.0
        %vm3173 = vcmp.ge.f32.partialorder %v3125, 0.0
        %vm3174 = vcmp.ge.f32.partialorder %v3126, 0.0
        %vm3175 = vcmp.ge.f32.partialorder %v3127, 0.0
        %vm3176 = vcmp.ge.f32.partialorder %v3128, 0.0
        %vm3177 = vcmp.ge.f32.partialorder %v3129, 0.0
        %vm3178 = vcmp.ge.f32.partialorder %v3130, 0.0
        %vm3179 = vcmp.ge.f32.partialorder %v3131, 0.0
        %vm3180 = vcmp.ge.f32.partialorder %v3132, 0.0
        %vm3181 = vcmp.ge.f32.partialorder %v3133, 0.0
        %vm3182 = vcmp.ge.f32.partialorder %v3134, 0.0
        %vm3183 = vcmp.ge.f32.partialorder %v3135, 0.0
        %vm3184 = vcmp.ge.f32.partialorder %v3136, 0.0
        %vm3185 = vcmp.ge.f32.partialorder %v3137, 0.0
        %vm3186 = vcmp.ge.f32.partialorder %v3138, 0.0
        %vm3187 = vcmp.ge.f32.partialorder %v3139, 0.0
        %vm3188 = vcmp.ge.f32.partialorder %v3140, 0.0
        %vm3189 = vcmp.ge.f32.partialorder %v3141, 0.0
        %vm3190 = vcmp.ge.f32.partialorder %v3142, 0.0
        %vm3191 = vcmp.ge.f32.partialorder %v3143, 0.0
        %vm3192 = vcmp.ge.f32.partialorder %v3144, 0.0
        %vm3193 = vcmp.ge.f32.partialorder %v3145, 0.0
        %vm3194 = vcmp.ge.f32.partialorder %v3146, 0.0
        %vm3195 = vcmp.ge.f32.partialorder %v3147, 0.0
        %vm3196 = vcmp.ge.f32.partialorder %v3148, 0.0
        %vm3197 = vcmp.ge.f32.partialorder %v3149, 0.0
        %vm3198 = vcmp.ge.f32.partialorder %v3150, 0.0
        %vm3199 = vcmp.ge.f32.partialorder %v3151, 0.0
        %vm3200 = vcmp.ge.f32.partialorder %v3152, 0.0
        %vm3201 = vcmp.ge.f32.partialorder %v3153, 0.0
        %vm3202 = vcmp.ge.f32.partialorder %v3154, 0.0
        %vm3203 = vcmp.ge.f32.partialorder %v3155, 0.0
        %vm3204 = vcmp.ge.f32.partialorder %v3156, 0.0
        %vm3205 = vcmp.ge.f32.partialorder %v3157, 0.0
        %vm3206 = vcmp.ge.f32.partialorder %v3158, 0.0
        %vm3207 = vcmp.ge.f32.partialorder %v3159, 0.0
        %vm3208 = vcmp.ge.f32.partialorder %v3160, 0.0
        %vm3209 = vcmp.ge.f32.partialorder %v3161, 0.0
        %vm3210 = vcmp.ge.f32.partialorder %v3162, 0.0
        %vm3211 = vcmp.ge.f32.partialorder %v3163, 0.0
        %vm3212 = vcmp.ge.f32.partialorder %v3164, 0.0
        %vm3213 = vcmp.ge.f32.partialorder %v3165, 0.0
        %vm3214 = vcmp.ge.f32.partialorder %v3166, 0.0
        %vm3215 = vcmp.ge.f32.partialorder %v3167, 0.0
        %vm3216 = vcmp.ge.f32.partialorder %v3168, 0.0
        %v3217 = vmul.f32 %v3121, 0.01
        %v3218 = vmul.f32 %v3122, 0.01
        %v3219 = vmul.f32 %v3123, 0.01
        %v3220 = vmul.f32 %v3124, 0.01
        %v3221 = vmul.f32 %v3125, 0.01
        %v3222 = vmul.f32 %v3126, 0.01
        %v3223 = vmul.f32 %v3127, 0.01
        %v3224 = vmul.f32 %v3128, 0.01
        %v3225 = vmul.f32 %v3129, 0.01
        %v3226 = vmul.f32 %v3130, 0.01
        %v3227 = vmul.f32 %v3131, 0.01
        %v3228 = vmul.f32 %v3132, 0.01
        %v3229 = vmul.f32 %v3133, 0.01
        %v3230 = vmul.f32 %v3134, 0.01
        %v3231 = vmul.f32 %v3135, 0.01
        %v3232 = vmul.f32 %v3136, 0.01
        %v3233 = vmul.f32 %v3137, 0.01
        %v3234 = vmul.f32 %v3138, 0.01
        %v3235 = vmul.f32 %v3139, 0.01
        %v3236 = vmul.f32 %v3140, 0.01
        %v3237 = vmul.f32 %v3141, 0.01
        %v3238 = vmul.f32 %v3142, 0.01
        %v3239 = vmul.f32 %v3143, 0.01
        %v3240 = vmul.f32 %v3144, 0.01
        %v3241 = vmul.f32 %v3145, 0.01
        %v3242 = vmul.f32 %v3146, 0.01
        %v3243 = vmul.f32 %v3147, 0.01
        %v3244 = vmul.f32 %v3148, 0.01
        %v3245 = vmul.f32 %v3149, 0.01
        %v3246 = vmul.f32 %v3150, 0.01
        %v3247 = vmul.f32 %v3151, 0.01
        %v3248 = vmul.f32 %v3152, 0.01
        %v3249 = vmul.f32 %v3153, 0.01
        %v3250 = vmul.f32 %v3154, 0.01
        %v3251 = vmul.f32 %v3155, 0.01
        %v3252 = vmul.f32 %v3156, 0.01
        %v3253 = vmul.f32 %v3157, 0.01
        %v3254 = vmul.f32 %v3158, 0.01
        %v3255 = vmul.f32 %v3159, 0.01
        %v3256 = vmul.f32 %v3160, 0.01
        %v3257 = vmul.f32 %v3161, 0.01
        %v3258 = vmul.f32 %v3162, 0.01
        %v3259 = vmul.f32 %v3163, 0.01
        %v3260 = vmul.f32 %v3164, 0.01
        %v3261 = vmul.f32 %v3165, 0.01
        %v3262 = vmul.f32 %v3166, 0.01
        %v3263 = vmul.f32 %v3167, 0.01
        %v3264 = vmul.f32 %v3168, 0.01
        %v3265 = vsel %vm3169, %v3121, %v3217
        %v3266 = vsel %vm3170, %v3122, %v3218
        %v3267 = vsel %vm3171, %v3123, %v3219
        %v3268 = vsel %vm3172, %v3124, %v3220
        %v3269 = vsel %vm3173, %v3125, %v3221
        %v3270 = vsel %vm3174, %v3126, %v3222
        %v3271 = vsel %vm3175, %v3127, %v3223
        %v3272 = vsel %vm3176, %v3128, %v3224
        %v3273 = vsel %vm3177, %v3129, %v3225
        %v3274 = vsel %vm3178, %v3130, %v3226
        %v3275 = vsel %vm3179, %v3131, %v3227
        %v3276 = vsel %vm3180, %v3132, %v3228
        %v3277 = vsel %vm3181, %v3133, %v3229
        %v3278 = vsel %vm3182, %v3134, %v3230
        %v3279 = vsel %vm3183, %v3135, %v3231
        %v3280 = vsel %vm3184, %v3136, %v3232
        %v3281 = vsel %vm3185, %v3137, %v3233
        %v3282 = vsel %vm3186, %v3138, %v3234
        %v3283 = vsel %vm3187, %v3139, %v3235
        %v3284 = vsel %vm3188, %v3140, %v3236
        %v3285 = vsel %vm3189, %v3141, %v3237
        %v3286 = vsel %vm3190, %v3142, %v3238
        %v3287 = vsel %vm3191, %v3143, %v3239
        %v3288 = vsel %vm3192, %v3144, %v3240
        %v3289 = vsel %vm3193, %v3145, %v3241
        %v3290 = vsel %vm3194, %v3146, %v3242
        %v3291 = vsel %vm3195, %v3147, %v3243
        %v3292 = vsel %vm3196, %v3148, %v3244
        %v3293 = vsel %vm3197, %v3149, %v3245
        %v3294 = vsel %vm3198, %v3150, %v3246
        %v3295 = vsel %vm3199, %v3151, %v3247
        %v3296 = vsel %vm3200, %v3152, %v3248
        %v3297 = vsel %vm3201, %v3153, %v3249
        %v3298 = vsel %vm3202, %v3154, %v3250
        %v3299 = vsel %vm3203, %v3155, %v3251
        %v3300 = vsel %vm3204, %v3156, %v3252
        %v3301 = vsel %vm3205, %v3157, %v3253
        %v3302 = vsel %vm3206, %v3158, %v3254
        %v3303 = vsel %vm3207, %v3159, %v3255
        %v3304 = vsel %vm3208, %v3160, %v3256
        %v3305 = vsel %vm3209, %v3161, %v3257
        %v3306 = vsel %vm3210, %v3162, %v3258
        %v3307 = vsel %vm3211, %v3163, %v3259
        %v3308 = vsel %vm3212, %v3164, %v3260
        %v3309 = vsel %vm3213, %v3165, %v3261
        %v3310 = vsel %vm3214, %v3166, %v3262
        %v3311 = vsel %vm3215, %v3167, %v3263
        %v3312 = vsel %vm3216, %v3168, %v3264
        %3313 = vmatprep.subr.mxu0 0.0
        %3314 = vmatpush1.msra.mxu0 %v3265
        %3315 = vmatprep.subr.mxu0 0.0
        %3316 = vmatpush1.msra.mxu0 %v3266
        %3317 = vmatprep.subr.mxu0 0.0
        %3318 = vmatpush1.msra.mxu0 %v3267
        %3319 = vmatprep.subr.mxu0 0.0
        %3320 = vmatpush1.msra.mxu0 %v3268
        %3321 = vmatprep.subr.mxu0 0.0
        %3322 = vmatpush1.msra.mxu0 %v3269
        %3323 = vmatprep.subr.mxu0 0.0
        %3324 = vmatpush1.msra.mxu0 %v3270
        %3325 = vmatprep.subr.mxu0 0.0
        %3326 = vmatpush1.msra.mxu0 %v3271
        %3327 = vmatprep.subr.mxu0 0.0
        %3328 = vmatpush1.msra.mxu0 %v3272
        %3329 = vmatprep.subr.mxu0 0.0
        %3330 = vmatpush1.msra.mxu0 %v3273
        %3331 = vmatprep.subr.mxu0 0.0
        %3332 = vmatpush1.msra.mxu0 %v3274
        %3333 = vmatprep.subr.mxu0 0.0
        %3334 = vmatpush1.msra.mxu0 %v3275
        %3335 = vmatprep.subr.mxu0 0.0
        %3336 = vmatpush1.msra.mxu0 %v3276
        %3337 = vmatprep.subr.mxu0 0.0
        %3338 = vmatpush1.msra.mxu0 %v3277
        %3339 = vmatprep.subr.mxu0 0.0
        %3340 = vmatpush1.msra.mxu0 %v3278
        %3341 = vmatprep.subr.mxu0 0.0
        %3342 = vmatpush1.msra.mxu0 %v3279
        %3343 = vmatprep.subr.mxu0 0.0
        %3344 = vmatpush1.msra.mxu0 %v3280
        %3345 = vmatprep.subr.mxu0 0.0
        %3346 = vmatpush1.msra.mxu0 %v3281
        %3347 = vmatprep.subr.mxu0 0.0
        %3348 = vmatpush1.msra.mxu0 %v3282
        %3349 = vmatprep.subr.mxu0 0.0
        %3350 = vmatpush1.msra.mxu0 %v3283
        %3351 = vmatprep.subr.mxu0 0.0
        %3352 = vmatpush1.msra.mxu0 %v3284
        %3353 = vmatprep.subr.mxu0 0.0
        %3354 = vmatpush1.msra.mxu0 %v3285
        %3355 = vmatprep.subr.mxu0 0.0
        %3356 = vmatpush1.msra.mxu0 %v3286
        %3357 = vmatprep.subr.mxu0 0.0
        %3358 = vmatpush1.msra.mxu0 %v3287
        %3359 = vmatprep.subr.mxu0 0.0
        %3360 = vmatpush1.msra.mxu0 %v3288
        %3361 = vmatprep.subr.mxu0 0.0
        %3362 = vmatpush1.msra.mxu0 %v3289
        %3363 = vmatprep.subr.mxu0 0.0
        %3364 = vmatpush1.msra.mxu0 %v3290
        %3365 = vmatprep.subr.mxu0 0.0
        %3366 = vmatpush1.msra.mxu0 %v3291
        %3367 = vmatprep.subr.mxu0 0.0
        %3368 = vmatpush1.msra.mxu0 %v3292
        %3369 = vmatprep.subr.mxu0 0.0
        %3370 = vmatpush1.msra.mxu0 %v3293
        %3371 = vmatprep.subr.mxu0 0.0
        %3372 = vmatpush1.msra.mxu0 %v3294
        %3373 = vmatprep.subr.mxu0 0.0
        %3374 = vmatpush1.msra.mxu0 %v3295
        %3375 = vmatprep.subr.mxu0 0.0
        %3376 = vmatpush1.msra.mxu0 %v3296
        %3377 = vmatprep.mubr.f32.mxu0 %v944
        %3378 = vmatmul.mubr.f32.gmra.mrb[0].mxu0 %v943
        %v3379 = vpop.f32.mrb[0].mxu0
        %v3380 = vadd.f32 0.0, %v3379
        %v3381 = vpop.f32.mrb[0].mxu0
        %3382 = vdwg.mxu0
        %3383 = vmatprep.subr.mxu0 0.0
        %3384 = vmatpush1.msra.mxu0 %v3297
        %3385 = vmatprep.subr.mxu0 0.0
        %3386 = vmatpush1.msra.mxu0 %v3298
        %3387 = vmatprep.subr.mxu0 0.0
        %3388 = vmatpush1.msra.mxu0 %v3299
        %3389 = vmatprep.subr.mxu0 0.0
        %3390 = vmatpush1.msra.mxu0 %v3300
        %3391 = vmatprep.subr.mxu0 0.0
        %3392 = vmatpush1.msra.mxu0 %v3301
        %3393 = vmatprep.subr.mxu0 0.0
        %3394 = vmatpush1.msra.mxu0 %v3302
        %3395 = vmatprep.subr.mxu0 0.0
        %3396 = vmatpush1.msra.mxu0 %v3303
        %3397 = vmatprep.subr.mxu0 0.0
        %3398 = vmatpush1.msra.mxu0 %v3304
        %3399 = vmatprep.subr.mxu0 0.0
        %3400 = vmatpush1.msra.mxu0 %v3305
        %3401 = vmatprep.subr.mxu0 0.0
        %3402 = vmatpush1.msra.mxu0 %v3306
        %3403 = vmatprep.subr.mxu0 0.0
        %3404 = vmatpush1.msra.mxu0 %v3307
        %3405 = vmatprep.subr.mxu0 0.0
        %3406 = vmatpush1.msra.mxu0 %v3308
        %3407 = vmatprep.subr.mxu0 0.0
        %3408 = vmatpush1.msra.mxu0 %v3309
        %3409 = vmatprep.subr.mxu0 0.0
        %3410 = vmatpush1.msra.mxu0 %v3310
        %3411 = vmatprep.subr.mxu0 0.0
        %3412 = vmatpush1.msra.mxu0 %v3311
        %3413 = vmatprep.subr.mxu0 0.0
        %3414 = vmatpush1.msra.mxu0 %v3312
        %3415 = vmatprep.subr.mxu0 0.0
        %3416 = vmatpush1.msra.mxu0 0.0
        %3417 = vmatprep.subr.mxu0 0.0
        %3418 = vmatpush1.msra.mxu0 0.0
        %3419 = vmatprep.subr.mxu0 0.0
        %3420 = vmatpush1.msra.mxu0 0.0
        %3421 = vmatprep.subr.mxu0 0.0
        %3422 = vmatpush1.msra.mxu0 0.0
        %3423 = vmatprep.subr.mxu0 0.0
        %3424 = vmatpush1.msra.mxu0 0.0
        %3425 = vmatprep.subr.mxu0 0.0
        %3426 = vmatpush1.msra.mxu0 0.0
        %3427 = vmatprep.subr.mxu0 0.0
        %3428 = vmatpush1.msra.mxu0 0.0
        %3429 = vmatprep.subr.mxu0 0.0
        %3430 = vmatpush1.msra.mxu0 0.0
        %3431 = vmatprep.subr.mxu0 0.0
        %3432 = vmatpush1.msra.mxu0 0.0
        %3433 = vmatprep.subr.mxu0 0.0
        %3434 = vmatpush1.msra.mxu0 0.0
        %3435 = vmatprep.subr.mxu0 0.0
        %3436 = vmatpush1.msra.mxu0 0.0
        %3437 = vmatprep.subr.mxu0 0.0
        %3438 = vmatpush1.msra.mxu0 0.0
        %3439 = vmatprep.subr.mxu0 0.0
        %3440 = vmatpush1.msra.mxu0 0.0
        %3441 = vmatprep.subr.mxu0 0.0
        %3442 = vmatpush1.msra.mxu0 0.0
        %3443 = vmatprep.subr.mxu0 0.0
        %3444 = vmatpush1.msra.mxu0 0.0
        %3445 = vmatprep.subr.mxu0 0.0
        %3446 = vmatpush1.msra.mxu0 0.0
        %3447 = vmatprep.mubr.f32.mxu0 0.0
        %3448 = vmatmul.mubr.f32.gmra.mrb[0].mxu0 %v945
        %v3449 = vpop.f32.mrb[0].mxu0
        %v3450 = vadd.f32 %v3380, %v3449
        %v3451 = vpop.f32.mrb[0].mxu0
        %3452 = vdwg.mxu0
        %v3453 = vadd.f32 %v3450, %v1332
        %v3454 = vadd.f32 %v3450, %v1334
        %v3455 = vmul.f32 %v1336, %v3453
        %v3456 = vadd.f32 %v1338, %v3455
        %v3457 = vmul.f32 %v1340, %v3454
        %v3459 = vrot.slane %v3457, 1
        %v3461 = vadd.f32 %v3456, %v3459
        %v3463 = vrot.slane %v3454, 1
        %v3465 = vmul.f32 %v3453, %v3463
        %v3466 = vmul.f32 %v1350, %v3465
        %v3467 = vadd.f32 %v3461, %v3466
        %v3468 = vmul.f32 %v3453, %v3453
        %v3469 = vmul.f32 %v1354, %v3468
        %v3470 = vadd.f32 %v3467, %v3469
        %v3471 = vmul.f32 %v3454, %v3454
        %v3472 = vmul.f32 %v1358, %v3471
        %v3474 = vrot.slane %v3472, 1
        %v3476 = vadd.f32 %v3470, %v3474
        %v3477 = vmul.f32 %v3068, %v3068
        %v3478 = vmul.f32 %v1365, %v3068
        %v3479 = vadd.f32 %v3476, %v3478
        %v3480 = vmul.f32 %v3477, %v3068
        %v3481 = vmul.f32 %v1369, %v3480
        %v3482 = vadd.f32 %v3479, %v3481
        %3483 = vst [vmem:[%s340 + $0x5] sm:$0x1] %v3482
        %v3484 = vmul.f32 %v1373, %v3477
        %v3485 = vadd.f32 %v1365, %v3484
        %v3486 = vlog2.pop %v3485
        %v3487 = vmul.f32 %v3486, 0.6931472
        %3488 = vst [vmem:[%s347 + $0x5] sm:$0x1] %v3487
        %v3489 = vld [vmem:[%s351 + $0x6] sm:$0x1]
        %v3490 = vld [vmem:[%s355 + $0x6] sm:$0x1]
        %v3491 = vlaneseq
        %v3492 = vshrl.u32 %v3491, 7
        %v3493 = vsub.s32 0, %v3492
        %v3494 = vrot.slane %v3489, %v3493
        %v3495 = vmul.f32 %v418, %v3494
        %v3496 = vmul.f32 %v423, %v3494
        %v3497 = vmul.f32 %v428, %v3494
        %v3498 = vmul.f32 %v433, %v3494
        %v3499 = vmul.f32 %v438, %v3494
        %v3500 = vmul.f32 %v443, %v3494
        %v3501 = vmul.f32 %v448, %v3494
        %v3502 = vmul.f32 %v453, %v3494
        %v3503 = vmul.f32 %v458, %v3494
        %v3504 = vmul.f32 %v463, %v3494
        %v3505 = vmul.f32 %v468, %v3494
        %v3506 = vmul.f32 %v473, %v3494
        %v3507 = vmul.f32 %v478, %v3494
        %v3508 = vmul.f32 %v483, %v3494
        %v3509 = vmul.f32 %v488, %v3494
        %v3510 = vmul.f32 %v493, %v3494
        %v3511 = vmul.f32 %v498, %v3494
        %v3512 = vmul.f32 %v503, %v3494
        %v3513 = vmul.f32 %v508, %v3494
        %v3514 = vmul.f32 %v513, %v3494
        %v3515 = vmul.f32 %v518, %v3494
        %v3516 = vmul.f32 %v523, %v3494
        %v3517 = vmul.f32 %v528, %v3494
        %v3518 = vmul.f32 %v533, %v3494
        %v3519 = vmul.f32 %v538, %v3494
        %v3520 = vmul.f32 %v543, %v3494
        %v3521 = vmul.f32 %v548, %v3494
        %v3522 = vmul.f32 %v553, %v3494
        %v3523 = vmul.f32 %v558, %v3494
        %v3524 = vmul.f32 %v563, %v3494
        %v3525 = vmul.f32 %v568, %v3494
        %v3526 = vmul.f32 %v573, %v3494
        %v3527 = vmul.f32 %v578, %v3494
        %v3528 = vmul.f32 %v583, %v3494
        %v3529 = vmul.f32 %v588, %v3494
        %v3530 = vmul.f32 %v593, %v3494
        %v3531 = vmul.f32 %v598, %v3494
        %v3532 = vmul.f32 %v603, %v3494
        %v3533 = vmul.f32 %v608, %v3494
        %v3534 = vmul.f32 %v613, %v3494
        %v3535 = vmul.f32 %v618, %v3494
        %v3536 = vmul.f32 %v623, %v3494
        %v3537 = vmul.f32 %v628, %v3494
        %v3538 = vmul.f32 %v633, %v3494
        %v3539 = vmul.f32 %v638, %v3494
        %v3540 = vmul.f32 %v643, %v3494
        %v3541 = vmul.f32 %v648, %v3494
        %v3542 = vmul.f32 %v653, %v3494
        %v3543 = vadd.f32 %v3495, %v706
        %v3544 = vadd.f32 %v3496, %v711
        %v3545 = vadd.f32 %v3497, %v716
        %v3546 = vadd.f32 %v3498, %v721
        %v3547 = vadd.f32 %v3499, %v726
        %v3548 = vadd.f32 %v3500, %v731
        %v3549 = vadd.f32 %v3501, %v736
        %v3550 = vadd.f32 %v3502, %v741
        %v3551 = vadd.f32 %v3503, %v746
        %v3552 = vadd.f32 %v3504, %v751
        %v3553 = vadd.f32 %v3505, %v756
        %v3554 = vadd.f32 %v3506, %v761
        %v3555 = vadd.f32 %v3507, %v766
        %v3556 = vadd.f32 %v3508, %v771
        %v3557 = vadd.f32 %v3509, %v776
        %v3558 = vadd.f32 %v3510, %v781
        %v3559 = vadd.f32 %v3511, %v786
        %v3560 = vadd.f32 %v3512, %v791
        %v3561 = vadd.f32 %v3513, %v796
        %v3562 = vadd.f32 %v3514, %v801
        %v3563 = vadd.f32 %v3515, %v806
        %v3564 = vadd.f32 %v3516, %v811
        %v3565 = vadd.f32 %v3517, %v816
        %v3566 = vadd.f32 %v3518, %v821
        %v3567 = vadd.f32 %v3519, %v826
        %v3568 = vadd.f32 %v3520, %v831
        %v3569 = vadd.f32 %v3521, %v836
        %v3570 = vadd.f32 %v3522, %v841
        %v3571 = vadd.f32 %v3523, %v846
        %v3572 = vadd.f32 %v3524, %v851
        %v3573 = vadd.f32 %v3525, %v856
        %v3574 = vadd.f32 %v3526, %v861
        %v3575 = vadd.f32 %v3527, %v866
        %v3576 = vadd.f32 %v3528, %v871
        %v3577 = vadd.f32 %v3529, %v876
        %v3578 = vadd.f32 %v3530, %v881
        %v3579 = vadd.f32 %v3531, %v886
        %v3580 = vadd.f32 %v3532, %v891
        %v3581 = vadd.f32 %v3533, %v896
        %v3582 = vadd.f32 %v3534, %v901
        %v3583 = vadd.f32 %v3535, %v906
        %v3584 = vadd.f32 %v3536, %v911
        %v3585 = vadd.f32 %v3537, %v916
        %v3586 = vadd.f32 %v3538, %v921
        %v3587 = vadd.f32 %v3539, %v926
        %v3588 = vadd.f32 %v3540, %v931
        %v3589 = vadd.f32 %v3541, %v936
        %v3590 = vadd.f32 %v3542, %v941
        %vm3591 = vcmp.ge.f32.partialorder %v3543, 0.0
        %vm3592 = vcmp.ge.f32.partialorder %v3544, 0.0
        %vm3593 = vcmp.ge.f32.partialorder %v3545, 0.0
        %vm3594 = vcmp.ge.f32.partialorder %v3546, 0.0
        %vm3595 = vcmp.ge.f32.partialorder %v3547, 0.0
        %vm3596 = vcmp.ge.f32.partialorder %v3548, 0.0
        %vm3597 = vcmp.ge.f32.partialorder %v3549, 0.0
        %vm3598 = vcmp.ge.f32.partialorder %v3550, 0.0
        %vm3599 = vcmp.ge.f32.partialorder %v3551, 0.0
        %vm3600 = vcmp.ge.f32.partialorder %v3552, 0.0
        %vm3601 = vcmp.ge.f32.partialorder %v3553, 0.0
        %vm3602 = vcmp.ge.f32.partialorder %v3554, 0.0
        %vm3603 = vcmp.ge.f32.partialorder %v3555, 0.0
        %vm3604 = vcmp.ge.f32.partialorder %v3556, 0.0
        %vm3605 = vcmp.ge.f32.partialorder %v3557, 0.0
        %vm3606 = vcmp.ge.f32.partialorder %v3558, 0.0
        %vm3607 = vcmp.ge.f32.partialorder %v3559, 0.0
        %vm3608 = vcmp.ge.f32.partialorder %v3560, 0.0
        %vm3609 = vcmp.ge.f32.partialorder %v3561, 0.0
        %vm3610 = vcmp.ge.f32.partialorder %v3562, 0.0
        %vm3611 = vcmp.ge.f32.partialorder %v3563, 0.0
        %vm3612 = vcmp.ge.f32.partialorder %v3564, 0.0
        %vm3613 = vcmp.ge.f32.partialorder %v3565, 0.0
        %vm3614 = vcmp.ge.f32.partialorder %v3566, 0.0
        %vm3615 = vcmp.ge.f32.partialorder %v3567, 0.0
        %vm3616 = vcmp.ge.f32.partialorder %v3568, 0.0
        %vm3617 = vcmp.ge.f32.partialorder %v3569, 0.0
        %vm3618 = vcmp.ge.f32.partialorder %v3570, 0.0
        %vm3619 = vcmp.ge.f32.partialorder %v3571, 0.0
        %vm3620 = vcmp.ge.f32.partialorder %v3572, 0.0
        %vm3621 = vcmp.ge.f32.partialorder %v3573, 0.0
        %vm3622 = vcmp.ge.f32.partialorder %v3574, 0.0
        %vm3623 = vcmp.ge.f32.partialorder %v3575, 0.0
        %vm3624 = vcmp.ge.f32.partialorder %v3576, 0.0
        %vm3625 = vcmp.ge.f32.partialorder %v3577, 0.0
        %vm3626 = vcmp.ge.f32.partialorder %v3578, 0.0
        %vm3627 = vcmp.ge.f32.partialorder %v3579, 0.0
        %vm3628 = vcmp.ge.f32.partialorder %v3580, 0.0
        %vm3629 = vcmp.ge.f32.partialorder %v3581, 0.0
        %vm3630 = vcmp.ge.f32.partialorder %v3582, 0.0
        %vm3631 = vcmp.ge.f32.partialorder %v3583, 0.0
        %vm3632 = vcmp.ge.f32.partialorder %v3584, 0.0
        %vm3633 = vcmp.ge.f32.partialorder %v3585, 0.0
        %vm3634 = vcmp.ge.f32.partialorder %v3586, 0.0
        %vm3635 = vcmp.ge.f32.partialorder %v3587, 0.0
        %vm3636 = vcmp.ge.f32.partialorder %v3588, 0.0
        %vm3637 = vcmp.ge.f32.partialorder %v3589, 0.0
        %vm3638 = vcmp.ge.f32.partialorder %v3590, 0.0
        %v3639 = vmul.f32 %v3543, 0.01
        %v3640 = vmul.f32 %v3544, 0.01
        %v3641 = vmul.f32 %v3545, 0.01
        %v3642 = vmul.f32 %v3546, 0.01
        %v3643 = vmul.f32 %v3547, 0.01
        %v3644 = vmul.f32 %v3548, 0.01
        %v3645 = vmul.f32 %v3549, 0.01
        %v3646 = vmul.f32 %v3550, 0.01
        %v3647 = vmul.f32 %v3551, 0.01
        %v3648 = vmul.f32 %v3552, 0.01
        %v3649 = vmul.f32 %v3553, 0.01
        %v3650 = vmul.f32 %v3554, 0.01
        %v3651 = vmul.f32 %v3555, 0.01
        %v3652 = vmul.f32 %v3556, 0.01
        %v3653 = vmul.f32 %v3557, 0.01
        %v3654 = vmul.f32 %v3558, 0.01
        %v3655 = vmul.f32 %v3559, 0.01
        %v3656 = vmul.f32 %v3560, 0.01
        %v3657 = vmul.f32 %v3561, 0.01
        %v3658 = vmul.f32 %v3562, 0.01
        %v3659 = vmul.f32 %v3563, 0.01
        %v3660 = vmul.f32 %v3564, 0.01
        %v3661 = vmul.f32 %v3565, 0.01
        %v3662 = vmul.f32 %v3566, 0.01
        %v3663 = vmul.f32 %v3567, 0.01
        %v3664 = vmul.f32 %v3568, 0.01
        %v3665 = vmul.f32 %v3569, 0.01
        %v3666 = vmul.f32 %v3570, 0.01
        %v3667 = vmul.f32 %v3571, 0.01
        %v3668 = vmul.f32 %v3572, 0.01
        %v3669 = vmul.f32 %v3573, 0.01
        %v3670 = vmul.f32 %v3574, 0.01
        %v3671 = vmul.f32 %v3575, 0.01
        %v3672 = vmul.f32 %v3576, 0.01
        %v3673 = vmul.f32 %v3577, 0.01
        %v3674 = vmul.f32 %v3578, 0.01
        %v3675 = vmul.f32 %v3579, 0.01
        %v3676 = vmul.f32 %v3580, 0.01
        %v3677 = vmul.f32 %v3581, 0.01
        %v3678 = vmul.f32 %v3582, 0.01
        %v3679 = vmul.f32 %v3583, 0.01
        %v3680 = vmul.f32 %v3584, 0.01
        %v3681 = vmul.f32 %v3585, 0.01
        %v3682 = vmul.f32 %v3586, 0.01
        %v3683 = vmul.f32 %v3587, 0.01
        %v3684 = vmul.f32 %v3588, 0.01
        %v3685 = vmul.f32 %v3589, 0.01
        %v3686 = vmul.f32 %v3590, 0.01
        %v3687 = vsel %vm3591, %v3543, %v3639
        %v3688 = vsel %vm3592, %v3544, %v3640
        %v3689 = vsel %vm3593, %v3545, %v3641
        %v3690 = vsel %vm3594, %v3546, %v3642
        %v3691 = vsel %vm3595, %v3547, %v3643
        %v3692 = vsel %vm3596, %v3548, %v3644
        %v3693 = vsel %vm3597, %v3549, %v3645
        %v3694 = vsel %vm3598, %v3550, %v3646
        %v3695 = vsel %vm3599, %v3551, %v3647
        %v3696 = vsel %vm3600, %v3552, %v3648
        %v3697 = vsel %vm3601, %v3553, %v3649
        %v3698 = vsel %vm3602, %v3554, %v3650
        %v3699 = vsel %vm3603, %v3555, %v3651
        %v3700 = vsel %vm3604, %v3556, %v3652
        %v3701 = vsel %vm3605, %v3557, %v3653
        %v3702 = vsel %vm3606, %v3558, %v3654
        %v3703 = vsel %vm3607, %v3559, %v3655
        %v3704 = vsel %vm3608, %v3560, %v3656
        %v3705 = vsel %vm3609, %v3561, %v3657
        %v3706 = vsel %vm3610, %v3562, %v3658
        %v3707 = vsel %vm3611, %v3563, %v3659
        %v3708 = vsel %vm3612, %v3564, %v3660
        %v3709 = vsel %vm3613, %v3565, %v3661
        %v3710 = vsel %vm3614, %v3566, %v3662
        %v3711 = vsel %vm3615, %v3567, %v3663
        %v3712 = vsel %vm3616, %v3568, %v3664
        %v3713 = vsel %vm3617, %v3569, %v3665
        %v3714 = vsel %vm3618, %v3570, %v3666
        %v3715 = vsel %vm3619, %v3571, %v3667
        %v3716 = vsel %vm3620, %v3572, %v3668
        %v3717 = vsel %vm3621, %v3573, %v3669
        %v3718 = vsel %vm3622, %v3574, %v3670
        %v3719 = vsel %vm3623, %v3575, %v3671
        %v3720 = vsel %vm3624, %v3576, %v3672
        %v3721 = vsel %vm3625, %v3577, %v3673
        %v3722 = vsel %vm3626, %v3578, %v3674
        %v3723 = vsel %vm3627, %v3579, %v3675
        %v3724 = vsel %vm3628, %v3580, %v3676
        %v3725 = vsel %vm3629, %v3581, %v3677
        %v3726 = vsel %vm3630, %v3582, %v3678
        %v3727 = vsel %vm3631, %v3583, %v3679
        %v3728 = vsel %vm3632, %v3584, %v3680
        %v3729 = vsel %vm3633, %v3585, %v3681
        %v3730 = vsel %vm3634, %v3586, %v3682
        %v3731 = vsel %vm3635, %v3587, %v3683
        %v3732 = vsel %vm3636, %v3588, %v3684
        %v3733 = vsel %vm3637, %v3589, %v3685
        %v3734 = vsel %vm3638, %v3590, %v3686
        %3735 = vmatprep.subr.mxu0 0.0
        %3736 = vmatpush1.msra.mxu0 %v3687
        %3737 = vmatprep.subr.mxu0 0.0
        %3738 = vmatpush1.msra.mxu0 %v3688
        %3739 = vmatprep.subr.mxu0 0.0
        %3740 = vmatpush1.msra.mxu0 %v3689
        %3741 = vmatprep.subr.mxu0 0.0
        %3742 = vmatpush1.msra.mxu0 %v3690
        %3743 = vmatprep.subr.mxu0 0.0
        %3744 = vmatpush1.msra.mxu0 %v3691
        %3745 = vmatprep.subr.mxu0 0.0
        %3746 = vmatpush1.msra.mxu0 %v3692
        %3747 = vmatprep.subr.mxu0 0.0
        %3748 = vmatpush1.msra.mxu0 %v3693
        %3749 = vmatprep.subr.mxu0 0.0
        %3750 = vmatpush1.msra.mxu0 %v3694
        %3751 = vmatprep.subr.mxu0 0.0
        %3752 = vmatpush1.msra.mxu0 %v3695
        %3753 = vmatprep.subr.mxu0 0.0
        %3754 = vmatpush1.msra.mxu0 %v3696
        %3755 = vmatprep.subr.mxu0 0.0
        %3756 = vmatpush1.msra.mxu0 %v3697
        %3757 = vmatprep.subr.mxu0 0.0
        %3758 = vmatpush1.msra.mxu0 %v3698
        %3759 = vmatprep.subr.mxu0 0.0
        %3760 = vmatpush1.msra.mxu0 %v3699
        %3761 = vmatprep.subr.mxu0 0.0
        %3762 = vmatpush1.msra.mxu0 %v3700
        %3763 = vmatprep.subr.mxu0 0.0
        %3764 = vmatpush1.msra.mxu0 %v3701
        %3765 = vmatprep.subr.mxu0 0.0
        %3766 = vmatpush1.msra.mxu0 %v3702
        %3767 = vmatprep.subr.mxu0 0.0
        %3768 = vmatpush1.msra.mxu0 %v3703
        %3769 = vmatprep.subr.mxu0 0.0
        %3770 = vmatpush1.msra.mxu0 %v3704
        %3771 = vmatprep.subr.mxu0 0.0
        %3772 = vmatpush1.msra.mxu0 %v3705
        %3773 = vmatprep.subr.mxu0 0.0
        %3774 = vmatpush1.msra.mxu0 %v3706
        %3775 = vmatprep.subr.mxu0 0.0
        %3776 = vmatpush1.msra.mxu0 %v3707
        %3777 = vmatprep.subr.mxu0 0.0
        %3778 = vmatpush1.msra.mxu0 %v3708
        %3779 = vmatprep.subr.mxu0 0.0
        %3780 = vmatpush1.msra.mxu0 %v3709
        %3781 = vmatprep.subr.mxu0 0.0
        %3782 = vmatpush1.msra.mxu0 %v3710
        %3783 = vmatprep.subr.mxu0 0.0
        %3784 = vmatpush1.msra.mxu0 %v3711
        %3785 = vmatprep.subr.mxu0 0.0
        %3786 = vmatpush1.msra.mxu0 %v3712
        %3787 = vmatprep.subr.mxu0 0.0
        %3788 = vmatpush1.msra.mxu0 %v3713
        %3789 = vmatprep.subr.mxu0 0.0
        %3790 = vmatpush1.msra.mxu0 %v3714
        %3791 = vmatprep.subr.mxu0 0.0
        %3792 = vmatpush1.msra.mxu0 %v3715
        %3793 = vmatprep.subr.mxu0 0.0
        %3794 = vmatpush1.msra.mxu0 %v3716
        %3795 = vmatprep.subr.mxu0 0.0
        %3796 = vmatpush1.msra.mxu0 %v3717
        %3797 = vmatprep.subr.mxu0 0.0
        %3798 = vmatpush1.msra.mxu0 %v3718
        %3799 = vmatprep.mubr.f32.mxu0 %v944
        %3800 = vmatmul.mubr.f32.gmra.mrb[0].mxu0 %v943
        %v3801 = vpop.f32.mrb[0].mxu0
        %v3802 = vadd.f32 0.0, %v3801
        %v3803 = vpop.f32.mrb[0].mxu0
        %3804 = vdwg.mxu0
        %3805 = vmatprep.subr.mxu0 0.0
        %3806 = vmatpush1.msra.mxu0 %v3719
        %3807 = vmatprep.subr.mxu0 0.0
        %3808 = vmatpush1.msra.mxu0 %v3720
        %3809 = vmatprep.subr.mxu0 0.0
        %3810 = vmatpush1.msra.mxu0 %v3721
        %3811 = vmatprep.subr.mxu0 0.0
        %3812 = vmatpush1.msra.mxu0 %v3722
        %3813 = vmatprep.subr.mxu0 0.0
        %3814 = vmatpush1.msra.mxu0 %v3723
        %3815 = vmatprep.subr.mxu0 0.0
        %3816 = vmatpush1.msra.mxu0 %v3724
        %3817 = vmatprep.subr.mxu0 0.0
        %3818 = vmatpush1.msra.mxu0 %v3725
        %3819 = vmatprep.subr.mxu0 0.0
        %3820 = vmatpush1.msra.mxu0 %v3726
        %3821 = vmatprep.subr.mxu0 0.0
        %3822 = vmatpush1.msra.mxu0 %v3727
        %3823 = vmatprep.subr.mxu0 0.0
        %3824 = vmatpush1.msra.mxu0 %v3728
        %3825 = vmatprep.subr.mxu0 0.0
        %3826 = vmatpush1.msra.mxu0 %v3729
        %3827 = vmatprep.subr.mxu0 0.0
        %3828 = vmatpush1.msra.mxu0 %v3730
        %3829 = vmatprep.subr.mxu0 0.0
        %3830 = vmatpush1.msra.mxu0 %v3731
        %3831 = vmatprep.subr.mxu0 0.0
        %3832 = vmatpush1.msra.mxu0 %v3732
        %3833 = vmatprep.subr.mxu0 0.0
        %3834 = vmatpush1.msra.mxu0 %v3733
        %3835 = vmatprep.subr.mxu0 0.0
        %3836 = vmatpush1.msra.mxu0 %v3734
        %3837 = vmatprep.subr.mxu0 0.0
        %3838 = vmatpush1.msra.mxu0 0.0
        %3839 = vmatprep.subr.mxu0 0.0
        %3840 = vmatpush1.msra.mxu0 0.0
        %3841 = vmatprep.subr.mxu0 0.0
        %3842 = vmatpush1.msra.mxu0 0.0
        %3843 = vmatprep.subr.mxu0 0.0
        %3844 = vmatpush1.msra.mxu0 0.0
        %3845 = vmatprep.subr.mxu0 0.0
        %3846 = vmatpush1.msra.mxu0 0.0
        %3847 = vmatprep.subr.mxu0 0.0
        %3848 = vmatpush1.msra.mxu0 0.0
        %3849 = vmatprep.subr.mxu0 0.0
        %3850 = vmatpush1.msra.mxu0 0.0
        %3851 = vmatprep.subr.mxu0 0.0
        %3852 = vmatpush1.msra.mxu0 0.0
        %3853 = vmatprep.subr.mxu0 0.0
        %3854 = vmatpush1.msra.mxu0 0.0
        %3855 = vmatprep.subr.mxu0 0.0
        %3856 = vmatpush1.msra.mxu0 0.0
        %3857 = vmatprep.subr.mxu0 0.0
        %3858 = vmatpush1.msra.mxu0 0.0
        %3859 = vmatprep.subr.mxu0 0.0
        %3860 = vmatpush1.msra.mxu0 0.0
        %3861 = vmatprep.subr.mxu0 0.0
        %3862 = vmatpush1.msra.mxu0 0.0
        %3863 = vmatprep.subr.mxu0 0.0
        %3864 = vmatpush1.msra.mxu0 0.0
        %3865 = vmatprep.subr.mxu0 0.0
        %3866 = vmatpush1.msra.mxu0 0.0
        %3867 = vmatprep.subr.mxu0 0.0
        %3868 = vmatpush1.msra.mxu0 0.0
        %3869 = vmatprep.mubr.f32.mxu0 0.0
        %3870 = vmatmul.mubr.f32.gmra.mrb[0].mxu0 %v945
        %v3871 = vpop.f32.mrb[0].mxu0
        %v3872 = vadd.f32 %v3802, %v3871
        %v3873 = vpop.f32.mrb[0].mxu0
        %3874 = vdwg.mxu0
        %v3875 = vadd.f32 %v3872, %v1332
        %v3876 = vadd.f32 %v3872, %v1334
        %v3877 = vmul.f32 %v1336, %v3875
        %v3878 = vadd.f32 %v1338, %v3877
        %v3879 = vmul.f32 %v1340, %v3876
        %v3881 = vrot.slane %v3879, 1
        %v3883 = vadd.f32 %v3878, %v3881
        %v3885 = vrot.slane %v3876, 1
        %v3887 = vmul.f32 %v3875, %v3885
        %v3888 = vmul.f32 %v1350, %v3887
        %v3889 = vadd.f32 %v3883, %v3888
        %v3890 = vmul.f32 %v3875, %v3875
        %v3891 = vmul.f32 %v1354, %v3890
        %v3892 = vadd.f32 %v3889, %v3891
        %v3893 = vmul.f32 %v3876, %v3876
        %v3894 = vmul.f32 %v1358, %v3893
        %v3896 = vrot.slane %v3894, 1
        %v3898 = vadd.f32 %v3892, %v3896
        %v3899 = vmul.f32 %v3490, %v3490
        %v3900 = vmul.f32 %v1365, %v3490
        %v3901 = vadd.f32 %v3898, %v3900
        %v3902 = vmul.f32 %v3899, %v3490
        %v3903 = vmul.f32 %v1369, %v3902
        %v3904 = vadd.f32 %v3901, %v3903
        %3905 = vst [vmem:[%s340 + $0x6] sm:$0x1] %v3904
        %v3906 = vmul.f32 %v1373, %v3899
        %v3907 = vadd.f32 %v1365, %v3906
        %v3908 = vlog2.pop %v3907
        %v3909 = vmul.f32 %v3908, 0.6931472
        %3910 = vst [vmem:[%s347 + $0x6] sm:$0x1] %v3909
        %v3911 = vld [vmem:[%s351 + $0x7] sm:$0x1]
        %v3912 = vld [vmem:[%s355 + $0x7] sm:$0x1]
        %v3913 = vlaneseq
        %v3914 = vshrl.u32 %v3913, 7
        %v3915 = vsub.s32 0, %v3914
        %v3916 = vrot.slane %v3911, %v3915
        %v3917 = vmul.f32 %v418, %v3916
        %v3918 = vmul.f32 %v423, %v3916
        %v3919 = vmul.f32 %v428, %v3916
        %v3920 = vmul.f32 %v433, %v3916
        %v3921 = vmul.f32 %v438, %v3916
        %v3922 = vmul.f32 %v443, %v3916
        %v3923 = vmul.f32 %v448, %v3916
        %v3924 = vmul.f32 %v453, %v3916
        %v3925 = vmul.f32 %v458, %v3916
        %v3926 = vmul.f32 %v463, %v3916
        %v3927 = vmul.f32 %v468, %v3916
        %v3928 = vmul.f32 %v473, %v3916
        %v3929 = vmul.f32 %v478, %v3916
        %v3930 = vmul.f32 %v483, %v3916
        %v3931 = vmul.f32 %v488, %v3916
        %v3932 = vmul.f32 %v493, %v3916
        %v3933 = vmul.f32 %v498, %v3916
        %v3934 = vmul.f32 %v503, %v3916
        %v3935 = vmul.f32 %v508, %v3916
        %v3936 = vmul.f32 %v513, %v3916
        %v3937 = vmul.f32 %v518, %v3916
        %v3938 = vmul.f32 %v523, %v3916
        %v3939 = vmul.f32 %v528, %v3916
        %v3940 = vmul.f32 %v533, %v3916
        %v3941 = vmul.f32 %v538, %v3916
        %v3942 = vmul.f32 %v543, %v3916
        %v3943 = vmul.f32 %v548, %v3916
        %v3944 = vmul.f32 %v553, %v3916
        %v3945 = vmul.f32 %v558, %v3916
        %v3946 = vmul.f32 %v563, %v3916
        %v3947 = vmul.f32 %v568, %v3916
        %v3948 = vmul.f32 %v573, %v3916
        %v3949 = vmul.f32 %v578, %v3916
        %v3950 = vmul.f32 %v583, %v3916
        %v3951 = vmul.f32 %v588, %v3916
        %v3952 = vmul.f32 %v593, %v3916
        %v3953 = vmul.f32 %v598, %v3916
        %v3954 = vmul.f32 %v603, %v3916
        %v3955 = vmul.f32 %v608, %v3916
        %v3956 = vmul.f32 %v613, %v3916
        %v3957 = vmul.f32 %v618, %v3916
        %v3958 = vmul.f32 %v623, %v3916
        %v3959 = vmul.f32 %v628, %v3916
        %v3960 = vmul.f32 %v633, %v3916
        %v3961 = vmul.f32 %v638, %v3916
        %v3962 = vmul.f32 %v643, %v3916
        %v3963 = vmul.f32 %v648, %v3916
        %v3964 = vmul.f32 %v653, %v3916
        %v3965 = vadd.f32 %v3917, %v706
        %v3966 = vadd.f32 %v3918, %v711
        %v3967 = vadd.f32 %v3919, %v716
        %v3968 = vadd.f32 %v3920, %v721
        %v3969 = vadd.f32 %v3921, %v726
        %v3970 = vadd.f32 %v3922, %v731
        %v3971 = vadd.f32 %v3923, %v736
        %v3972 = vadd.f32 %v3924, %v741
        %v3973 = vadd.f32 %v3925, %v746
        %v3974 = vadd.f32 %v3926, %v751
        %v3975 = vadd.f32 %v3927, %v756
        %v3976 = vadd.f32 %v3928, %v761
        %v3977 = vadd.f32 %v3929, %v766
        %v3978 = vadd.f32 %v3930, %v771
        %v3979 = vadd.f32 %v3931, %v776
        %v3980 = vadd.f32 %v3932, %v781
        %v3981 = vadd.f32 %v3933, %v786
        %v3982 = vadd.f32 %v3934, %v791
        %v3983 = vadd.f32 %v3935, %v796
        %v3984 = vadd.f32 %v3936, %v801
        %v3985 = vadd.f32 %v3937, %v806
        %v3986 = vadd.f32 %v3938, %v811
        %v3987 = vadd.f32 %v3939, %v816
        %v3988 = vadd.f32 %v3940, %v821
        %v3989 = vadd.f32 %v3941, %v826
        %v3990 = vadd.f32 %v3942, %v831
        %v3991 = vadd.f32 %v3943, %v836
        %v3992 = vadd.f32 %v3944, %v841
        %v3993 = vadd.f32 %v3945, %v846
        %v3994 = vadd.f32 %v3946, %v851
        %v3995 = vadd.f32 %v3947, %v856
        %v3996 = vadd.f32 %v3948, %v861
        %v3997 = vadd.f32 %v3949, %v866
        %v3998 = vadd.f32 %v3950, %v871
        %v3999 = vadd.f32 %v3951, %v876
        %v4000 = vadd.f32 %v3952, %v881
        %v4001 = vadd.f32 %v3953, %v886
        %v4002 = vadd.f32 %v3954, %v891
        %v4003 = vadd.f32 %v3955, %v896
        %v4004 = vadd.f32 %v3956, %v901
        %v4005 = vadd.f32 %v3957, %v906
        %v4006 = vadd.f32 %v3958, %v911
        %v4007 = vadd.f32 %v3959, %v916
        %v4008 = vadd.f32 %v3960, %v921
        %v4009 = vadd.f32 %v3961, %v926
        %v4010 = vadd.f32 %v3962, %v931
        %v4011 = vadd.f32 %v3963, %v936
        %v4012 = vadd.f32 %v3964, %v941
        %vm4013 = vcmp.ge.f32.partialorder %v3965, 0.0
        %vm4014 = vcmp.ge.f32.partialorder %v3966, 0.0
        %vm4015 = vcmp.ge.f32.partialorder %v3967, 0.0
        %vm4016 = vcmp.ge.f32.partialorder %v3968, 0.0
        %vm4017 = vcmp.ge.f32.partialorder %v3969, 0.0
        %vm4018 = vcmp.ge.f32.partialorder %v3970, 0.0
        %vm4019 = vcmp.ge.f32.partialorder %v3971, 0.0
        %vm4020 = vcmp.ge.f32.partialorder %v3972, 0.0
        %vm4021 = vcmp.ge.f32.partialorder %v3973, 0.0
        %vm4022 = vcmp.ge.f32.partialorder %v3974, 0.0
        %vm4023 = vcmp.ge.f32.partialorder %v3975, 0.0
        %vm4024 = vcmp.ge.f32.partialorder %v3976, 0.0
        %vm4025 = vcmp.ge.f32.partialorder %v3977, 0.0
        %vm4026 = vcmp.ge.f32.partialorder %v3978, 0.0
        %vm4027 = vcmp.ge.f32.partialorder %v3979, 0.0
        %vm4028 = vcmp.ge.f32.partialorder %v3980, 0.0
        %vm4029 = vcmp.ge.f32.partialorder %v3981, 0.0
        %vm4030 = vcmp.ge.f32.partialorder %v3982, 0.0
        %vm4031 = vcmp.ge.f32.partialorder %v3983, 0.0
        %vm4032 = vcmp.ge.f32.partialorder %v3984, 0.0
        %vm4033 = vcmp.ge.f32.partialorder %v3985, 0.0
        %vm4034 = vcmp.ge.f32.partialorder %v3986, 0.0
        %vm4035 = vcmp.ge.f32.partialorder %v3987, 0.0
        %vm4036 = vcmp.ge.f32.partialorder %v3988, 0.0
        %vm4037 = vcmp.ge.f32.partialorder %v3989, 0.0
        %vm4038 = vcmp.ge.f32.partialorder %v3990, 0.0
        %vm4039 = vcmp.ge.f32.partialorder %v3991, 0.0
        %vm4040 = vcmp.ge.f32.partialorder %v3992, 0.0
        %vm4041 = vcmp.ge.f32.partialorder %v3993, 0.0
        %vm4042 = vcmp.ge.f32.partialorder %v3994, 0.0
        %vm4043 = vcmp.ge.f32.partialorder %v3995, 0.0
        %vm4044 = vcmp.ge.f32.partialorder %v3996, 0.0
        %vm4045 = vcmp.ge.f32.partialorder %v3997, 0.0
        %vm4046 = vcmp.ge.f32.partialorder %v3998, 0.0
        %vm4047 = vcmp.ge.f32.partialorder %v3999, 0.0
        %vm4048 = vcmp.ge.f32.partialorder %v4000, 0.0
        %vm4049 = vcmp.ge.f32.partialorder %v4001, 0.0
        %vm4050 = vcmp.ge.f32.partialorder %v4002, 0.0
        %vm4051 = vcmp.ge.f32.partialorder %v4003, 0.0
        %vm4052 = vcmp.ge.f32.partialorder %v4004, 0.0
        %vm4053 = vcmp.ge.f32.partialorder %v4005, 0.0
        %vm4054 = vcmp.ge.f32.partialorder %v4006, 0.0
        %vm4055 = vcmp.ge.f32.partialorder %v4007, 0.0
        %vm4056 = vcmp.ge.f32.partialorder %v4008, 0.0
        %vm4057 = vcmp.ge.f32.partialorder %v4009, 0.0
        %vm4058 = vcmp.ge.f32.partialorder %v4010, 0.0
        %vm4059 = vcmp.ge.f32.partialorder %v4011, 0.0
        %vm4060 = vcmp.ge.f32.partialorder %v4012, 0.0
        %v4061 = vmul.f32 %v3965, 0.01
        %v4062 = vmul.f32 %v3966, 0.01
        %v4063 = vmul.f32 %v3967, 0.01
        %v4064 = vmul.f32 %v3968, 0.01
        %v4065 = vmul.f32 %v3969, 0.01
        %v4066 = vmul.f32 %v3970, 0.01
        %v4067 = vmul.f32 %v3971, 0.01
        %v4068 = vmul.f32 %v3972, 0.01
        %v4069 = vmul.f32 %v3973, 0.01
        %v4070 = vmul.f32 %v3974, 0.01
        %v4071 = vmul.f32 %v3975, 0.01
        %v4072 = vmul.f32 %v3976, 0.01
        %v4073 = vmul.f32 %v3977, 0.01
        %v4074 = vmul.f32 %v3978, 0.01
        %v4075 = vmul.f32 %v3979, 0.01
        %v4076 = vmul.f32 %v3980, 0.01
        %v4077 = vmul.f32 %v3981, 0.01
        %v4078 = vmul.f32 %v3982, 0.01
        %v4079 = vmul.f32 %v3983, 0.01
        %v4080 = vmul.f32 %v3984, 0.01
        %v4081 = vmul.f32 %v3985, 0.01
        %v4082 = vmul.f32 %v3986, 0.01
        %v4083 = vmul.f32 %v3987, 0.01
        %v4084 = vmul.f32 %v3988, 0.01
        %v4085 = vmul.f32 %v3989, 0.01
        %v4086 = vmul.f32 %v3990, 0.01
        %v4087 = vmul.f32 %v3991, 0.01
        %v4088 = vmul.f32 %v3992, 0.01
        %v4089 = vmul.f32 %v3993, 0.01
        %v4090 = vmul.f32 %v3994, 0.01
        %v4091 = vmul.f32 %v3995, 0.01
        %v4092 = vmul.f32 %v3996, 0.01
        %v4093 = vmul.f32 %v3997, 0.01
        %v4094 = vmul.f32 %v3998, 0.01
        %v4095 = vmul.f32 %v3999, 0.01
        %v4096 = vmul.f32 %v4000, 0.01
        %v4097 = vmul.f32 %v4001, 0.01
        %v4098 = vmul.f32 %v4002, 0.01
        %v4099 = vmul.f32 %v4003, 0.01
        %v4100 = vmul.f32 %v4004, 0.01
        %v4101 = vmul.f32 %v4005, 0.01
        %v4102 = vmul.f32 %v4006, 0.01
        %v4103 = vmul.f32 %v4007, 0.01
        %v4104 = vmul.f32 %v4008, 0.01
        %v4105 = vmul.f32 %v4009, 0.01
        %v4106 = vmul.f32 %v4010, 0.01
        %v4107 = vmul.f32 %v4011, 0.01
        %v4108 = vmul.f32 %v4012, 0.01
        %v4109 = vsel %vm4013, %v3965, %v4061
        %v4110 = vsel %vm4014, %v3966, %v4062
        %v4111 = vsel %vm4015, %v3967, %v4063
        %v4112 = vsel %vm4016, %v3968, %v4064
        %v4113 = vsel %vm4017, %v3969, %v4065
        %v4114 = vsel %vm4018, %v3970, %v4066
        %v4115 = vsel %vm4019, %v3971, %v4067
        %v4116 = vsel %vm4020, %v3972, %v4068
        %v4117 = vsel %vm4021, %v3973, %v4069
        %v4118 = vsel %vm4022, %v3974, %v4070
        %v4119 = vsel %vm4023, %v3975, %v4071
        %v4120 = vsel %vm4024, %v3976, %v4072
        %v4121 = vsel %vm4025, %v3977, %v4073
        %v4122 = vsel %vm4026, %v3978, %v4074
        %v4123 = vsel %vm4027, %v3979, %v4075
        %v4124 = vsel %vm4028, %v3980, %v4076
        %v4125 = vsel %vm4029, %v3981, %v4077
        %v4126 = vsel %vm4030, %v3982, %v4078
        %v4127 = vsel %vm4031, %v3983, %v4079
        %v4128 = vsel %vm4032, %v3984, %v4080
        %v4129 = vsel %vm4033, %v3985, %v4081
        %v4130 = vsel %vm4034, %v3986, %v4082
        %v4131 = vsel %vm4035, %v3987, %v4083
        %v4132 = vsel %vm4036, %v3988, %v4084
        %v4133 = vsel %vm4037, %v3989, %v4085
        %v4134 = vsel %vm4038, %v3990, %v4086
        %v4135 = vsel %vm4039, %v3991, %v4087
        %v4136 = vsel %vm4040, %v3992, %v4088
        %v4137 = vsel %vm4041, %v3993, %v4089
        %v4138 = vsel %vm4042, %v3994, %v4090
        %v4139 = vsel %vm4043, %v3995, %v4091
        %v4140 = vsel %vm4044, %v3996, %v4092
        %v4141 = vsel %vm4045, %v3997, %v4093
        %v4142 = vsel %vm4046, %v3998, %v4094
        %v4143 = vsel %vm4047, %v3999, %v4095
        %v4144 = vsel %vm4048, %v4000, %v4096
        %v4145 = vsel %vm4049, %v4001, %v4097
        %v4146 = vsel %vm4050, %v4002, %v4098
        %v4147 = vsel %vm4051, %v4003, %v4099
        %v4148 = vsel %vm4052, %v4004, %v4100
        %v4149 = vsel %vm4053, %v4005, %v4101
        %v4150 = vsel %vm4054, %v4006, %v4102
        %v4151 = vsel %vm4055, %v4007, %v4103
        %v4152 = vsel %vm4056, %v4008, %v4104
        %v4153 = vsel %vm4057, %v4009, %v4105
        %v4154 = vsel %vm4058, %v4010, %v4106
        %v4155 = vsel %vm4059, %v4011, %v4107
        %v4156 = vsel %vm4060, %v4012, %v4108
        %4157 = vmatprep.subr.mxu0 0.0
        %4158 = vmatpush1.msra.mxu0 %v4109
        %4159 = vmatprep.subr.mxu0 0.0
        %4160 = vmatpush1.msra.mxu0 %v4110
        %4161 = vmatprep.subr.mxu0 0.0
        %4162 = vmatpush1.msra.mxu0 %v4111
        %4163 = vmatprep.subr.mxu0 0.0
        %4164 = vmatpush1.msra.mxu0 %v4112
        %4165 = vmatprep.subr.mxu0 0.0
        %4166 = vmatpush1.msra.mxu0 %v4113
        %4167 = vmatprep.subr.mxu0 0.0
        %4168 = vmatpush1.msra.mxu0 %v4114
        %4169 = vmatprep.subr.mxu0 0.0
        %4170 = vmatpush1.msra.mxu0 %v4115
        %4171 = vmatprep.subr.mxu0 0.0
        %4172 = vmatpush1.msra.mxu0 %v4116
        %4173 = vmatprep.subr.mxu0 0.0
        %4174 = vmatpush1.msra.mxu0 %v4117
        %4175 = vmatprep.subr.mxu0 0.0
        %4176 = vmatpush1.msra.mxu0 %v4118
        %4177 = vmatprep.subr.mxu0 0.0
        %4178 = vmatpush1.msra.mxu0 %v4119
        %4179 = vmatprep.subr.mxu0 0.0
        %4180 = vmatpush1.msra.mxu0 %v4120
        %4181 = vmatprep.subr.mxu0 0.0
        %4182 = vmatpush1.msra.mxu0 %v4121
        %4183 = vmatprep.subr.mxu0 0.0
        %4184 = vmatpush1.msra.mxu0 %v4122
        %4185 = vmatprep.subr.mxu0 0.0
        %4186 = vmatpush1.msra.mxu0 %v4123
        %4187 = vmatprep.subr.mxu0 0.0
        %4188 = vmatpush1.msra.mxu0 %v4124
        %4189 = vmatprep.subr.mxu0 0.0
        %4190 = vmatpush1.msra.mxu0 %v4125
        %4191 = vmatprep.subr.mxu0 0.0
        %4192 = vmatpush1.msra.mxu0 %v4126
        %4193 = vmatprep.subr.mxu0 0.0
        %4194 = vmatpush1.msra.mxu0 %v4127
        %4195 = vmatprep.subr.mxu0 0.0
        %4196 = vmatpush1.msra.mxu0 %v4128
        %4197 = vmatprep.subr.mxu0 0.0
        %4198 = vmatpush1.msra.mxu0 %v4129
        %4199 = vmatprep.subr.mxu0 0.0
        %4200 = vmatpush1.msra.mxu0 %v4130
        %4201 = vmatprep.subr.mxu0 0.0
        %4202 = vmatpush1.msra.mxu0 %v4131
        %4203 = vmatprep.subr.mxu0 0.0
        %4204 = vmatpush1.msra.mxu0 %v4132
        %4205 = vmatprep.subr.mxu0 0.0
        %4206 = vmatpush1.msra.mxu0 %v4133
        %4207 = vmatprep.subr.mxu0 0.0
        %4208 = vmatpush1.msra.mxu0 %v4134
        %4209 = vmatprep.subr.mxu0 0.0
        %4210 = vmatpush1.msra.mxu0 %v4135
        %4211 = vmatprep.subr.mxu0 0.0
        %4212 = vmatpush1.msra.mxu0 %v4136
        %4213 = vmatprep.subr.mxu0 0.0
        %4214 = vmatpush1.msra.mxu0 %v4137
        %4215 = vmatprep.subr.mxu0 0.0
        %4216 = vmatpush1.msra.mxu0 %v4138
        %4217 = vmatprep.subr.mxu0 0.0
        %4218 = vmatpush1.msra.mxu0 %v4139
        %4219 = vmatprep.subr.mxu0 0.0
        %4220 = vmatpush1.msra.mxu0 %v4140
        %4221 = vmatprep.mubr.f32.mxu0 %v944
        %4222 = vmatmul.mubr.f32.gmra.mrb[0].mxu0 %v943
        %v4223 = vpop.f32.mrb[0].mxu0
        %v4224 = vadd.f32 0.0, %v4223
        %v4225 = vpop.f32.mrb[0].mxu0
        %4226 = vdwg.mxu0
        %4227 = vmatprep.subr.mxu0 0.0
        %4228 = vmatpush1.msra.mxu0 %v4141
        %4229 = vmatprep.subr.mxu0 0.0
        %4230 = vmatpush1.msra.mxu0 %v4142
        %4231 = vmatprep.subr.mxu0 0.0
        %4232 = vmatpush1.msra.mxu0 %v4143
        %4233 = vmatprep.subr.mxu0 0.0
        %4234 = vmatpush1.msra.mxu0 %v4144
        %4235 = vmatprep.subr.mxu0 0.0
        %4236 = vmatpush1.msra.mxu0 %v4145
        %4237 = vmatprep.subr.mxu0 0.0
        %4238 = vmatpush1.msra.mxu0 %v4146
        %4239 = vmatprep.subr.mxu0 0.0
        %4240 = vmatpush1.msra.mxu0 %v4147
        %4241 = vmatprep.subr.mxu0 0.0
        %4242 = vmatpush1.msra.mxu0 %v4148
        %4243 = vmatprep.subr.mxu0 0.0
        %4244 = vmatpush1.msra.mxu0 %v4149
        %4245 = vmatprep.subr.mxu0 0.0
        %4246 = vmatpush1.msra.mxu0 %v4150
        %4247 = vmatprep.subr.mxu0 0.0
        %4248 = vmatpush1.msra.mxu0 %v4151
        %4249 = vmatprep.subr.mxu0 0.0
        %4250 = vmatpush1.msra.mxu0 %v4152
        %4251 = vmatprep.subr.mxu0 0.0
        %4252 = vmatpush1.msra.mxu0 %v4153
        %4253 = vmatprep.subr.mxu0 0.0
        %4254 = vmatpush1.msra.mxu0 %v4154
        %4255 = vmatprep.subr.mxu0 0.0
        %4256 = vmatpush1.msra.mxu0 %v4155
        %4257 = vmatprep.subr.mxu0 0.0
        %4258 = vmatpush1.msra.mxu0 %v4156
        %4259 = vmatprep.subr.mxu0 0.0
        %4260 = vmatpush1.msra.mxu0 0.0
        %4261 = vmatprep.subr.mxu0 0.0
        %4262 = vmatpush1.msra.mxu0 0.0
        %4263 = vmatprep.subr.mxu0 0.0
        %4264 = vmatpush1.msra.mxu0 0.0
        %4265 = vmatprep.subr.mxu0 0.0
        %4266 = vmatpush1.msra.mxu0 0.0
        %4267 = vmatprep.subr.mxu0 0.0
        %4268 = vmatpush1.msra.mxu0 0.0
        %4269 = vmatprep.subr.mxu0 0.0
        %4270 = vmatpush1.msra.mxu0 0.0
        %4271 = vmatprep.subr.mxu0 0.0
        %4272 = vmatpush1.msra.mxu0 0.0
        %4273 = vmatprep.subr.mxu0 0.0
        %4274 = vmatpush1.msra.mxu0 0.0
        %4275 = vmatprep.subr.mxu0 0.0
        %4276 = vmatpush1.msra.mxu0 0.0
        %4277 = vmatprep.subr.mxu0 0.0
        %4278 = vmatpush1.msra.mxu0 0.0
        %4279 = vmatprep.subr.mxu0 0.0
        %4280 = vmatpush1.msra.mxu0 0.0
        %4281 = vmatprep.subr.mxu0 0.0
        %4282 = vmatpush1.msra.mxu0 0.0
        %4283 = vmatprep.subr.mxu0 0.0
        %4284 = vmatpush1.msra.mxu0 0.0
        %4285 = vmatprep.subr.mxu0 0.0
        %4286 = vmatpush1.msra.mxu0 0.0
        %4287 = vmatprep.subr.mxu0 0.0
        %4288 = vmatpush1.msra.mxu0 0.0
        %4289 = vmatprep.subr.mxu0 0.0
        %4290 = vmatpush1.msra.mxu0 0.0
        %4291 = vmatprep.mubr.f32.mxu0 0.0
        %4292 = vmatmul.mubr.f32.gmra.mrb[0].mxu0 %v945
        %v4293 = vpop.f32.mrb[0].mxu0
        %v4294 = vadd.f32 %v4224, %v4293
        %v4295 = vpop.f32.mrb[0].mxu0
        %4296 = vdwg.mxu0
        %v4297 = vadd.f32 %v4294, %v1332
        %v4298 = vadd.f32 %v4294, %v1334
        %v4299 = vmul.f32 %v1336, %v4297
        %v4300 = vadd.f32 %v1338, %v4299
        %v4301 = vmul.f32 %v1340, %v4298
        %v4303 = vrot.slane %v4301, 1
        %v4305 = vadd.f32 %v4300, %v4303
        %v4307 = vrot.slane %v4298, 1
        %v4309 = vmul.f32 %v4297, %v4307
        %v4310 = vmul.f32 %v1350, %v4309
        %v4311 = vadd.f32 %v4305, %v4310
        %v4312 = vmul.f32 %v4297, %v4297
        %v4313 = vmul.f32 %v1354, %v4312
        %v4314 = vadd.f32 %v4311, %v4313
        %v4315 = vmul.f32 %v4298, %v4298
        %v4316 = vmul.f32 %v1358, %v4315
        %v4318 = vrot.slane %v4316, 1
        %v4320 = vadd.f32 %v4314, %v4318
        %v4321 = vmul.f32 %v3912, %v3912
        %v4322 = vmul.f32 %v1365, %v3912
        %v4323 = vadd.f32 %v4320, %v4322
        %v4324 = vmul.f32 %v4321, %v3912
        %v4325 = vmul.f32 %v1369, %v4324
        %v4326 = vadd.f32 %v4323, %v4325
        %4327 = vst [vmem:[%s340 + $0x7] sm:$0x1] %v4326
        %v4328 = vmul.f32 %v1373, %v4321
        %v4329 = vadd.f32 %v1365, %v4328
        %v4330 = vlog2.pop %v4329
        %v4331 = vmul.f32 %v4330, 0.6931472
        %4332 = vst [vmem:[%s347 + $0x7] sm:$0x1] %v4331
        %s4333 = sand.u32 %s193, 1
        %s4334 = scalar_lea.sflag [#allocation3], %s4333
        %s4335 = sand.u32 %s193, 1
        %s4336 = smul.addr %s4335, 8
        %s4337 = scalar_lea.vmem [#allocation7], %s4336
        %s4338 = sand.u32 %s219, 1
        %s4339 = scalar_lea.sflag [#allocation9], %s4338
        %s4340 = sand.u32 %s219, 1
        %s4341 = smul.addr %s4340, 8
        %s4342 = scalar_lea.vmem [#allocation8], %s4341
        // Predicated region
        $region57: #{tpu_custom_call.1} parent=47 // pred_check
          %p4343 = pneg %p203
        $region58: #{tpu_custom_call.1} parent=47 // pred_check_branch
          %4345 = sbr.rel (%p4343) target = $region60
        $region59: #{tpu_custom_call.1} parent=47 // pred_region
          %s4347 = ssub.s32 128, 128
          %4348 = vsyncadd %s4334, %s4347
          %s4349 = smul.addr %s28, 128
          %s4350 = scalar_lea.hbm %s7, %s4349
          %s4352 = sshll.u32 %s4337, 4
          %s4353 = int_to_ptr.vmem [resolvable:$true] %s4352
          %4355 = dma.vmem_to_hbm [thread:$0]  %s4353, 128, %s4350, %s4334
        $region60: #{tpu_custom_call.1} parent=47 // pred_fallthru
          _
        // Predicated region
        $region61: #{tpu_custom_call.1} parent=47 // pred_check
          %p4356 = pneg %p229
        $region62: #{tpu_custom_call.1} parent=47 // pred_check_branch
          %4358 = sbr.rel (%p4356) target = $region64
        $region63: #{tpu_custom_call.1} parent=47 // pred_region
          %s4360 = ssub.s32 128, 128
          %4361 = vsyncadd %s4339, %s4360
          %s4362 = smul.addr %s28, 128
          %s4363 = scalar_lea.hbm %s8, %s4362
          %s4365 = sshll.u32 %s4342, 4
          %s4366 = int_to_ptr.vmem [resolvable:$true] %s4365
          %4368 = dma.vmem_to_hbm [thread:$0]  %s4366, 128, %s4363, %s4339
        $region64: #{tpu_custom_call.1} parent=47 // pred_fallthru
          _
      $region48: #{tpu_custom_call.1} parent=5 // pred_fallthru
        _
      %p4369 = scmp.le.s32.totalorder 2, %s23
      // Predicated region
      $region65: #{tpu_custom_call.1} parent=5 // pred_check
        %p4370 = pneg %p4369
      $region66: #{tpu_custom_call.1} parent=5 // pred_check_branch
        %4372 = sbr.rel (%p4370) target = $region68
      $region67: #{tpu_custom_call.1} parent=5 // pred_region
        %s4373 = ssub.s32 %s23, 2
        // Predicated region
        $region69: #{tpu_custom_call.1} parent=67 // pred_check
          %p4374 = pneg %p209
        $region70: #{tpu_custom_call.1} parent=67 // pred_check_branch
          %4376 = sbr.rel (%p4374) target = $region72
        $region71: #{tpu_custom_call.1} parent=67 // pred_region
          %s4377 = sand.u32 %s194, 1
          %s4378 = scalar_lea.sflag [#allocation3], %s4377
          %s4379 = sand.u32 %s194, 1
          %s4380 = smul.addr %s4379, 8
          %s4381 = scalar_lea.vmem [#allocation7], %s4380
          %4382 = dma.done %s4378, 128
        $region72: #{tpu_custom_call.1} parent=67 // pred_fallthru
          _
        // Predicated region
        $region73: #{tpu_custom_call.1} parent=67 // pred_check
          %p4383 = pneg %p235
        $region74: #{tpu_custom_call.1} parent=67 // pred_check_branch
          %4385 = sbr.rel (%p4383) target = $region76
        $region75: #{tpu_custom_call.1} parent=67 // pred_region
          %s4386 = sand.u32 %s220, 1
          %s4387 = scalar_lea.sflag [#allocation9], %s4386
          %s4388 = sand.u32 %s220, 1
          %s4389 = smul.addr %s4388, 8
          %s4390 = scalar_lea.vmem [#allocation8], %s4389
          %4391 = dma.done %s4387, 128
        $region76: #{tpu_custom_call.1} parent=67 // pred_fallthru
          _
      $region68: #{tpu_custom_call.1} parent=5 // pred_fallthru
        _
    $region6: #{tpu_custom_call.1} parent=1 // loop_footer
      %s27 = sadd.s32 1, %s23
    $region7: #{tpu_custom_call.1} parent=1 // loop_footer_branch
      %22 = sbr.rel target = $region3
    $region8: #{tpu_custom_call.1} parent=1 // loop_exit
      _
    %4392 = vsyncpa [#allocation3], 1
    %s4393 = scalar_lea.sflag [#allocation3], 1
    %4394 = vsyncpa %s4393, 1
    %4395 = vsyncpa [#allocation9], 1
    %s4396 = scalar_lea.sflag [#allocation9], 1
    %4397 = vsyncpa %s4396, 1
    %4398 = vsyncpa [#allocation4], 1
    %s4399 = scalar_lea.sflag [#allocation4], 1
    %4400 = vsyncpa %s4399, 1
    %4401 = vsyncpa [#allocation6], 1

</llo_original>
